<compile_context>
chip_gen: v5e
topology: v5e:2x2
jax: 0.10.0
libtpu: 0.0.40
codegen_flags: <defaults>
</compile_context>

<pallas_src>
import functools
import math

import jax
import jax.numpy as jnp
from jax.experimental import pallas as pl
from jax.experimental.pallas import tpu as pltpu


def _round_up(x: int, m: int) -> int:
    return (x + m - 1) // m * m


def _pe_fourier_kernel(pos_ref, m_ref, phase_ref, wt_ref, out_ref, *, expand_on_vpu):
    """pos:(TM,8) f32, M:(8,Kp) f32, phase:(1,Kp) f32, W^T:(Kp,D) -> out:(TM,D)."""
    pos = pos_ref[...]
    if expand_on_vpu:
        # VPU expansion: three broadcast-muls + two adds. Trades the (pass-padded,
        # f32) K=8 MXU matmul for VALU work -- pays on v5e where that matmul's MXU
        # occupancy rivals the real projection.
        m = m_ref[...]
        arg = (pos[:, 0:1] * m[0:1, :]
               + pos[:, 1:2] * m[1:2, :]
               + pos[:, 2:3] * m[2:3, :])
    else:
        # MXU expansion: one small matmul; on v6e/v7x it stays hidden under the
        # output-writeback bound, keeping the VPU free.
        arg = jnp.dot(pos, m_ref[...], preferred_element_type=jnp.float32)
    # cos(x) == sin(x + pi/2): a single transcendental, no sin+cos+select. The spare
    # bias column has arg == 0 and phase == pi/2, so feats there is exactly 1.0 and
    # the bias (stored as one weight row) is added by the projection matmul itself.
    feats = jnp.sin(arg + phase_ref[...])
    out = jnp.dot(feats.astype(wt_ref.dtype), wt_ref[...],
                  preferred_element_type=jnp.float32)
    out_ref[...] = out.astype(out_ref.dtype)


def positional_encoding_fourier(pos_embed, weight, bias, *,
                                hidden_dim=64, temperature=10000,
                                max_len=(1.0, 1.0, 1.0),
                                tm=2048, min_grid_steps=2,
                                matmul_dtype=jnp.bfloat16,
                                out_dtype=jnp.float32,
                                expand_on_vpu=False):
    """pos_embed: (N, 3) f32 (cols z, y, x); weight: (dim, 3*hidden_dim); bias: (dim,)."""
    N, C = pos_embed.shape
    assert C == 3, "pos_embed must have 3 coordinate columns (z, y, x)"
    H = hidden_dim
    dim = weight.shape[0]
    assert weight.shape == (dim, 3 * H)
    assert tm % 8 == 0 and tm >= 8
    assert min_grid_steps >= 1

    scale = 2.0 * math.pi
    eps = 1e-6

    # dim_t exactly as in the reference: temperature ** (2*(j//2)/H)
    j = jnp.arange(H, dtype=jnp.float32)
    dim_t = jnp.float32(temperature) ** (2.0 * jnp.floor(j / 2.0) / jnp.float32(H))
    inv_dim_t = 1.0 / dim_t                                     # (H,)

    K = 3 * H
    Kp = _round_up(K + 1, 128)   # >=1 spare (zero) column reserved for the bias trick
    bias_col = K
    Cp = 8                       # coordinate dim padded 3 -> 8 (one sublane group)

    # Expansion matrix: arg[:, c*H + k] = pos[:, c] * (scale/(max_len[c]+eps)) / dim_t[k]
    cs = [scale / (float(ml) + eps) for ml in max_len]          # z, y, x order
    M = jnp.zeros((Cp, Kp), jnp.float32)
    for c in range(3):
        M = M.at[c, c * H:(c + 1) * H].set(cs[c] * inv_dim_t)

    # Phase: even feature index -> sin (0), odd -> cos (pi/2). Bias column -> pi/2 so
    # feats[:, bias_col] == sin(pi/2) == 1 for every row. Remaining padded cols stay 0.
    odd = (jnp.arange(K) % 2) == 1
    phase = jnp.zeros((Kp,), jnp.float32)
    phase = phase.at[:K].set(jnp.where(odd, jnp.float32(math.pi / 2.0), jnp.float32(0.0)))
    phase = phase.at[bias_col].set(jnp.float32(math.pi / 2.0))
    phase = phase.reshape(1, Kp)

    # Projection weight, pre-transposed, K-padded with zero rows, bias folded into the
    # constant-1 row. bf16 operands halve MXU passes / weight DMA; accumulation stays f32.
    wt = jnp.zeros((Kp, dim), jnp.float32)
    wt = wt.at[:K, :].set(weight.T.astype(jnp.float32))
    wt = wt.at[bias_col, :].set(bias.astype(jnp.float32))
    wt = wt.astype(matmul_dtype)

    # Rows padded only to the sublane multiple (8); the grid uses cdiv so Pallas clips the
    # ragged last tile -> no post-call slice copy whenever N is already a multiple of 8.
    n_rows = _round_up(N, 8)
    # Largest tile that still gives >= min_grid_steps steps (keeps both v7x TensorCores
    # busy) while amortizing the ~0.35 us per-grid-step overhead.
    tm = max(8, min(tm, _round_up(pl.cdiv(n_rows, min_grid_steps), 8)))
    n_steps = pl.cdiv(n_rows, tm)

    pos_p = jnp.pad(pos_embed.astype(jnp.float32), ((0, n_rows - N), (0, Cp - C)))

    out = pl.pallas_call(
        functools.partial(_pe_fourier_kernel, expand_on_vpu=expand_on_vpu),
        out_shape=jax.ShapeDtypeStruct((n_rows, dim), out_dtype),
        grid_spec=pltpu.PrefetchScalarGridSpec(
            num_scalar_prefetch=0,
            grid=(n_steps,),
            in_specs=[
                pl.BlockSpec((tm, Cp), lambda i: (i, 0)),     # pos rows tile
                pl.BlockSpec((Cp, Kp), lambda i: (0, 0)),     # expansion matrix (resident)
                pl.BlockSpec((1, Kp), lambda i: (0, 0)),      # sin/cos phase (resident)
                pl.BlockSpec((Kp, dim), lambda i: (0, 0)),    # projection weight^T + bias row
            ],
            out_specs=pl.BlockSpec((tm, dim), lambda i: (i, 0)),
        ),
        compiler_params=pltpu.CompilerParams(dimension_semantics=("parallel",)),
    )(pos_p, M, phase, wt)

    if n_rows == N:
        return out
    # Only when N % 8 != 0: slice off at most 7 padded rows (those rows are bias-valued
    # garbage by construction and must never be read by the consumer).
    return out[:N]


def _reference(pos_embed, weight, bias, *, hidden_dim=64, temperature=10000,
               max_len=(1.0, 1.0, 1.0)):
    """Pure-JAX transcription of the PyTorch forward for verification."""
    scale = 2.0 * math.pi
    eps = 1e-6
    z = pos_embed[:, 0:1] / (max_len[0] + eps) * scale
    y = pos_embed[:, 1:2] / (max_len[1] + eps) * scale
    x = pos_embed[:, 2:3] / (max_len[2] + eps) * scale
    i = jnp.arange(hidden_dim, dtype=jnp.float32)
    dim_t = temperature ** (2.0 * jnp.floor(i / 2.0) / hidden_dim)

    def ff(e):
        p = e / dim_t
        s = jnp.sin(p[:, 0::2])
        c = jnp.cos(p[:, 1::2])
        return jnp.stack([s, c], axis=2).reshape(e.shape[0], -1)

    pos = jnp.concatenate([ff(z), ff(y), ff(x)], axis=1)
    return pos @ weight.T + bias


if __name__ == "__main__":
    hidden_dim = 64
    dim = 128
    N = 256  # number of points (small demo shape)

    key = jax.random.PRNGKey(0)
    k_pos, k_w, k_b = jax.random.split(key, 3)

    # coordinates in [0, 1) (z, y, x), like normalized voxel positions
    pos_embed = jax.random.uniform(k_pos, (N, 3), dtype=jnp.float32)

    # deterministic nn.Linear(hidden_dim*3, dim) init: U(-1/sqrt(fan_in), 1/sqrt(fan_in))
    fan_in = 3 * hidden_dim
    bound = 1.0 / math.sqrt(fan_in)
    weight = jax.random.uniform(k_w, (dim, fan_in), jnp.float32, -bound, bound)
    bias = jax.random.uniform(k_b, (dim,), jnp.float32, -bound, bound)

    ref = _reference(pos_embed, weight, bias, hidden_dim=hidden_dim,
                     temperature=10000, max_len=(1.0, 1.0, 1.0))

    # 1) f32-operand, f32-output, MXU-expansion path (tight tolerance)
    out = jax.block_until_ready(positional_encoding_fourier(
        pos_embed, weight, bias, hidden_dim=hidden_dim,
        matmul_dtype=jnp.float32, out_dtype=jnp.float32))
    assert out.shape == (N, dim), out.shape
    assert jnp.allclose(out, ref, rtol=5e-3, atol=5e-3), float(jnp.max(jnp.abs(out - ref)))

    # 2) f32 VPU-expansion variant (the v5e lever)
    out = jax.block_until_ready(positional_encoding_fourier(
        pos_embed, weight, bias, hidden_dim=hidden_dim,
        matmul_dtype=jnp.float32, out_dtype=jnp.float32, expand_on_vpu=True))
    assert jnp.allclose(out, ref, rtol=5e-3, atol=5e-3), float(jnp.max(jnp.abs(out - ref)))

    # 3) default fast path: bf16 MXU operands + bf16 output (halved writeback stream)
    out_bf16 = jax.block_until_ready(positional_encoding_fourier(
        pos_embed, weight, bias, hidden_dim=hidden_dim, out_dtype=jnp.bfloat16))
    assert out_bf16.shape == (N, dim) and out_bf16.dtype == jnp.bfloat16
    err = jnp.max(jnp.abs(out_bf16.astype(jnp.float32) - ref))
    assert jnp.allclose(out_bf16.astype(jnp.float32), ref, rtol=3e-2, atol=3e-2), float(err)

    # 4) ragged last grid tile (N multiple of 8 but not of tm -> Pallas clips, no slice copy)
    out = jax.block_until_ready(positional_encoding_fourier(
        pos_embed[:200], weight, bias, hidden_dim=hidden_dim,
        matmul_dtype=jnp.float32, out_dtype=jnp.float32, tm=64, min_grid_steps=1))
    assert out.shape == (200, dim)
    assert jnp.allclose(out, ref[:200], rtol=5e-3, atol=5e-3)

    # 5) N not a multiple of 8: pads to 8 rows internally and slices back
    out = jax.block_until_ready(positional_encoding_fourier(
        pos_embed[:77], weight, bias, hidden_dim=hidden_dim,
        matmul_dtype=jnp.float32, out_dtype=jnp.float32))
    assert out.shape == (77, dim)
    assert jnp.allclose(out, ref[:77], rtol=5e-3, atol=5e-3)

    print("KERNEL_OK")
</pallas_src>

<mosaic_0001>
module attributes {stable_mosaic.version = 11 : i64} {
  func.func @_pe_fourier_kernel(%arg0: i32, %arg1: memref<128x8xf32, #tpu.memory_space<vmem>>, %arg2: memref<8x256xf32, #tpu.memory_space<vmem>>, %arg3: memref<1x256xf32, #tpu.memory_space<vmem>>, %arg4: memref<256x128xf32, #tpu.memory_space<vmem>>, %arg5: memref<128x128xf32, #tpu.memory_space<vmem>>) attributes {dimension_semantics = [#tpu.dimension_semantics<parallel>], iteration_bounds = array<i64: 2>, scalar_prefetch = 0 : i64, scratch_operands = 0 : i64, tpu.core_type = #tpu.core_type<tc>, window_params = [{transform_indices = @transform_0, window_bounds = array<i64: 128, 8>}, {pipeline_mode = #tpu.pipeline_mode<synchronous>, transform_indices = @transform_1, window_bounds = array<i64: 8, 256>}, {pipeline_mode = #tpu.pipeline_mode<synchronous>, transform_indices = @transform_2, window_bounds = array<i64: 1, 256>}, {pipeline_mode = #tpu.pipeline_mode<synchronous>, transform_indices = @transform_3, window_bounds = array<i64: 256, 128>}, {transform_indices = @transform_4, window_bounds = array<i64: 128, 128>}]} {
    %c0 = arith.constant 0 : index
    %c0_0 = arith.constant 0 : index
    %0 = vector.load %arg1[%c0, %c0_0] : memref<128x8xf32, #tpu.memory_space<vmem>>, vector<128x8xf32>
    %c0_1 = arith.constant 0 : index
    %c0_2 = arith.constant 0 : index
    %1 = vector.load %arg2[%c0_1, %c0_2] : memref<8x256xf32, #tpu.memory_space<vmem>>, vector<8x256xf32>
    %cst = arith.constant dense<0.000000e+00> : vector<128x256xf32>
    %2 = tpu.matmul %0, %1, %cst {dimension_numbers = #tpu.dot_dimension_numbers<[1], [0], [0], [1], [0, 0, 1, 1], [], []>} : vector<128x8xf32>, vector<8x256xf32>, vector<128x256xf32> -> vector<128x256xf32>
    %c0_3 = arith.constant 0 : index
    %c0_4 = arith.constant 0 : index
    %3 = vector.load %arg3[%c0_3, %c0_4] : memref<1x256xf32, #tpu.memory_space<vmem>>, vector<1x256xf32>
    %4 = vector.broadcast %3 : vector<1x256xf32> to vector<128x256xf32>
    %5 = arith.addf %2, %4 : vector<128x256xf32>
    %6 = math.sin %5 : vector<128x256xf32>
    %c0_5 = arith.constant 0 : index
    %c0_6 = arith.constant 0 : index
    %7 = vector.load %arg4[%c0_5, %c0_6] : memref<256x128xf32, #tpu.memory_space<vmem>>, vector<256x128xf32>
    %cst_7 = arith.constant dense<0.000000e+00> : vector<128x128xf32>
    %8 = tpu.matmul %6, %7, %cst_7 {dimension_numbers = #tpu.dot_dimension_numbers<[1], [0], [0], [1], [0, 0, 1, 1], [], []>} : vector<128x256xf32>, vector<256x128xf32>, vector<128x128xf32> -> vector<128x128xf32>
    %c0_8 = arith.constant 0 : index
    %c0_9 = arith.constant 0 : index
    %9 = vector.load %arg5[%c0_8, %c0_9] : memref<128x128xf32, #tpu.memory_space<vmem>>, vector<128x128xf32>
    tpu.vector_store %arg5[%c0_8, %c0_9], %8 {strides = array<i32>} : memref<128x128xf32, #tpu.memory_space<vmem>>, vector<128x128xf32>,
    return
  }
  func.func @transform_0(%arg0: i32) -> (i32, i32) {
    %c0_i32 = arith.constant 0 : i32
    %c0_i32_0 = arith.constant 0 : i32
    return %arg0, %c0_i32 : i32, i32
  }
  func.func @transform_1(%arg0: i32) -> (i32, i32) {
    %c0_i32 = arith.constant 0 : i32
    %c0_i32_0 = arith.constant 0 : i32
    %c0_i32_1 = arith.constant 0 : i32
    return %c0_i32, %c0_i32_0 : i32, i32
  }
  func.func @transform_2(%arg0: i32) -> (i32, i32) {
    %c0_i32 = arith.constant 0 : i32
    %c0_i32_0 = arith.constant 0 : i32
    %c0_i32_1 = arith.constant 0 : i32
    return %c0_i32, %c0_i32_0 : i32, i32
  }
  func.func @transform_3(%arg0: i32) -> (i32, i32) {
    %c0_i32 = arith.constant 0 : i32
    %c0_i32_0 = arith.constant 0 : i32
    %c0_i32_1 = arith.constant 0 : i32
    return %c0_i32, %c0_i32_0 : i32, i32
  }
  func.func @transform_4(%arg0: i32) -> (i32, i32) {
    %c0_i32 = arith.constant 0 : i32
    %c0_i32_0 = arith.constant 0 : i32
    return %arg0, %c0_i32 : i32, i32
  }
}

</mosaic_0001>

<llo_original>
// kernel: tpu_custom_call.1
$region0: #{tpu_custom_call.1}
  #allocation0 [shape = 'u32[]', space=smem, size = 0x4, offset = 0x4, fixed_abs, tag = 'smem constant byte address 0x4 - core index']
  #allocation1 [shape = 'u32[72,128]{1,0:T(1,128)}', space=vmem, size = 0x9000, scoped, tag = 'internal scratch']
  %s0 = inlined_call_operand.vmem [shape: f32[256,8], index: 0, kind: input, shape index: {}]
  %s1 = inlined_call_operand.vmem [shape: f32[8,256], index: 1, kind: input, shape index: {}]
  %s2 = inlined_call_operand.vmem [shape: f32[1,256], index: 2, kind: input, shape index: {}]
  %s3 = inlined_call_operand.vmem [shape: f32[256,128], index: 3, kind: input, shape index: {}]
  %s4 = inlined_call_operand.hbm [shape: f32[256,128], index: 4, kind: output, shape index: {}]
  %s5 = sld [smem:[#allocation0]]
  $region49: #{tpu_custom_call.1} parent=0
    _
  %s7 = ssub.s32 1, %s5
  %s8 = scalar_select 0, %s7, %s5
  $region1: #{tpu_custom_call.1} parent=0
    #allocation2 [shape = 'u8[131072]{0}', space=vmem, size = 0x20000, scoped, tag = 'output window, operand 0']
    #allocation3 [shape = 's32[2]{0}', space=sflag, size = 0x8, scoped, tag = 'scoped memory for tpu_custom_call.1']
    %9 = vsyncpa [#allocation3], 0
    %s10 = scalar_lea.sflag [#allocation3], 1
    %11 = vsyncpa %s10, 0
    loop: start=0, step=1, limit=4
    $region2: #{tpu_custom_call.1} parent=1 // loop_pre_header
      _
    $region3: #{tpu_custom_call.1} parent=1 // loop_header
      %s13 = sphi 0, %s17
      %p14 = scmp.ge.s32.totalorder %s13, 4
      %s23 = sphi 0, %s25
      %s26 = sphi 0, %s23
      %s27 = sphi 0, %s26
      %s43 = sphi 0, %s27
      %s47 = sphi 0, %s47
      %s49 = sphi 0, %s47
      %s50 = sphi 0, %s49
      %s64 = sphi 0, %s50
      %s68 = sphi 0, %s68
      %s70 = sphi 0, %s68
      %s71 = sphi 0, %s70
      %s85 = sphi 0, %s71
      %s89 = sphi 0, %s89
      %s91 = sphi 0, %s89
      %s92 = sphi 0, %s91
      %s106 = sphi 0, %s92
      %s112 = sphi 0, %s114
      %s115 = sphi 0, %s112
      %s116 = sphi 0, %s115
      %s132 = sphi 0, %s116
    $region4: #{tpu_custom_call.1} parent=1 // loop_header_branch
      %16 = sbr.rel (%p14) target = $region8
    $region5: #{tpu_custom_call.1} parent=1 // loop_body
      %s18 = ssub.s32 %s13, 1
      %s19 = ssub.s32 %s13, 2
      %s20 = sadd.s32 %s13, 1
      %s21 = ssub.s32 %s13, %s20
      %p22 = scmp.eq.s32.totalorder %s21, 0
      %s24 = sadd.s32 %s23, 1
      %s25 = scalar_select %p22, %s23, %s24
      %p28 = pneg %p22
      %p29 = scmp.eq.s32.totalorder %s13, 1
      %p30 = por %p28, %p29
      %p31 = scmp.ne.s32.totalorder %s23, %s26
      %p32 = scmp.eq.s32.totalorder %s13, 0
      %p33 = por %p31, %p32
      %p34 = scmp.ne.s32.totalorder %s23, %s26
      %p35 = scmp.eq.s32.totalorder %s18, 1
      %p36 = por %p34, %p35
      %p37 = scmp.ne.s32.totalorder %s26, %s27
      %p38 = scmp.eq.s32.totalorder %s18, 0
      %p39 = por %p37, %p38
      %p40 = scmp.ne.s32.totalorder %s26, %s27
      %p41 = scmp.eq.s32.totalorder %s19, 1
      %p42 = por %p40, %p41
      %p44 = scmp.ne.s32.totalorder %s27, %s43
      %p45 = scmp.eq.s32.totalorder %s19, 0
      %p46 = por %p44, %p45
      %s48 = sadd.s32 %s47, 1
      %p51 = scmp.eq.s32.totalorder %s13, 1
      %p52 = scmp.ne.s32.totalorder %s47, %s49
      %p53 = scmp.eq.s32.totalorder %s13, 0
      %p54 = por %p52, %p53
      %p55 = scmp.ne.s32.totalorder %s47, %s49
      %p56 = scmp.eq.s32.totalorder %s18, 1
      %p57 = por %p55, %p56
      %p58 = scmp.ne.s32.totalorder %s49, %s50
      %p59 = scmp.eq.s32.totalorder %s18, 0
      %p60 = por %p58, %p59
      %p61 = scmp.ne.s32.totalorder %s49, %s50
      %p62 = scmp.eq.s32.totalorder %s19, 1
      %p63 = por %p61, %p62
      %p65 = scmp.ne.s32.totalorder %s50, %s64
      %p66 = scmp.eq.s32.totalorder %s19, 0
      %p67 = por %p65, %p66
      %s69 = sadd.s32 %s68, 1
      %p72 = scmp.eq.s32.totalorder %s13, 1
      %p73 = scmp.ne.s32.totalorder %s68, %s70
      %p74 = scmp.eq.s32.totalorder %s13, 0
      %p75 = por %p73, %p74
      %p76 = scmp.ne.s32.totalorder %s68, %s70
      %p77 = scmp.eq.s32.totalorder %s18, 1
      %p78 = por %p76, %p77
      %p79 = scmp.ne.s32.totalorder %s70, %s71
      %p80 = scmp.eq.s32.totalorder %s18, 0
      %p81 = por %p79, %p80
      %p82 = scmp.ne.s32.totalorder %s70, %s71
      %p83 = scmp.eq.s32.totalorder %s19, 1
      %p84 = por %p82, %p83
      %p86 = scmp.ne.s32.totalorder %s71, %s85
      %p87 = scmp.eq.s32.totalorder %s19, 0
      %p88 = por %p86, %p87
      %s90 = sadd.s32 %s89, 1
      %p93 = scmp.eq.s32.totalorder %s13, 1
      %p94 = scmp.ne.s32.totalorder %s89, %s91
      %p95 = scmp.eq.s32.totalorder %s13, 0
      %p96 = por %p94, %p95
      %p97 = scmp.ne.s32.totalorder %s89, %s91
      %p98 = scmp.eq.s32.totalorder %s18, 1
      %p99 = por %p97, %p98
      %p100 = scmp.ne.s32.totalorder %s91, %s92
      %p101 = scmp.eq.s32.totalorder %s18, 0
      %p102 = por %p100, %p101
      %p103 = scmp.ne.s32.totalorder %s91, %s92
      %p104 = scmp.eq.s32.totalorder %s19, 1
      %p105 = por %p103, %p104
      %p107 = scmp.ne.s32.totalorder %s92, %s106
      %p108 = scmp.eq.s32.totalorder %s19, 0
      %p109 = por %p107, %p108
      %s110 = ssub.s32 %s13, %s20
      %p111 = scmp.eq.s32.totalorder %s110, 0
      %s113 = sadd.s32 %s112, 1
      %s114 = scalar_select %p111, %s112, %s113
      %p117 = pneg %p111
      %p118 = scmp.eq.s32.totalorder %s13, 1
      %p119 = por %p117, %p118
      %p120 = scmp.ne.s32.totalorder %s112, %s115
      %p121 = scmp.eq.s32.totalorder %s13, 0
      %p122 = por %p120, %p121
      %p123 = scmp.ne.s32.totalorder %s112, %s115
      %p124 = scmp.eq.s32.totalorder %s18, 1
      %p125 = por %p123, %p124
      %p126 = scmp.ne.s32.totalorder %s115, %s116
      %p127 = scmp.eq.s32.totalorder %s18, 0
      %p128 = por %p126, %p127
      %p129 = scmp.ne.s32.totalorder %s115, %s116
      %p130 = scmp.eq.s32.totalorder %s19, 1
      %p131 = por %p129, %p130
      %p133 = scmp.ne.s32.totalorder %s116, %s132
      %p134 = scmp.eq.s32.totalorder %s19, 0
      %p135 = por %p133, %p134
      %p136 = scmp.le.s32.totalorder 1, %s13
      %p137 = scmp.lt.s32.totalorder %s13, 3
      %p138 = pnand %p136, %p137
      %p139 = pneg %p138
      // Predicated region
      $region9: #{tpu_custom_call.1} parent=5 // pred_check
        _
      $region10: #{tpu_custom_call.1} parent=5 // pred_check_branch
        %141 = sbr.rel (%p138) target = $region12
      $region11: #{tpu_custom_call.1} parent=5 // pred_region
        %s142 = ssub.s32 %s13, 1
        // Predicated region
        $region13: #{tpu_custom_call.1} parent=11 // pred_check
          %p143 = pneg %p60
        $region14: #{tpu_custom_call.1} parent=11 // pred_check_branch
          %145 = sbr.rel (%p143) target = $region16
        $region15: #{tpu_custom_call.1} parent=11 // pred_region
          _
        $region16: #{tpu_custom_call.1} parent=11 // pred_fallthru
          _
        // Predicated region
        $region17: #{tpu_custom_call.1} parent=11 // pred_check
          %p146 = pneg %p81
        $region18: #{tpu_custom_call.1} parent=11 // pred_check_branch
          %148 = sbr.rel (%p146) target = $region20
        $region19: #{tpu_custom_call.1} parent=11 // pred_region
          _
        $region20: #{tpu_custom_call.1} parent=11 // pred_fallthru
          _
        // Predicated region
        $region21: #{tpu_custom_call.1} parent=11 // pred_check
          %p149 = pneg %p102
        $region22: #{tpu_custom_call.1} parent=11 // pred_check_branch
          %151 = sbr.rel (%p149) target = $region24
        $region23: #{tpu_custom_call.1} parent=11 // pred_region
          _
        $region24: #{tpu_custom_call.1} parent=11 // pred_fallthru
          _
      $region12: #{tpu_custom_call.1} parent=5 // pred_fallthru
        _
      %p152 = scmp.lt.s32.totalorder %s13, 2
      // Predicated region
      $region25: #{tpu_custom_call.1} parent=5 // pred_check
        %p153 = pneg %p152
      $region26: #{tpu_custom_call.1} parent=5 // pred_check_branch
        %155 = sbr.rel (%p153) target = $region28
      $region27: #{tpu_custom_call.1} parent=5 // pred_region
        // Predicated region
        $region29: #{tpu_custom_call.1} parent=27 // pred_check
          %p156 = pneg %p33
        $region30: #{tpu_custom_call.1} parent=27 // pred_check_branch
          %158 = sbr.rel (%p156) target = $region32
        $region31: #{tpu_custom_call.1} parent=27 // pred_region
          %s159 = smul.u32 16, %s13
          %p160 = scmp.lt.s32.totalorder %s159, 31
          %s161 = scalar_select %p160, %s159, 31
          %s162 = smul.addr %s161, 8
          %s163 = scalar_lea.vmem %s0, %s162
          %s164 = smul.u32 16, %s13
        $region32: #{tpu_custom_call.1} parent=27 // pred_fallthru
          _
      $region28: #{tpu_custom_call.1} parent=5 // pred_fallthru
        _
      %p165 = scmp.le.s32.totalorder 1, %s13
      %p166 = scmp.lt.s32.totalorder %s13, 3
      %p167 = pnand %p165, %p166
      %p168 = pneg %p167
      // Predicated region
      $region33: #{tpu_custom_call.1} parent=5 // pred_check
        _
      $region34: #{tpu_custom_call.1} parent=5 // pred_check_branch
        %170 = sbr.rel (%p167) target = $region36
      $region35: #{tpu_custom_call.1} parent=5 // pred_region
        %s171 = ssub.s32 %s13, 1
        %s172 = smul.u32 16, %s18
        %p173 = scmp.lt.s32.totalorder %s172, 31
        %s174 = scalar_select %p173, %s172, 31
        %s175 = smul.addr %s174, 8
        %s176 = scalar_lea.vmem %s0, %s175
        %p177 = pneg %p39
        %p178 = pneg %p36
        %p179 = pneg %p60
        %p180 = pneg %p57
        %p181 = pneg %p81
        %p182 = pneg %p78
        %p183 = pneg %p102
        %p184 = pneg %p99
        %p185 = pneg %p128
        %p186 = pneg %p125
        %s187 = sand.u32 %s115, 1
        %s188 = scalar_lea.sflag [#allocation3], %s187
        %s189 = sand.u32 %s115, 1
        %s190 = smul.addr %s189, 128
        %s191 = scalar_lea.vmem [#allocation2], %s190
        %s192 = smul.u32 16, %s18
        %p193 = scmp.lt.s32.totalorder %s192, 31
        %s194 = scalar_select %p193, %s192, 31
        %s195 = smul.addr %s194, 8
        %s196 = scalar_lea.vmem %s0, %s195
        %s197 = smul.u32 16, %s18
        %s198 = smul.u32 16, %s18
        %v199 = vld [vmem:[%s196] sm:$0xff]
        %v200 = vld [vmem:[%s196 + $0x8] sm:$0xff]
        %v201 = vld [vmem:[%s196 + $0x10] sm:$0xff]
        %v202 = vld [vmem:[%s196 + $0x18] sm:$0xff]
        %v203 = vld [vmem:[%s196 + $0x20] sm:$0xff]
        %v204 = vld [vmem:[%s196 + $0x28] sm:$0xff]
        %v205 = vld [vmem:[%s196 + $0x30] sm:$0xff]
        %v206 = vld [vmem:[%s196 + $0x38] sm:$0xff]
        %v207 = vld [vmem:[%s196 + $0x40] sm:$0xff]
        %v208 = vld [vmem:[%s196 + $0x48] sm:$0xff]
        %v209 = vld [vmem:[%s196 + $0x50] sm:$0xff]
        %v210 = vld [vmem:[%s196 + $0x58] sm:$0xff]
        %v211 = vld [vmem:[%s196 + $0x60] sm:$0xff]
        %v212 = vld [vmem:[%s196 + $0x68] sm:$0xff]
        %v213 = vld [vmem:[%s196 + $0x70] sm:$0xff]
        %v214 = vld [vmem:[%s196 + $0x78] sm:$0xff]
        %v215 = vld [vmem:[%s1] sm:$0xff]
        %v216 = vld [vmem:[%s1 + $0x8] sm:$0xff]
        %v217 = vld [vmem:[%s2] sm:$0x3]
        %v219 = vperm.slane %v217, 0
        %v220 = vperm.slane %v217, 1
        %vm223 = vcmask 64512
        %v225 = vsel %vm223, %v199, 0
        %v228 = vsel %vm223, %v200, 0
        %v231 = vsel %vm223, %v201, 0
        %v234 = vsel %vm223, %v202, 0
        %v237 = vsel %vm223, %v203, 0
        %v240 = vsel %vm223, %v204, 0
        %v243 = vsel %vm223, %v205, 0
        %v246 = vsel %vm223, %v206, 0
        %v249 = vsel %vm223, %v207, 0
        %v252 = vsel %vm223, %v208, 0
        %v255 = vsel %vm223, %v209, 0
        %v258 = vsel %vm223, %v210, 0
        %v261 = vsel %vm223, %v211, 0
        %v264 = vsel %vm223, %v212, 0
        %v267 = vsel %vm223, %v213, 0
        %v270 = vsel %vm223, %v214, 0
        %272 = vmatpush.msra.mxu0 0.0
        %273 = vmatpush.msra.mxu0 0.0
        %274 = vmatpush.msra.mxu0 0.0
        %275 = vmatpush.msra.mxu0 0.0
        %276 = vmatpush.msra.mxu0 0.0
        %277 = vmatpush.msra.mxu0 0.0
        %278 = vmatpush.msra.mxu0 0.0
        %279 = vmatpush.msra.mxu0 0.0
        %280 = vmatpush.msra.mxu0 0.0
        %281 = vmatpush.msra.mxu0 0.0
        %282 = vmatpush.msra.mxu0 0.0
        %283 = vmatpush.msra.mxu0 0.0
        %284 = vmatpush.msra.mxu0 0.0
        %285 = vmatpush.msra.mxu0 0.0
        %286 = vmatpush.msra.mxu0 0.0
        %287 = vmatpush.msra.mxu0 %v215
        %288 = vmatmul.f32.gmra.mxu0 %v225
        %v289 = vpop.f32.mrf.mxu0
        %v290 = vadd.f32 %v219, %v289
        %291 = vmatmul.f32.gmra.mxu0 %v228
        %v292 = vpop.f32.mrf.mxu0
        %v293 = vadd.f32 %v219, %v292
        %294 = vmatmul.f32.gmra.mxu0 %v231
        %v295 = vpop.f32.mrf.mxu0
        %v296 = vadd.f32 %v219, %v295
        %297 = vmatmul.f32.gmra.mxu0 %v234
        %v298 = vpop.f32.mrf.mxu0
        %v299 = vadd.f32 %v219, %v298
        %300 = vmatmul.f32.gmra.mxu0 %v237
        %v301 = vpop.f32.mrf.mxu0
        %v302 = vadd.f32 %v219, %v301
        %303 = vmatmul.f32.gmra.mxu0 %v240
        %v304 = vpop.f32.mrf.mxu0
        %v305 = vadd.f32 %v219, %v304
        %306 = vmatmul.f32.gmra.mxu0 %v243
        %v307 = vpop.f32.mrf.mxu0
        %v308 = vadd.f32 %v219, %v307
        %309 = vmatmul.f32.gmra.mxu0 %v246
        %v310 = vpop.f32.mrf.mxu0
        %v311 = vadd.f32 %v219, %v310
        %312 = vmatmul.f32.gmra.mxu0 %v249
        %v313 = vpop.f32.mrf.mxu0
        %v314 = vadd.f32 %v219, %v313
        %315 = vmatmul.f32.gmra.mxu0 %v252
        %v316 = vpop.f32.mrf.mxu0
        %v317 = vadd.f32 %v219, %v316
        %318 = vmatmul.f32.gmra.mxu0 %v255
        %v319 = vpop.f32.mrf.mxu0
        %v320 = vadd.f32 %v219, %v319
        %321 = vmatmul.f32.gmra.mxu0 %v258
        %v322 = vpop.f32.mrf.mxu0
        %v323 = vadd.f32 %v219, %v322
        %324 = vmatmul.f32.gmra.mxu0 %v261
        %v325 = vpop.f32.mrf.mxu0
        %v326 = vadd.f32 %v219, %v325
        %327 = vmatmul.f32.gmra.mxu0 %v264
        %v328 = vpop.f32.mrf.mxu0
        %v329 = vadd.f32 %v219, %v328
        %330 = vmatmul.f32.gmra.mxu0 %v267
        %v331 = vpop.f32.mrf.mxu0
        %v332 = vadd.f32 %v219, %v331
        %333 = vmatmul.f32.gmra.mxu0 %v270
        %v334 = vpop.f32.mrf.mxu0
        %v335 = vadd.f32 %v219, %v334
        %336 = vdwg.mxu0
        %337 = vmatpush.msra.mxu0 0.0
        %338 = vmatpush.msra.mxu0 0.0
        %339 = vmatpush.msra.mxu0 0.0
        %340 = vmatpush.msra.mxu0 0.0
        %341 = vmatpush.msra.mxu0 0.0
        %342 = vmatpush.msra.mxu0 0.0
        %343 = vmatpush.msra.mxu0 0.0
        %344 = vmatpush.msra.mxu0 0.0
        %345 = vmatpush.msra.mxu0 0.0
        %346 = vmatpush.msra.mxu0 0.0
        %347 = vmatpush.msra.mxu0 0.0
        %348 = vmatpush.msra.mxu0 0.0
        %349 = vmatpush.msra.mxu0 0.0
        %350 = vmatpush.msra.mxu0 0.0
        %351 = vmatpush.msra.mxu0 0.0
        %352 = vmatpush.msra.mxu0 %v216
        %353 = vmatmul.f32.gmra.mxu0 %v225
        %v354 = vpop.f32.mrf.mxu0
        %v355 = vadd.f32 %v220, %v354
        %356 = vmatmul.f32.gmra.mxu0 %v228
        %v357 = vpop.f32.mrf.mxu0
        %v358 = vadd.f32 %v220, %v357
        %359 = vmatmul.f32.gmra.mxu0 %v231
        %v360 = vpop.f32.mrf.mxu0
        %v361 = vadd.f32 %v220, %v360
        %362 = vmatmul.f32.gmra.mxu0 %v234
        %v363 = vpop.f32.mrf.mxu0
        %v364 = vadd.f32 %v220, %v363
        %365 = vmatmul.f32.gmra.mxu0 %v237
        %v366 = vpop.f32.mrf.mxu0
        %v367 = vadd.f32 %v220, %v366
        %368 = vmatmul.f32.gmra.mxu0 %v240
        %v369 = vpop.f32.mrf.mxu0
        %v370 = vadd.f32 %v220, %v369
        %371 = vmatmul.f32.gmra.mxu0 %v243
        %v372 = vpop.f32.mrf.mxu0
        %v373 = vadd.f32 %v220, %v372
        %374 = vmatmul.f32.gmra.mxu0 %v246
        %v375 = vpop.f32.mrf.mxu0
        %v376 = vadd.f32 %v220, %v375
        %377 = vmatmul.f32.gmra.mxu0 %v249
        %v378 = vpop.f32.mrf.mxu0
        %v379 = vadd.f32 %v220, %v378
        %380 = vmatmul.f32.gmra.mxu0 %v252
        %v381 = vpop.f32.mrf.mxu0
        %v382 = vadd.f32 %v220, %v381
        %383 = vmatmul.f32.gmra.mxu0 %v255
        %v384 = vpop.f32.mrf.mxu0
        %v385 = vadd.f32 %v220, %v384
        %386 = vmatmul.f32.gmra.mxu0 %v258
        %v387 = vpop.f32.mrf.mxu0
        %v388 = vadd.f32 %v220, %v387
        %389 = vmatmul.f32.gmra.mxu0 %v261
        %v390 = vpop.f32.mrf.mxu0
        %v391 = vadd.f32 %v220, %v390
        %392 = vmatmul.f32.gmra.mxu0 %v264
        %v393 = vpop.f32.mrf.mxu0
        %v394 = vadd.f32 %v220, %v393
        %395 = vmatmul.f32.gmra.mxu0 %v267
        %v396 = vpop.f32.mrf.mxu0
        %v397 = vadd.f32 %v220, %v396
        %398 = vmatmul.f32.gmra.mxu0 %v270
        %v399 = vpop.f32.mrf.mxu0
        %v400 = vadd.f32 %v220, %v399
        %401 = vdwg.mxu0
        %v402 = vand.u32 2147483647, %v290
        %vm403 = vcmp.le.f32.partialorder %v402, 0.7853982
        %vm404 = vcmp.lt.s32.totalorder %v290, 0
        %v405 = vand.u32 %v290, 2139095040
        %v406 = vshrl.u32 %v405, 23
        %v407 = vsub.s32 %v406, 127
        %v408 = vand.u32 2147483647, %v290
        %v409 = vand.u32 %v408, 8388607
        %v410 = vor.u32 %v409, 8388608
        %v411 = vsub.s32 0, %v410
        %v412 = vadd.s32 %v407, 1
        %vm413 = vcmp.gt.s32.totalorder %v412, 0
        %v414 = vsel %vm413, %v412, 0
        %v415 = vshrl.u32 %v414, 5
        %v416 = vand.u32 %v414, 31
        %v417 = vsub.s32 32, %v416
        %v418 = vshrl.u32 683565275, %v417
        %v419 = vshll.u32 683565275, %v416
        %v420 = vshrl.u32 2475754826, %v417
        %v421 = vor.u32 %v419, %v420
        %v422 = vshll.u32 2475754826, %v416
        %v423 = vshrl.u32 2131351028, %v417
        %v424 = vor.u32 %v422, %v423
        %v425 = vshll.u32 2131351028, %v416
        %v426 = vshrl.u32 2102212464, %v417
        %v427 = vor.u32 %v425, %v426
        %v428 = vshll.u32 2102212464, %v416
        %v429 = vshrl.u32 920167782, %v417
        %v430 = vor.u32 %v428, %v429
        %v431 = vshll.u32 920167782, %v416
        %v432 = vshrl.u32 1326507024, %v417
        %v433 = vor.u32 %v431, %v432
        %vm434 = vcmp.lt.s32.totalorder %v415, 1
        %vm435 = vcmp.lt.s32.totalorder %v415, 2
        %vm436 = vcmp.lt.s32.totalorder %v415, 3
        %vm437 = vcmp.lt.s32.totalorder %v415, 4
        %v438 = vsel %vm434, %v418, %v421
        %v439 = vsel %vm437, %v427, 2102212464
        %v440 = vsel %vm436, %v424, %v439
        %v441 = vsel %vm435, %v438, %v440
        %v442 = vsel %vm434, %v421, %v424
        %v443 = vsel %vm437, %v430, 920167782
        %v444 = vsel %vm436, %v427, %v443
        %v445 = vsel %vm435, %v442, %v444
        %v446 = vsel %vm434, %v424, %v427
        %v447 = vsel %vm437, %v433, 1326507024
        %v448 = vsel %vm436, %v430, %v447
        %v449 = vsel %vm435, %v446, %v448
        %v450 = vshll.u32 %v410, 8
        %v451 = vand.u32 %v450, 65535
        %v452 = vshrl.u32 %v450, 16
        %v453 = vand.u32 %v449, 65535
        %v454 = vshrl.u32 %v449, 16
        %v455 = vmul.u32 %v451, %v453
        %v456 = vmul.u32 %v451, %v454
        %v457 = vmul.u32 %v452, %v453
        %v458 = vmul.u32 %v452, %v454
        %v459 = vshll.u32 %v456, 16
        %v460 = vshrl.u32 %v456, 16
        %v461 = vshll.u32 %v457, 16
        %v462 = vshrl.u32 %v457, 16
        %vm463 = vc.u32 %v455, %v459
        %v464 = vsel %vm463, 1, 0
        %v465 = vadd.s32 %v455, %v459
        %v466 = vadd.s32 %v458, %v464
        %vm467 = vc.u32 %v465, %v461
        %v468 = vsel %vm467, 1, 0
        %v469 = vadd.s32 %v465, %v461
        %v470 = vadd.s32 %v466, %v468
        %v471 = vadd.s32 %v470, %v460
        %v472 = vadd.s32 %v471, %v462
        %v473 = vand.u32 %v450, 65535
        %v474 = vshrl.u32 %v450, 16
        %v475 = vand.u32 %v445, 65535
        %v476 = vshrl.u32 %v445, 16
        %v477 = vmul.u32 %v473, %v475
        %v478 = vmul.u32 %v473, %v476
        %v479 = vmul.u32 %v474, %v475
        %v480 = vmul.u32 %v474, %v476
        %v481 = vshll.u32 %v478, 16
        %v482 = vshrl.u32 %v478, 16
        %v483 = vshll.u32 %v479, 16
        %v484 = vshrl.u32 %v479, 16
        %vm485 = vc.u32 %v477, %v481
        %v486 = vsel %vm485, 1, 0
        %v487 = vadd.s32 %v477, %v481
        %v488 = vadd.s32 %v480, %v486
        %vm489 = vc.u32 %v487, %v483
        %v490 = vsel %vm489, 1, 0
        %v491 = vadd.s32 %v487, %v483
        %v492 = vadd.s32 %v488, %v490
        %v493 = vadd.s32 %v492, %v482
        %v494 = vadd.s32 %v493, %v484
        %v495 = vmul.u32 %v450, %v441
        %v496 = vadd.s32 %v472, %v491
        %vm497 = vc.u32 %v472, %v491
        %v498 = vadd.s32 %v494, 1
        %v499 = vsel %vm497, %v498, %v494
        %v500 = vadd.s32 %v495, %v499
        %v501 = vadd.s32 %v500, 536870912
        %v502 = vshrl.u32 %v501, 30
        %v503 = vshll.u32 %v502, 30
        %v504 = vsub.s32 %v500, %v503
        %vm505 = vcmp.lt.s32.totalorder %v504, 0
        %v506 = vsub.s32 0, %v504
        %v507 = vsel %vm505, %v506, %v504
        %v508 = vclz %v507
        %v509 = vsub.s32 %v508, 2
        %vm510 = vcmp.gt.s32.totalorder 0, %v509
        %v511 = vsel %vm510, 0, %v509
        %v512 = vsub.s32 32, %v511
        %v513 = vshll.u32 %v504, %v511
        %v514 = vshrl.u32 %v496, %v512
        %v515 = vor.u32 %v513, %v514
        %v516 = vsub.s32 4294967266, %v511
        %v517 = vadd.s32 %v516, 127
        %v518 = vshll.u32 %v517, 23
        %v519 = vor.u32 4788187, %v518
        %v520 = vand.u32 2147483647, %v519
        %v522 = vcvt.s32.f32 %v515
        %v523 = vmul.f32 %v522, %v520
        %v524 = vxor.u32 %v523, 2147483648
        %v525 = vsel %vm404, %v524, %v523
        %v526 = vsub.s32 4, %v502
        %v527 = vsel %vm404, %v526, %v502
        %v528 = vsel %vm403, %v290, %v525
        %v529 = vsel %vm403, 0, %v527
        %v530 = vmul.f32 %v528, %v528
        %v531 = vmul.f32 %v530, -0.001358992
        %v532 = vadd.f32 %v531, 0.041655596
        %v533 = vmul.f32 %v530, %v532
        %v534 = vadd.f32 %v533, -0.4999988
        %v535 = vmul.f32 %v530, %v534
        %v536 = vadd.f32 1.0, %v535
        %v537 = vmul.f32 %v528, %v528
        %v538 = vmul.f32 %v537, -0.00019511016
        %v539 = vadd.f32 %v538, 0.008332121
        %v540 = vmul.f32 %v537, %v539
        %v541 = vadd.f32 %v540, -0.16666654
        %v542 = vmul.f32 %v537, %v541
        %v543 = vadd.f32 %v542, 1.0
        %v544 = vmul.f32 %v543, %v528
        %vm545 = vweird.f32 %v290
        %v546 = vadd.s32 %v529, 3
        %v547 = vand.u32 %v546, 3
        %vm548 = vcmp.lt.s32.totalorder %v547, 2
        %vm549 = vcmp.eq.s32.totalorder %v547, 0
        %v550 = vxor.u32 %v544, 2147483648
        %v551 = vsel %vm549, %v536, %v550
        %vm552 = vcmp.eq.s32.totalorder %v547, 2
        %v553 = vxor.u32 %v536, 2147483648
        %v554 = vsel %vm552, %v553, %v544
        %v555 = vsel %vm548, %v551, %v554
        %v556 = vsel %vm545, nan, %v555
        %v557 = vand.u32 2147483647, %v355
        %vm558 = vcmp.le.f32.partialorder %v557, 0.7853982
        %vm559 = vcmp.lt.s32.totalorder %v355, 0
        %v560 = vand.u32 %v355, 2139095040
        %v561 = vshrl.u32 %v560, 23
        %v562 = vsub.s32 %v561, 127
        %v563 = vand.u32 2147483647, %v355
        %v564 = vand.u32 %v563, 8388607
        %v565 = vor.u32 %v564, 8388608
        %v566 = vsub.s32 0, %v565
        %v567 = vadd.s32 %v562, 1
        %vm568 = vcmp.gt.s32.totalorder %v567, 0
        %v569 = vsel %vm568, %v567, 0
        %v570 = vshrl.u32 %v569, 5
        %v571 = vand.u32 %v569, 31
        %v572 = vsub.s32 32, %v571
        %v573 = vshrl.u32 683565275, %v572
        %v574 = vshll.u32 683565275, %v571
        %v575 = vshrl.u32 2475754826, %v572
        %v576 = vor.u32 %v574, %v575
        %v577 = vshll.u32 2475754826, %v571
        %v578 = vshrl.u32 2131351028, %v572
        %v579 = vor.u32 %v577, %v578
        %v580 = vshll.u32 2131351028, %v571
        %v581 = vshrl.u32 2102212464, %v572
        %v582 = vor.u32 %v580, %v581
        %v583 = vshll.u32 2102212464, %v571
        %v584 = vshrl.u32 920167782, %v572
        %v585 = vor.u32 %v583, %v584
        %v586 = vshll.u32 920167782, %v571
        %v587 = vshrl.u32 1326507024, %v572
        %v588 = vor.u32 %v586, %v587
        %vm589 = vcmp.lt.s32.totalorder %v570, 1
        %vm590 = vcmp.lt.s32.totalorder %v570, 2
        %vm591 = vcmp.lt.s32.totalorder %v570, 3
        %vm592 = vcmp.lt.s32.totalorder %v570, 4
        %v593 = vsel %vm589, %v573, %v576
        %v594 = vsel %vm592, %v582, 2102212464
        %v595 = vsel %vm591, %v579, %v594
        %v596 = vsel %vm590, %v593, %v595
        %v597 = vsel %vm589, %v576, %v579
        %v598 = vsel %vm592, %v585, 920167782
        %v599 = vsel %vm591, %v582, %v598
        %v600 = vsel %vm590, %v597, %v599
        %v601 = vsel %vm589, %v579, %v582
        %v602 = vsel %vm592, %v588, 1326507024
        %v603 = vsel %vm591, %v585, %v602
        %v604 = vsel %vm590, %v601, %v603
        %v605 = vshll.u32 %v565, 8
        %v606 = vand.u32 %v605, 65535
        %v607 = vshrl.u32 %v605, 16
        %v608 = vand.u32 %v604, 65535
        %v609 = vshrl.u32 %v604, 16
        %v610 = vmul.u32 %v606, %v608
        %v611 = vmul.u32 %v606, %v609
        %v612 = vmul.u32 %v607, %v608
        %v613 = vmul.u32 %v607, %v609
        %v614 = vshll.u32 %v611, 16
        %v615 = vshrl.u32 %v611, 16
        %v616 = vshll.u32 %v612, 16
        %v617 = vshrl.u32 %v612, 16
        %vm618 = vc.u32 %v610, %v614
        %v619 = vsel %vm618, 1, 0
        %v620 = vadd.s32 %v610, %v614
        %v621 = vadd.s32 %v613, %v619
        %vm622 = vc.u32 %v620, %v616
        %v623 = vsel %vm622, 1, 0
        %v624 = vadd.s32 %v620, %v616
        %v625 = vadd.s32 %v621, %v623
        %v626 = vadd.s32 %v625, %v615
        %v627 = vadd.s32 %v626, %v617
        %v628 = vand.u32 %v605, 65535
        %v629 = vshrl.u32 %v605, 16
        %v630 = vand.u32 %v600, 65535
        %v631 = vshrl.u32 %v600, 16
        %v632 = vmul.u32 %v628, %v630
        %v633 = vmul.u32 %v628, %v631
        %v634 = vmul.u32 %v629, %v630
        %v635 = vmul.u32 %v629, %v631
        %v636 = vshll.u32 %v633, 16
        %v637 = vshrl.u32 %v633, 16
        %v638 = vshll.u32 %v634, 16
        %v639 = vshrl.u32 %v634, 16
        %vm640 = vc.u32 %v632, %v636
        %v641 = vsel %vm640, 1, 0
        %v642 = vadd.s32 %v632, %v636
        %v643 = vadd.s32 %v635, %v641
        %vm644 = vc.u32 %v642, %v638
        %v645 = vsel %vm644, 1, 0
        %v646 = vadd.s32 %v642, %v638
        %v647 = vadd.s32 %v643, %v645
        %v648 = vadd.s32 %v647, %v637
        %v649 = vadd.s32 %v648, %v639
        %v650 = vmul.u32 %v605, %v596
        %v651 = vadd.s32 %v627, %v646
        %vm652 = vc.u32 %v627, %v646
        %v653 = vadd.s32 %v649, 1
        %v654 = vsel %vm652, %v653, %v649
        %v655 = vadd.s32 %v650, %v654
        %v656 = vadd.s32 %v655, 536870912
        %v657 = vshrl.u32 %v656, 30
        %v658 = vshll.u32 %v657, 30
        %v659 = vsub.s32 %v655, %v658
        %vm660 = vcmp.lt.s32.totalorder %v659, 0
        %v661 = vsub.s32 0, %v659
        %v662 = vsel %vm660, %v661, %v659
        %v663 = vclz %v662
        %v664 = vsub.s32 %v663, 2
        %vm665 = vcmp.gt.s32.totalorder 0, %v664
        %v666 = vsel %vm665, 0, %v664
        %v667 = vsub.s32 32, %v666
        %v668 = vshll.u32 %v659, %v666
        %v669 = vshrl.u32 %v651, %v667
        %v670 = vor.u32 %v668, %v669
        %v671 = vsub.s32 4294967266, %v666
        %v672 = vadd.s32 %v671, 127
        %v673 = vshll.u32 %v672, 23
        %v674 = vor.u32 4788187, %v673
        %v675 = vand.u32 2147483647, %v674
        %v677 = vcvt.s32.f32 %v670
        %v678 = vmul.f32 %v677, %v675
        %v679 = vxor.u32 %v678, 2147483648
        %v680 = vsel %vm559, %v679, %v678
        %v681 = vsub.s32 4, %v657
        %v682 = vsel %vm559, %v681, %v657
        %v683 = vsel %vm558, %v355, %v680
        %v684 = vsel %vm558, 0, %v682
        %v685 = vmul.f32 %v683, %v683
        %v686 = vmul.f32 %v685, -0.001358992
        %v687 = vadd.f32 %v686, 0.041655596
        %v688 = vmul.f32 %v685, %v687
        %v689 = vadd.f32 %v688, -0.4999988
        %v690 = vmul.f32 %v685, %v689
        %v691 = vadd.f32 1.0, %v690
        %v692 = vmul.f32 %v683, %v683
        %v693 = vmul.f32 %v692, -0.00019511016
        %v694 = vadd.f32 %v693, 0.008332121
        %v695 = vmul.f32 %v692, %v694
        %v696 = vadd.f32 %v695, -0.16666654
        %v697 = vmul.f32 %v692, %v696
        %v698 = vadd.f32 %v697, 1.0
        %v699 = vmul.f32 %v698, %v683
        %vm700 = vweird.f32 %v355
        %v701 = vadd.s32 %v684, 3
        %v702 = vand.u32 %v701, 3
        %vm703 = vcmp.lt.s32.totalorder %v702, 2
        %vm704 = vcmp.eq.s32.totalorder %v702, 0
        %v705 = vxor.u32 %v699, 2147483648
        %v706 = vsel %vm704, %v691, %v705
        %vm707 = vcmp.eq.s32.totalorder %v702, 2
        %v708 = vxor.u32 %v691, 2147483648
        %v709 = vsel %vm707, %v708, %v699
        %v710 = vsel %vm703, %v706, %v709
        %v711 = vsel %vm700, nan, %v710
        %v712 = vand.u32 2147483647, %v293
        %vm713 = vcmp.le.f32.partialorder %v712, 0.7853982
        %vm714 = vcmp.lt.s32.totalorder %v293, 0
        %v715 = vand.u32 %v293, 2139095040
        %v716 = vshrl.u32 %v715, 23
        %v717 = vsub.s32 %v716, 127
        %v718 = vand.u32 2147483647, %v293
        %v719 = vand.u32 %v718, 8388607
        %v720 = vor.u32 %v719, 8388608
        %v721 = vsub.s32 0, %v720
        %v722 = vadd.s32 %v717, 1
        %vm723 = vcmp.gt.s32.totalorder %v722, 0
        %v724 = vsel %vm723, %v722, 0
        %v725 = vshrl.u32 %v724, 5
        %v726 = vand.u32 %v724, 31
        %v727 = vsub.s32 32, %v726
        %v728 = vshrl.u32 683565275, %v727
        %v729 = vshll.u32 683565275, %v726
        %v730 = vshrl.u32 2475754826, %v727
        %v731 = vor.u32 %v729, %v730
        %v732 = vshll.u32 2475754826, %v726
        %v733 = vshrl.u32 2131351028, %v727
        %v734 = vor.u32 %v732, %v733
        %v735 = vshll.u32 2131351028, %v726
        %v736 = vshrl.u32 2102212464, %v727
        %v737 = vor.u32 %v735, %v736
        %v738 = vshll.u32 2102212464, %v726
        %v739 = vshrl.u32 920167782, %v727
        %v740 = vor.u32 %v738, %v739
        %v741 = vshll.u32 920167782, %v726
        %v742 = vshrl.u32 1326507024, %v727
        %v743 = vor.u32 %v741, %v742
        %vm744 = vcmp.lt.s32.totalorder %v725, 1
        %vm745 = vcmp.lt.s32.totalorder %v725, 2
        %vm746 = vcmp.lt.s32.totalorder %v725, 3
        %vm747 = vcmp.lt.s32.totalorder %v725, 4
        %v748 = vsel %vm744, %v728, %v731
        %v749 = vsel %vm747, %v737, 2102212464
        %v750 = vsel %vm746, %v734, %v749
        %v751 = vsel %vm745, %v748, %v750
        %v752 = vsel %vm744, %v731, %v734
        %v753 = vsel %vm747, %v740, 920167782
        %v754 = vsel %vm746, %v737, %v753
        %v755 = vsel %vm745, %v752, %v754
        %v756 = vsel %vm744, %v734, %v737
        %v757 = vsel %vm747, %v743, 1326507024
        %v758 = vsel %vm746, %v740, %v757
        %v759 = vsel %vm745, %v756, %v758
        %v760 = vshll.u32 %v720, 8
        %v761 = vand.u32 %v760, 65535
        %v762 = vshrl.u32 %v760, 16
        %v763 = vand.u32 %v759, 65535
        %v764 = vshrl.u32 %v759, 16
        %v765 = vmul.u32 %v761, %v763
        %v766 = vmul.u32 %v761, %v764
        %v767 = vmul.u32 %v762, %v763
        %v768 = vmul.u32 %v762, %v764
        %v769 = vshll.u32 %v766, 16
        %v770 = vshrl.u32 %v766, 16
        %v771 = vshll.u32 %v767, 16
        %v772 = vshrl.u32 %v767, 16
        %vm773 = vc.u32 %v765, %v769
        %v774 = vsel %vm773, 1, 0
        %v775 = vadd.s32 %v765, %v769
        %v776 = vadd.s32 %v768, %v774
        %vm777 = vc.u32 %v775, %v771
        %v778 = vsel %vm777, 1, 0
        %v779 = vadd.s32 %v775, %v771
        %v780 = vadd.s32 %v776, %v778
        %v781 = vadd.s32 %v780, %v770
        %v782 = vadd.s32 %v781, %v772
        %v783 = vand.u32 %v760, 65535
        %v784 = vshrl.u32 %v760, 16
        %v785 = vand.u32 %v755, 65535
        %v786 = vshrl.u32 %v755, 16
        %v787 = vmul.u32 %v783, %v785
        %v788 = vmul.u32 %v783, %v786
        %v789 = vmul.u32 %v784, %v785
        %v790 = vmul.u32 %v784, %v786
        %v791 = vshll.u32 %v788, 16
        %v792 = vshrl.u32 %v788, 16
        %v793 = vshll.u32 %v789, 16
        %v794 = vshrl.u32 %v789, 16
        %vm795 = vc.u32 %v787, %v791
        %v796 = vsel %vm795, 1, 0
        %v797 = vadd.s32 %v787, %v791
        %v798 = vadd.s32 %v790, %v796
        %vm799 = vc.u32 %v797, %v793
        %v800 = vsel %vm799, 1, 0
        %v801 = vadd.s32 %v797, %v793
        %v802 = vadd.s32 %v798, %v800
        %v803 = vadd.s32 %v802, %v792
        %v804 = vadd.s32 %v803, %v794
        %v805 = vmul.u32 %v760, %v751
        %v806 = vadd.s32 %v782, %v801
        %vm807 = vc.u32 %v782, %v801
        %v808 = vadd.s32 %v804, 1
        %v809 = vsel %vm807, %v808, %v804
        %v810 = vadd.s32 %v805, %v809
        %v811 = vadd.s32 %v810, 536870912
        %v812 = vshrl.u32 %v811, 30
        %v813 = vshll.u32 %v812, 30
        %v814 = vsub.s32 %v810, %v813
        %vm815 = vcmp.lt.s32.totalorder %v814, 0
        %v816 = vsub.s32 0, %v814
        %v817 = vsel %vm815, %v816, %v814
        %v818 = vclz %v817
        %v819 = vsub.s32 %v818, 2
        %vm820 = vcmp.gt.s32.totalorder 0, %v819
        %v821 = vsel %vm820, 0, %v819
        %v822 = vsub.s32 32, %v821
        %v823 = vshll.u32 %v814, %v821
        %v824 = vshrl.u32 %v806, %v822
        %v825 = vor.u32 %v823, %v824
        %v826 = vsub.s32 4294967266, %v821
        %v827 = vadd.s32 %v826, 127
        %v828 = vshll.u32 %v827, 23
        %v829 = vor.u32 4788187, %v828
        %v830 = vand.u32 2147483647, %v829
        %v832 = vcvt.s32.f32 %v825
        %v833 = vmul.f32 %v832, %v830
        %v834 = vxor.u32 %v833, 2147483648
        %v835 = vsel %vm714, %v834, %v833
        %v836 = vsub.s32 4, %v812
        %v837 = vsel %vm714, %v836, %v812
        %v838 = vsel %vm713, %v293, %v835
        %v839 = vsel %vm713, 0, %v837
        %v840 = vmul.f32 %v838, %v838
        %v841 = vmul.f32 %v840, -0.001358992
        %v842 = vadd.f32 %v841, 0.041655596
        %v843 = vmul.f32 %v840, %v842
        %v844 = vadd.f32 %v843, -0.4999988
        %v845 = vmul.f32 %v840, %v844
        %v846 = vadd.f32 1.0, %v845
        %v847 = vmul.f32 %v838, %v838
        %v848 = vmul.f32 %v847, -0.00019511016
        %v849 = vadd.f32 %v848, 0.008332121
        %v850 = vmul.f32 %v847, %v849
        %v851 = vadd.f32 %v850, -0.16666654
        %v852 = vmul.f32 %v847, %v851
        %v853 = vadd.f32 %v852, 1.0
        %v854 = vmul.f32 %v853, %v838
        %vm855 = vweird.f32 %v293
        %v856 = vadd.s32 %v839, 3
        %v857 = vand.u32 %v856, 3
        %vm858 = vcmp.lt.s32.totalorder %v857, 2
        %vm859 = vcmp.eq.s32.totalorder %v857, 0
        %v860 = vxor.u32 %v854, 2147483648
        %v861 = vsel %vm859, %v846, %v860
        %vm862 = vcmp.eq.s32.totalorder %v857, 2
        %v863 = vxor.u32 %v846, 2147483648
        %v864 = vsel %vm862, %v863, %v854
        %v865 = vsel %vm858, %v861, %v864
        %v866 = vsel %vm855, nan, %v865
        %v867 = vand.u32 2147483647, %v358
        %vm868 = vcmp.le.f32.partialorder %v867, 0.7853982
        %vm869 = vcmp.lt.s32.totalorder %v358, 0
        %v870 = vand.u32 %v358, 2139095040
        %v871 = vshrl.u32 %v870, 23
        %v872 = vsub.s32 %v871, 127
        %v873 = vand.u32 2147483647, %v358
        %v874 = vand.u32 %v873, 8388607
        %v875 = vor.u32 %v874, 8388608
        %v876 = vsub.s32 0, %v875
        %v877 = vadd.s32 %v872, 1
        %vm878 = vcmp.gt.s32.totalorder %v877, 0
        %v879 = vsel %vm878, %v877, 0
        %v880 = vshrl.u32 %v879, 5
        %v881 = vand.u32 %v879, 31
        %v882 = vsub.s32 32, %v881
        %v883 = vshrl.u32 683565275, %v882
        %v884 = vshll.u32 683565275, %v881
        %v885 = vshrl.u32 2475754826, %v882
        %v886 = vor.u32 %v884, %v885
        %v887 = vshll.u32 2475754826, %v881
        %v888 = vshrl.u32 2131351028, %v882
        %v889 = vor.u32 %v887, %v888
        %v890 = vshll.u32 2131351028, %v881
        %v891 = vshrl.u32 2102212464, %v882
        %v892 = vor.u32 %v890, %v891
        %v893 = vshll.u32 2102212464, %v881
        %v894 = vshrl.u32 920167782, %v882
        %v895 = vor.u32 %v893, %v894
        %v896 = vshll.u32 920167782, %v881
        %v897 = vshrl.u32 1326507024, %v882
        %v898 = vor.u32 %v896, %v897
        %vm899 = vcmp.lt.s32.totalorder %v880, 1
        %vm900 = vcmp.lt.s32.totalorder %v880, 2
        %vm901 = vcmp.lt.s32.totalorder %v880, 3
        %vm902 = vcmp.lt.s32.totalorder %v880, 4
        %v903 = vsel %vm899, %v883, %v886
        %v904 = vsel %vm902, %v892, 2102212464
        %v905 = vsel %vm901, %v889, %v904
        %v906 = vsel %vm900, %v903, %v905
        %v907 = vsel %vm899, %v886, %v889
        %v908 = vsel %vm902, %v895, 920167782
        %v909 = vsel %vm901, %v892, %v908
        %v910 = vsel %vm900, %v907, %v909
        %v911 = vsel %vm899, %v889, %v892
        %v912 = vsel %vm902, %v898, 1326507024
        %v913 = vsel %vm901, %v895, %v912
        %v914 = vsel %vm900, %v911, %v913
        %v915 = vshll.u32 %v875, 8
        %v916 = vand.u32 %v915, 65535
        %v917 = vshrl.u32 %v915, 16
        %v918 = vand.u32 %v914, 65535
        %v919 = vshrl.u32 %v914, 16
        %v920 = vmul.u32 %v916, %v918
        %v921 = vmul.u32 %v916, %v919
        %v922 = vmul.u32 %v917, %v918
        %v923 = vmul.u32 %v917, %v919
        %v924 = vshll.u32 %v921, 16
        %v925 = vshrl.u32 %v921, 16
        %v926 = vshll.u32 %v922, 16
        %v927 = vshrl.u32 %v922, 16
        %vm928 = vc.u32 %v920, %v924
        %v929 = vsel %vm928, 1, 0
        %v930 = vadd.s32 %v920, %v924
        %v931 = vadd.s32 %v923, %v929
        %vm932 = vc.u32 %v930, %v926
        %v933 = vsel %vm932, 1, 0
        %v934 = vadd.s32 %v930, %v926
        %v935 = vadd.s32 %v931, %v933
        %v936 = vadd.s32 %v935, %v925
        %v937 = vadd.s32 %v936, %v927
        %v938 = vand.u32 %v915, 65535
        %v939 = vshrl.u32 %v915, 16
        %v940 = vand.u32 %v910, 65535
        %v941 = vshrl.u32 %v910, 16
        %v942 = vmul.u32 %v938, %v940
        %v943 = vmul.u32 %v938, %v941
        %v944 = vmul.u32 %v939, %v940
        %v945 = vmul.u32 %v939, %v941
        %v946 = vshll.u32 %v943, 16
        %v947 = vshrl.u32 %v943, 16
        %v948 = vshll.u32 %v944, 16
        %v949 = vshrl.u32 %v944, 16
        %vm950 = vc.u32 %v942, %v946
        %v951 = vsel %vm950, 1, 0
        %v952 = vadd.s32 %v942, %v946
        %v953 = vadd.s32 %v945, %v951
        %vm954 = vc.u32 %v952, %v948
        %v955 = vsel %vm954, 1, 0
        %v956 = vadd.s32 %v952, %v948
        %v957 = vadd.s32 %v953, %v955
        %v958 = vadd.s32 %v957, %v947
        %v959 = vadd.s32 %v958, %v949
        %v960 = vmul.u32 %v915, %v906
        %v961 = vadd.s32 %v937, %v956
        %vm962 = vc.u32 %v937, %v956
        %v963 = vadd.s32 %v959, 1
        %v964 = vsel %vm962, %v963, %v959
        %v965 = vadd.s32 %v960, %v964
        %v966 = vadd.s32 %v965, 536870912
        %v967 = vshrl.u32 %v966, 30
        %v968 = vshll.u32 %v967, 30
        %v969 = vsub.s32 %v965, %v968
        %vm970 = vcmp.lt.s32.totalorder %v969, 0
        %v971 = vsub.s32 0, %v969
        %v972 = vsel %vm970, %v971, %v969
        %v973 = vclz %v972
        %v974 = vsub.s32 %v973, 2
        %vm975 = vcmp.gt.s32.totalorder 0, %v974
        %v976 = vsel %vm975, 0, %v974
        %v977 = vsub.s32 32, %v976
        %v978 = vshll.u32 %v969, %v976
        %v979 = vshrl.u32 %v961, %v977
        %v980 = vor.u32 %v978, %v979
        %v981 = vsub.s32 4294967266, %v976
        %v982 = vadd.s32 %v981, 127
        %v983 = vshll.u32 %v982, 23
        %v984 = vor.u32 4788187, %v983
        %v985 = vand.u32 2147483647, %v984
        %v987 = vcvt.s32.f32 %v980
        %v988 = vmul.f32 %v987, %v985
        %v989 = vxor.u32 %v988, 2147483648
        %v990 = vsel %vm869, %v989, %v988
        %v991 = vsub.s32 4, %v967
        %v992 = vsel %vm869, %v991, %v967
        %v993 = vsel %vm868, %v358, %v990
        %v994 = vsel %vm868, 0, %v992
        %v995 = vmul.f32 %v993, %v993
        %v996 = vmul.f32 %v995, -0.001358992
        %v997 = vadd.f32 %v996, 0.041655596
        %v998 = vmul.f32 %v995, %v997
        %v999 = vadd.f32 %v998, -0.4999988
        %v1000 = vmul.f32 %v995, %v999
        %v1001 = vadd.f32 1.0, %v1000
        %v1002 = vmul.f32 %v993, %v993
        %v1003 = vmul.f32 %v1002, -0.00019511016
        %v1004 = vadd.f32 %v1003, 0.008332121
        %v1005 = vmul.f32 %v1002, %v1004
        %v1006 = vadd.f32 %v1005, -0.16666654
        %v1007 = vmul.f32 %v1002, %v1006
        %v1008 = vadd.f32 %v1007, 1.0
        %v1009 = vmul.f32 %v1008, %v993
        %vm1010 = vweird.f32 %v358
        %v1011 = vadd.s32 %v994, 3
        %v1012 = vand.u32 %v1011, 3
        %vm1013 = vcmp.lt.s32.totalorder %v1012, 2
        %vm1014 = vcmp.eq.s32.totalorder %v1012, 0
        %v1015 = vxor.u32 %v1009, 2147483648
        %v1016 = vsel %vm1014, %v1001, %v1015
        %vm1017 = vcmp.eq.s32.totalorder %v1012, 2
        %v1018 = vxor.u32 %v1001, 2147483648
        %v1019 = vsel %vm1017, %v1018, %v1009
        %v1020 = vsel %vm1013, %v1016, %v1019
        %v1021 = vsel %vm1010, nan, %v1020
        %v1022 = vand.u32 2147483647, %v296
        %vm1023 = vcmp.le.f32.partialorder %v1022, 0.7853982
        %vm1024 = vcmp.lt.s32.totalorder %v296, 0
        %v1025 = vand.u32 %v296, 2139095040
        %v1026 = vshrl.u32 %v1025, 23
        %v1027 = vsub.s32 %v1026, 127
        %v1028 = vand.u32 2147483647, %v296
        %v1029 = vand.u32 %v1028, 8388607
        %v1030 = vor.u32 %v1029, 8388608
        %v1031 = vsub.s32 0, %v1030
        %v1032 = vadd.s32 %v1027, 1
        %vm1033 = vcmp.gt.s32.totalorder %v1032, 0
        %v1034 = vsel %vm1033, %v1032, 0
        %v1035 = vshrl.u32 %v1034, 5
        %v1036 = vand.u32 %v1034, 31
        %v1037 = vsub.s32 32, %v1036
        %v1038 = vshrl.u32 683565275, %v1037
        %v1039 = vshll.u32 683565275, %v1036
        %v1040 = vshrl.u32 2475754826, %v1037
        %v1041 = vor.u32 %v1039, %v1040
        %v1042 = vshll.u32 2475754826, %v1036
        %v1043 = vshrl.u32 2131351028, %v1037
        %v1044 = vor.u32 %v1042, %v1043
        %v1045 = vshll.u32 2131351028, %v1036
        %v1046 = vshrl.u32 2102212464, %v1037
        %v1047 = vor.u32 %v1045, %v1046
        %v1048 = vshll.u32 2102212464, %v1036
        %v1049 = vshrl.u32 920167782, %v1037
        %v1050 = vor.u32 %v1048, %v1049
        %v1051 = vshll.u32 920167782, %v1036
        %v1052 = vshrl.u32 1326507024, %v1037
        %v1053 = vor.u32 %v1051, %v1052
        %vm1054 = vcmp.lt.s32.totalorder %v1035, 1
        %vm1055 = vcmp.lt.s32.totalorder %v1035, 2
        %vm1056 = vcmp.lt.s32.totalorder %v1035, 3
        %vm1057 = vcmp.lt.s32.totalorder %v1035, 4
        %v1058 = vsel %vm1054, %v1038, %v1041
        %v1059 = vsel %vm1057, %v1047, 2102212464
        %v1060 = vsel %vm1056, %v1044, %v1059
        %v1061 = vsel %vm1055, %v1058, %v1060
        %v1062 = vsel %vm1054, %v1041, %v1044
        %v1063 = vsel %vm1057, %v1050, 920167782
        %v1064 = vsel %vm1056, %v1047, %v1063
        %v1065 = vsel %vm1055, %v1062, %v1064
        %v1066 = vsel %vm1054, %v1044, %v1047
        %v1067 = vsel %vm1057, %v1053, 1326507024
        %v1068 = vsel %vm1056, %v1050, %v1067
        %v1069 = vsel %vm1055, %v1066, %v1068
        %v1070 = vshll.u32 %v1030, 8
        %v1071 = vand.u32 %v1070, 65535
        %v1072 = vshrl.u32 %v1070, 16
        %v1073 = vand.u32 %v1069, 65535
        %v1074 = vshrl.u32 %v1069, 16
        %v1075 = vmul.u32 %v1071, %v1073
        %v1076 = vmul.u32 %v1071, %v1074
        %v1077 = vmul.u32 %v1072, %v1073
        %v1078 = vmul.u32 %v1072, %v1074
        %v1079 = vshll.u32 %v1076, 16
        %v1080 = vshrl.u32 %v1076, 16
        %v1081 = vshll.u32 %v1077, 16
        %v1082 = vshrl.u32 %v1077, 16
        %vm1083 = vc.u32 %v1075, %v1079
        %v1084 = vsel %vm1083, 1, 0
        %v1085 = vadd.s32 %v1075, %v1079
        %v1086 = vadd.s32 %v1078, %v1084
        %vm1087 = vc.u32 %v1085, %v1081
        %v1088 = vsel %vm1087, 1, 0
        %v1089 = vadd.s32 %v1085, %v1081
        %v1090 = vadd.s32 %v1086, %v1088
        %v1091 = vadd.s32 %v1090, %v1080
        %v1092 = vadd.s32 %v1091, %v1082
        %v1093 = vand.u32 %v1070, 65535
        %v1094 = vshrl.u32 %v1070, 16
        %v1095 = vand.u32 %v1065, 65535
        %v1096 = vshrl.u32 %v1065, 16
        %v1097 = vmul.u32 %v1093, %v1095
        %v1098 = vmul.u32 %v1093, %v1096
        %v1099 = vmul.u32 %v1094, %v1095
        %v1100 = vmul.u32 %v1094, %v1096
        %v1101 = vshll.u32 %v1098, 16
        %v1102 = vshrl.u32 %v1098, 16
        %v1103 = vshll.u32 %v1099, 16
        %v1104 = vshrl.u32 %v1099, 16
        %vm1105 = vc.u32 %v1097, %v1101
        %v1106 = vsel %vm1105, 1, 0
        %v1107 = vadd.s32 %v1097, %v1101
        %v1108 = vadd.s32 %v1100, %v1106
        %vm1109 = vc.u32 %v1107, %v1103
        %v1110 = vsel %vm1109, 1, 0
        %v1111 = vadd.s32 %v1107, %v1103
        %v1112 = vadd.s32 %v1108, %v1110
        %v1113 = vadd.s32 %v1112, %v1102
        %v1114 = vadd.s32 %v1113, %v1104
        %v1115 = vmul.u32 %v1070, %v1061
        %v1116 = vadd.s32 %v1092, %v1111
        %vm1117 = vc.u32 %v1092, %v1111
        %v1118 = vadd.s32 %v1114, 1
        %v1119 = vsel %vm1117, %v1118, %v1114
        %v1120 = vadd.s32 %v1115, %v1119
        %v1121 = vadd.s32 %v1120, 536870912
        %v1122 = vshrl.u32 %v1121, 30
        %v1123 = vshll.u32 %v1122, 30
        %v1124 = vsub.s32 %v1120, %v1123
        %vm1125 = vcmp.lt.s32.totalorder %v1124, 0
        %v1126 = vsub.s32 0, %v1124
        %v1127 = vsel %vm1125, %v1126, %v1124
        %v1128 = vclz %v1127
        %v1129 = vsub.s32 %v1128, 2
        %vm1130 = vcmp.gt.s32.totalorder 0, %v1129
        %v1131 = vsel %vm1130, 0, %v1129
        %v1132 = vsub.s32 32, %v1131
        %v1133 = vshll.u32 %v1124, %v1131
        %v1134 = vshrl.u32 %v1116, %v1132
        %v1135 = vor.u32 %v1133, %v1134
        %v1136 = vsub.s32 4294967266, %v1131
        %v1137 = vadd.s32 %v1136, 127
        %v1138 = vshll.u32 %v1137, 23
        %v1139 = vor.u32 4788187, %v1138
        %v1140 = vand.u32 2147483647, %v1139
        %v1142 = vcvt.s32.f32 %v1135
        %v1143 = vmul.f32 %v1142, %v1140
        %v1144 = vxor.u32 %v1143, 2147483648
        %v1145 = vsel %vm1024, %v1144, %v1143
        %v1146 = vsub.s32 4, %v1122
        %v1147 = vsel %vm1024, %v1146, %v1122
        %v1148 = vsel %vm1023, %v296, %v1145
        %v1149 = vsel %vm1023, 0, %v1147
        %v1150 = vmul.f32 %v1148, %v1148
        %v1151 = vmul.f32 %v1150, -0.001358992
        %v1152 = vadd.f32 %v1151, 0.041655596
        %v1153 = vmul.f32 %v1150, %v1152
        %v1154 = vadd.f32 %v1153, -0.4999988
        %v1155 = vmul.f32 %v1150, %v1154
        %v1156 = vadd.f32 1.0, %v1155
        %v1157 = vmul.f32 %v1148, %v1148
        %v1158 = vmul.f32 %v1157, -0.00019511016
        %v1159 = vadd.f32 %v1158, 0.008332121
        %v1160 = vmul.f32 %v1157, %v1159
        %v1161 = vadd.f32 %v1160, -0.16666654
        %v1162 = vmul.f32 %v1157, %v1161
        %v1163 = vadd.f32 %v1162, 1.0
        %v1164 = vmul.f32 %v1163, %v1148
        %vm1165 = vweird.f32 %v296
        %v1166 = vadd.s32 %v1149, 3
        %v1167 = vand.u32 %v1166, 3
        %vm1168 = vcmp.lt.s32.totalorder %v1167, 2
        %vm1169 = vcmp.eq.s32.totalorder %v1167, 0
        %v1170 = vxor.u32 %v1164, 2147483648
        %v1171 = vsel %vm1169, %v1156, %v1170
        %vm1172 = vcmp.eq.s32.totalorder %v1167, 2
        %v1173 = vxor.u32 %v1156, 2147483648
        %v1174 = vsel %vm1172, %v1173, %v1164
        %v1175 = vsel %vm1168, %v1171, %v1174
        %v1176 = vsel %vm1165, nan, %v1175
        %v1177 = vand.u32 2147483647, %v361
        %vm1178 = vcmp.le.f32.partialorder %v1177, 0.7853982
        %vm1179 = vcmp.lt.s32.totalorder %v361, 0
        %v1180 = vand.u32 %v361, 2139095040
        %v1181 = vshrl.u32 %v1180, 23
        %v1182 = vsub.s32 %v1181, 127
        %v1183 = vand.u32 2147483647, %v361
        %v1184 = vand.u32 %v1183, 8388607
        %v1185 = vor.u32 %v1184, 8388608
        %v1186 = vsub.s32 0, %v1185
        %v1187 = vadd.s32 %v1182, 1
        %vm1188 = vcmp.gt.s32.totalorder %v1187, 0
        %v1189 = vsel %vm1188, %v1187, 0
        %v1190 = vshrl.u32 %v1189, 5
        %v1191 = vand.u32 %v1189, 31
        %v1192 = vsub.s32 32, %v1191
        %v1193 = vshrl.u32 683565275, %v1192
        %v1194 = vshll.u32 683565275, %v1191
        %v1195 = vshrl.u32 2475754826, %v1192
        %v1196 = vor.u32 %v1194, %v1195
        %v1197 = vshll.u32 2475754826, %v1191
        %v1198 = vshrl.u32 2131351028, %v1192
        %v1199 = vor.u32 %v1197, %v1198
        %v1200 = vshll.u32 2131351028, %v1191
        %v1201 = vshrl.u32 2102212464, %v1192
        %v1202 = vor.u32 %v1200, %v1201
        %v1203 = vshll.u32 2102212464, %v1191
        %v1204 = vshrl.u32 920167782, %v1192
        %v1205 = vor.u32 %v1203, %v1204
        %v1206 = vshll.u32 920167782, %v1191
        %v1207 = vshrl.u32 1326507024, %v1192
        %v1208 = vor.u32 %v1206, %v1207
        %vm1209 = vcmp.lt.s32.totalorder %v1190, 1
        %vm1210 = vcmp.lt.s32.totalorder %v1190, 2
        %vm1211 = vcmp.lt.s32.totalorder %v1190, 3
        %vm1212 = vcmp.lt.s32.totalorder %v1190, 4
        %v1213 = vsel %vm1209, %v1193, %v1196
        %v1214 = vsel %vm1212, %v1202, 2102212464
        %v1215 = vsel %vm1211, %v1199, %v1214
        %v1216 = vsel %vm1210, %v1213, %v1215
        %v1217 = vsel %vm1209, %v1196, %v1199
        %v1218 = vsel %vm1212, %v1205, 920167782
        %v1219 = vsel %vm1211, %v1202, %v1218
        %v1220 = vsel %vm1210, %v1217, %v1219
        %v1221 = vsel %vm1209, %v1199, %v1202
        %v1222 = vsel %vm1212, %v1208, 1326507024
        %v1223 = vsel %vm1211, %v1205, %v1222
        %v1224 = vsel %vm1210, %v1221, %v1223
        %v1225 = vshll.u32 %v1185, 8
        %v1226 = vand.u32 %v1225, 65535
        %v1227 = vshrl.u32 %v1225, 16
        %v1228 = vand.u32 %v1224, 65535
        %v1229 = vshrl.u32 %v1224, 16
        %v1230 = vmul.u32 %v1226, %v1228
        %v1231 = vmul.u32 %v1226, %v1229
        %v1232 = vmul.u32 %v1227, %v1228
        %v1233 = vmul.u32 %v1227, %v1229
        %v1234 = vshll.u32 %v1231, 16
        %v1235 = vshrl.u32 %v1231, 16
        %v1236 = vshll.u32 %v1232, 16
        %v1237 = vshrl.u32 %v1232, 16
        %vm1238 = vc.u32 %v1230, %v1234
        %v1239 = vsel %vm1238, 1, 0
        %v1240 = vadd.s32 %v1230, %v1234
        %v1241 = vadd.s32 %v1233, %v1239
        %vm1242 = vc.u32 %v1240, %v1236
        %v1243 = vsel %vm1242, 1, 0
        %v1244 = vadd.s32 %v1240, %v1236
        %v1245 = vadd.s32 %v1241, %v1243
        %v1246 = vadd.s32 %v1245, %v1235
        %v1247 = vadd.s32 %v1246, %v1237
        %v1248 = vand.u32 %v1225, 65535
        %v1249 = vshrl.u32 %v1225, 16
        %v1250 = vand.u32 %v1220, 65535
        %v1251 = vshrl.u32 %v1220, 16
        %v1252 = vmul.u32 %v1248, %v1250
        %v1253 = vmul.u32 %v1248, %v1251
        %v1254 = vmul.u32 %v1249, %v1250
        %v1255 = vmul.u32 %v1249, %v1251
        %v1256 = vshll.u32 %v1253, 16
        %v1257 = vshrl.u32 %v1253, 16
        %v1258 = vshll.u32 %v1254, 16
        %v1259 = vshrl.u32 %v1254, 16
        %vm1260 = vc.u32 %v1252, %v1256
        %v1261 = vsel %vm1260, 1, 0
        %v1262 = vadd.s32 %v1252, %v1256
        %v1263 = vadd.s32 %v1255, %v1261
        %vm1264 = vc.u32 %v1262, %v1258
        %v1265 = vsel %vm1264, 1, 0
        %v1266 = vadd.s32 %v1262, %v1258
        %v1267 = vadd.s32 %v1263, %v1265
        %v1268 = vadd.s32 %v1267, %v1257
        %v1269 = vadd.s32 %v1268, %v1259
        %v1270 = vmul.u32 %v1225, %v1216
        %v1271 = vadd.s32 %v1247, %v1266
        %vm1272 = vc.u32 %v1247, %v1266
        %v1273 = vadd.s32 %v1269, 1
        %v1274 = vsel %vm1272, %v1273, %v1269
        %v1275 = vadd.s32 %v1270, %v1274
        %v1276 = vadd.s32 %v1275, 536870912
        %v1277 = vshrl.u32 %v1276, 30
        %v1278 = vshll.u32 %v1277, 30
        %v1279 = vsub.s32 %v1275, %v1278
        %vm1280 = vcmp.lt.s32.totalorder %v1279, 0
        %v1281 = vsub.s32 0, %v1279
        %v1282 = vsel %vm1280, %v1281, %v1279
        %v1283 = vclz %v1282
        %v1284 = vsub.s32 %v1283, 2
        %vm1285 = vcmp.gt.s32.totalorder 0, %v1284
        %v1286 = vsel %vm1285, 0, %v1284
        %v1287 = vsub.s32 32, %v1286
        %v1288 = vshll.u32 %v1279, %v1286
        %v1289 = vshrl.u32 %v1271, %v1287
        %v1290 = vor.u32 %v1288, %v1289
        %v1291 = vsub.s32 4294967266, %v1286
        %v1292 = vadd.s32 %v1291, 127
        %v1293 = vshll.u32 %v1292, 23
        %v1294 = vor.u32 4788187, %v1293
        %v1295 = vand.u32 2147483647, %v1294
        %v1297 = vcvt.s32.f32 %v1290
        %v1298 = vmul.f32 %v1297, %v1295
        %v1299 = vxor.u32 %v1298, 2147483648
        %v1300 = vsel %vm1179, %v1299, %v1298
        %v1301 = vsub.s32 4, %v1277
        %v1302 = vsel %vm1179, %v1301, %v1277
        %v1303 = vsel %vm1178, %v361, %v1300
        %v1304 = vsel %vm1178, 0, %v1302
        %v1305 = vmul.f32 %v1303, %v1303
        %v1306 = vmul.f32 %v1305, -0.001358992
        %v1307 = vadd.f32 %v1306, 0.041655596
        %v1308 = vmul.f32 %v1305, %v1307
        %v1309 = vadd.f32 %v1308, -0.4999988
        %v1310 = vmul.f32 %v1305, %v1309
        %v1311 = vadd.f32 1.0, %v1310
        %v1312 = vmul.f32 %v1303, %v1303
        %v1313 = vmul.f32 %v1312, -0.00019511016
        %v1314 = vadd.f32 %v1313, 0.008332121
        %v1315 = vmul.f32 %v1312, %v1314
        %v1316 = vadd.f32 %v1315, -0.16666654
        %v1317 = vmul.f32 %v1312, %v1316
        %v1318 = vadd.f32 %v1317, 1.0
        %v1319 = vmul.f32 %v1318, %v1303
        %vm1320 = vweird.f32 %v361
        %v1321 = vadd.s32 %v1304, 3
        %v1322 = vand.u32 %v1321, 3
        %vm1323 = vcmp.lt.s32.totalorder %v1322, 2
        %vm1324 = vcmp.eq.s32.totalorder %v1322, 0
        %v1325 = vxor.u32 %v1319, 2147483648
        %v1326 = vsel %vm1324, %v1311, %v1325
        %vm1327 = vcmp.eq.s32.totalorder %v1322, 2
        %v1328 = vxor.u32 %v1311, 2147483648
        %v1329 = vsel %vm1327, %v1328, %v1319
        %v1330 = vsel %vm1323, %v1326, %v1329
        %v1331 = vsel %vm1320, nan, %v1330
        %v1332 = vand.u32 2147483647, %v299
        %vm1333 = vcmp.le.f32.partialorder %v1332, 0.7853982
        %vm1334 = vcmp.lt.s32.totalorder %v299, 0
        %v1335 = vand.u32 %v299, 2139095040
        %v1336 = vshrl.u32 %v1335, 23
        %v1337 = vsub.s32 %v1336, 127
        %v1338 = vand.u32 2147483647, %v299
        %v1339 = vand.u32 %v1338, 8388607
        %v1340 = vor.u32 %v1339, 8388608
        %v1341 = vsub.s32 0, %v1340
        %v1342 = vadd.s32 %v1337, 1
        %vm1343 = vcmp.gt.s32.totalorder %v1342, 0
        %v1344 = vsel %vm1343, %v1342, 0
        %v1345 = vshrl.u32 %v1344, 5
        %v1346 = vand.u32 %v1344, 31
        %v1347 = vsub.s32 32, %v1346
        %v1348 = vshrl.u32 683565275, %v1347
        %v1349 = vshll.u32 683565275, %v1346
        %v1350 = vshrl.u32 2475754826, %v1347
        %v1351 = vor.u32 %v1349, %v1350
        %v1352 = vshll.u32 2475754826, %v1346
        %v1353 = vshrl.u32 2131351028, %v1347
        %v1354 = vor.u32 %v1352, %v1353
        %v1355 = vshll.u32 2131351028, %v1346
        %v1356 = vshrl.u32 2102212464, %v1347
        %v1357 = vor.u32 %v1355, %v1356
        %v1358 = vshll.u32 2102212464, %v1346
        %v1359 = vshrl.u32 920167782, %v1347
        %v1360 = vor.u32 %v1358, %v1359
        %v1361 = vshll.u32 920167782, %v1346
        %v1362 = vshrl.u32 1326507024, %v1347
        %v1363 = vor.u32 %v1361, %v1362
        %vm1364 = vcmp.lt.s32.totalorder %v1345, 1
        %vm1365 = vcmp.lt.s32.totalorder %v1345, 2
        %vm1366 = vcmp.lt.s32.totalorder %v1345, 3
        %vm1367 = vcmp.lt.s32.totalorder %v1345, 4
        %v1368 = vsel %vm1364, %v1348, %v1351
        %v1369 = vsel %vm1367, %v1357, 2102212464
        %v1370 = vsel %vm1366, %v1354, %v1369
        %v1371 = vsel %vm1365, %v1368, %v1370
        %v1372 = vsel %vm1364, %v1351, %v1354
        %v1373 = vsel %vm1367, %v1360, 920167782
        %v1374 = vsel %vm1366, %v1357, %v1373
        %v1375 = vsel %vm1365, %v1372, %v1374
        %v1376 = vsel %vm1364, %v1354, %v1357
        %v1377 = vsel %vm1367, %v1363, 1326507024
        %v1378 = vsel %vm1366, %v1360, %v1377
        %v1379 = vsel %vm1365, %v1376, %v1378
        %v1380 = vshll.u32 %v1340, 8
        %v1381 = vand.u32 %v1380, 65535
        %v1382 = vshrl.u32 %v1380, 16
        %v1383 = vand.u32 %v1379, 65535
        %v1384 = vshrl.u32 %v1379, 16
        %v1385 = vmul.u32 %v1381, %v1383
        %v1386 = vmul.u32 %v1381, %v1384
        %v1387 = vmul.u32 %v1382, %v1383
        %v1388 = vmul.u32 %v1382, %v1384
        %v1389 = vshll.u32 %v1386, 16
        %v1390 = vshrl.u32 %v1386, 16
        %v1391 = vshll.u32 %v1387, 16
        %v1392 = vshrl.u32 %v1387, 16
        %vm1393 = vc.u32 %v1385, %v1389
        %v1394 = vsel %vm1393, 1, 0
        %v1395 = vadd.s32 %v1385, %v1389
        %v1396 = vadd.s32 %v1388, %v1394
        %vm1397 = vc.u32 %v1395, %v1391
        %v1398 = vsel %vm1397, 1, 0
        %v1399 = vadd.s32 %v1395, %v1391
        %v1400 = vadd.s32 %v1396, %v1398
        %v1401 = vadd.s32 %v1400, %v1390
        %v1402 = vadd.s32 %v1401, %v1392
        %v1403 = vand.u32 %v1380, 65535
        %v1404 = vshrl.u32 %v1380, 16
        %v1405 = vand.u32 %v1375, 65535
        %v1406 = vshrl.u32 %v1375, 16
        %v1407 = vmul.u32 %v1403, %v1405
        %v1408 = vmul.u32 %v1403, %v1406
        %v1409 = vmul.u32 %v1404, %v1405
        %v1410 = vmul.u32 %v1404, %v1406
        %v1411 = vshll.u32 %v1408, 16
        %v1412 = vshrl.u32 %v1408, 16
        %v1413 = vshll.u32 %v1409, 16
        %v1414 = vshrl.u32 %v1409, 16
        %vm1415 = vc.u32 %v1407, %v1411
        %v1416 = vsel %vm1415, 1, 0
        %v1417 = vadd.s32 %v1407, %v1411
        %v1418 = vadd.s32 %v1410, %v1416
        %vm1419 = vc.u32 %v1417, %v1413
        %v1420 = vsel %vm1419, 1, 0
        %v1421 = vadd.s32 %v1417, %v1413
        %v1422 = vadd.s32 %v1418, %v1420
        %v1423 = vadd.s32 %v1422, %v1412
        %v1424 = vadd.s32 %v1423, %v1414
        %v1425 = vmul.u32 %v1380, %v1371
        %v1426 = vadd.s32 %v1402, %v1421
        %vm1427 = vc.u32 %v1402, %v1421
        %v1428 = vadd.s32 %v1424, 1
        %v1429 = vsel %vm1427, %v1428, %v1424
        %v1430 = vadd.s32 %v1425, %v1429
        %v1431 = vadd.s32 %v1430, 536870912
        %v1432 = vshrl.u32 %v1431, 30
        %v1433 = vshll.u32 %v1432, 30
        %v1434 = vsub.s32 %v1430, %v1433
        %vm1435 = vcmp.lt.s32.totalorder %v1434, 0
        %v1436 = vsub.s32 0, %v1434
        %v1437 = vsel %vm1435, %v1436, %v1434
        %v1438 = vclz %v1437
        %v1439 = vsub.s32 %v1438, 2
        %vm1440 = vcmp.gt.s32.totalorder 0, %v1439
        %v1441 = vsel %vm1440, 0, %v1439
        %v1442 = vsub.s32 32, %v1441
        %v1443 = vshll.u32 %v1434, %v1441
        %v1444 = vshrl.u32 %v1426, %v1442
        %v1445 = vor.u32 %v1443, %v1444
        %v1446 = vsub.s32 4294967266, %v1441
        %v1447 = vadd.s32 %v1446, 127
        %v1448 = vshll.u32 %v1447, 23
        %v1449 = vor.u32 4788187, %v1448
        %v1450 = vand.u32 2147483647, %v1449
        %v1452 = vcvt.s32.f32 %v1445
        %v1453 = vmul.f32 %v1452, %v1450
        %v1454 = vxor.u32 %v1453, 2147483648
        %v1455 = vsel %vm1334, %v1454, %v1453
        %v1456 = vsub.s32 4, %v1432
        %v1457 = vsel %vm1334, %v1456, %v1432
        %v1458 = vsel %vm1333, %v299, %v1455
        %v1459 = vsel %vm1333, 0, %v1457
        %v1460 = vmul.f32 %v1458, %v1458
        %v1461 = vmul.f32 %v1460, -0.001358992
        %v1462 = vadd.f32 %v1461, 0.041655596
        %v1463 = vmul.f32 %v1460, %v1462
        %v1464 = vadd.f32 %v1463, -0.4999988
        %v1465 = vmul.f32 %v1460, %v1464
        %v1466 = vadd.f32 1.0, %v1465
        %v1467 = vmul.f32 %v1458, %v1458
        %v1468 = vmul.f32 %v1467, -0.00019511016
        %v1469 = vadd.f32 %v1468, 0.008332121
        %v1470 = vmul.f32 %v1467, %v1469
        %v1471 = vadd.f32 %v1470, -0.16666654
        %v1472 = vmul.f32 %v1467, %v1471
        %v1473 = vadd.f32 %v1472, 1.0
        %v1474 = vmul.f32 %v1473, %v1458
        %vm1475 = vweird.f32 %v299
        %v1476 = vadd.s32 %v1459, 3
        %v1477 = vand.u32 %v1476, 3
        %vm1478 = vcmp.lt.s32.totalorder %v1477, 2
        %vm1479 = vcmp.eq.s32.totalorder %v1477, 0
        %v1480 = vxor.u32 %v1474, 2147483648
        %v1481 = vsel %vm1479, %v1466, %v1480
        %vm1482 = vcmp.eq.s32.totalorder %v1477, 2
        %v1483 = vxor.u32 %v1466, 2147483648
        %v1484 = vsel %vm1482, %v1483, %v1474
        %v1485 = vsel %vm1478, %v1481, %v1484
        %v1486 = vsel %vm1475, nan, %v1485
        %v1487 = vand.u32 2147483647, %v364
        %vm1488 = vcmp.le.f32.partialorder %v1487, 0.7853982
        %vm1489 = vcmp.lt.s32.totalorder %v364, 0
        %v1490 = vand.u32 %v364, 2139095040
        %v1491 = vshrl.u32 %v1490, 23
        %v1492 = vsub.s32 %v1491, 127
        %v1493 = vand.u32 2147483647, %v364
        %v1494 = vand.u32 %v1493, 8388607
        %v1495 = vor.u32 %v1494, 8388608
        %v1496 = vsub.s32 0, %v1495
        %v1497 = vadd.s32 %v1492, 1
        %vm1498 = vcmp.gt.s32.totalorder %v1497, 0
        %v1499 = vsel %vm1498, %v1497, 0
        %v1500 = vshrl.u32 %v1499, 5
        %v1501 = vand.u32 %v1499, 31
        %v1502 = vsub.s32 32, %v1501
        %v1503 = vshrl.u32 683565275, %v1502
        %v1504 = vshll.u32 683565275, %v1501
        %v1505 = vshrl.u32 2475754826, %v1502
        %v1506 = vor.u32 %v1504, %v1505
        %v1507 = vshll.u32 2475754826, %v1501
        %v1508 = vshrl.u32 2131351028, %v1502
        %v1509 = vor.u32 %v1507, %v1508
        %v1510 = vshll.u32 2131351028, %v1501
        %v1511 = vshrl.u32 2102212464, %v1502
        %v1512 = vor.u32 %v1510, %v1511
        %v1513 = vshll.u32 2102212464, %v1501
        %v1514 = vshrl.u32 920167782, %v1502
        %v1515 = vor.u32 %v1513, %v1514
        %v1516 = vshll.u32 920167782, %v1501
        %v1517 = vshrl.u32 1326507024, %v1502
        %v1518 = vor.u32 %v1516, %v1517
        %vm1519 = vcmp.lt.s32.totalorder %v1500, 1
        %vm1520 = vcmp.lt.s32.totalorder %v1500, 2
        %vm1521 = vcmp.lt.s32.totalorder %v1500, 3
        %vm1522 = vcmp.lt.s32.totalorder %v1500, 4
        %v1523 = vsel %vm1519, %v1503, %v1506
        %v1524 = vsel %vm1522, %v1512, 2102212464
        %v1525 = vsel %vm1521, %v1509, %v1524
        %v1526 = vsel %vm1520, %v1523, %v1525
        %v1527 = vsel %vm1519, %v1506, %v1509
        %v1528 = vsel %vm1522, %v1515, 920167782
        %v1529 = vsel %vm1521, %v1512, %v1528
        %v1530 = vsel %vm1520, %v1527, %v1529
        %v1531 = vsel %vm1519, %v1509, %v1512
        %v1532 = vsel %vm1522, %v1518, 1326507024
        %v1533 = vsel %vm1521, %v1515, %v1532
        %v1534 = vsel %vm1520, %v1531, %v1533
        %v1535 = vshll.u32 %v1495, 8
        %v1536 = vand.u32 %v1535, 65535
        %v1537 = vshrl.u32 %v1535, 16
        %v1538 = vand.u32 %v1534, 65535
        %v1539 = vshrl.u32 %v1534, 16
        %v1540 = vmul.u32 %v1536, %v1538
        %v1541 = vmul.u32 %v1536, %v1539
        %v1542 = vmul.u32 %v1537, %v1538
        %v1543 = vmul.u32 %v1537, %v1539
        %v1544 = vshll.u32 %v1541, 16
        %v1545 = vshrl.u32 %v1541, 16
        %v1546 = vshll.u32 %v1542, 16
        %v1547 = vshrl.u32 %v1542, 16
        %vm1548 = vc.u32 %v1540, %v1544
        %v1549 = vsel %vm1548, 1, 0
        %v1550 = vadd.s32 %v1540, %v1544
        %v1551 = vadd.s32 %v1543, %v1549
        %vm1552 = vc.u32 %v1550, %v1546
        %v1553 = vsel %vm1552, 1, 0
        %v1554 = vadd.s32 %v1550, %v1546
        %v1555 = vadd.s32 %v1551, %v1553
        %v1556 = vadd.s32 %v1555, %v1545
        %v1557 = vadd.s32 %v1556, %v1547
        %v1558 = vand.u32 %v1535, 65535
        %v1559 = vshrl.u32 %v1535, 16
        %v1560 = vand.u32 %v1530, 65535
        %v1561 = vshrl.u32 %v1530, 16
        %v1562 = vmul.u32 %v1558, %v1560
        %v1563 = vmul.u32 %v1558, %v1561
        %v1564 = vmul.u32 %v1559, %v1560
        %v1565 = vmul.u32 %v1559, %v1561
        %v1566 = vshll.u32 %v1563, 16
        %v1567 = vshrl.u32 %v1563, 16
        %v1568 = vshll.u32 %v1564, 16
        %v1569 = vshrl.u32 %v1564, 16
        %vm1570 = vc.u32 %v1562, %v1566
        %v1571 = vsel %vm1570, 1, 0
        %v1572 = vadd.s32 %v1562, %v1566
        %v1573 = vadd.s32 %v1565, %v1571
        %vm1574 = vc.u32 %v1572, %v1568
        %v1575 = vsel %vm1574, 1, 0
        %v1576 = vadd.s32 %v1572, %v1568
        %v1577 = vadd.s32 %v1573, %v1575
        %v1578 = vadd.s32 %v1577, %v1567
        %v1579 = vadd.s32 %v1578, %v1569
        %v1580 = vmul.u32 %v1535, %v1526
        %v1581 = vadd.s32 %v1557, %v1576
        %vm1582 = vc.u32 %v1557, %v1576
        %v1583 = vadd.s32 %v1579, 1
        %v1584 = vsel %vm1582, %v1583, %v1579
        %v1585 = vadd.s32 %v1580, %v1584
        %v1586 = vadd.s32 %v1585, 536870912
        %v1587 = vshrl.u32 %v1586, 30
        %v1588 = vshll.u32 %v1587, 30
        %v1589 = vsub.s32 %v1585, %v1588
        %vm1590 = vcmp.lt.s32.totalorder %v1589, 0
        %v1591 = vsub.s32 0, %v1589
        %v1592 = vsel %vm1590, %v1591, %v1589
        %v1593 = vclz %v1592
        %v1594 = vsub.s32 %v1593, 2
        %vm1595 = vcmp.gt.s32.totalorder 0, %v1594
        %v1596 = vsel %vm1595, 0, %v1594
        %v1597 = vsub.s32 32, %v1596
        %v1598 = vshll.u32 %v1589, %v1596
        %v1599 = vshrl.u32 %v1581, %v1597
        %v1600 = vor.u32 %v1598, %v1599
        %v1601 = vsub.s32 4294967266, %v1596
        %v1602 = vadd.s32 %v1601, 127
        %v1603 = vshll.u32 %v1602, 23
        %v1604 = vor.u32 4788187, %v1603
        %v1605 = vand.u32 2147483647, %v1604
        %v1607 = vcvt.s32.f32 %v1600
        %v1608 = vmul.f32 %v1607, %v1605
        %v1609 = vxor.u32 %v1608, 2147483648
        %v1610 = vsel %vm1489, %v1609, %v1608
        %v1611 = vsub.s32 4, %v1587
        %v1612 = vsel %vm1489, %v1611, %v1587
        %v1613 = vsel %vm1488, %v364, %v1610
        %v1614 = vsel %vm1488, 0, %v1612
        %v1615 = vmul.f32 %v1613, %v1613
        %v1616 = vmul.f32 %v1615, -0.001358992
        %v1617 = vadd.f32 %v1616, 0.041655596
        %v1618 = vmul.f32 %v1615, %v1617
        %v1619 = vadd.f32 %v1618, -0.4999988
        %v1620 = vmul.f32 %v1615, %v1619
        %v1621 = vadd.f32 1.0, %v1620
        %v1622 = vmul.f32 %v1613, %v1613
        %v1623 = vmul.f32 %v1622, -0.00019511016
        %v1624 = vadd.f32 %v1623, 0.008332121
        %v1625 = vmul.f32 %v1622, %v1624
        %v1626 = vadd.f32 %v1625, -0.16666654
        %v1627 = vmul.f32 %v1622, %v1626
        %v1628 = vadd.f32 %v1627, 1.0
        %v1629 = vmul.f32 %v1628, %v1613
        %vm1630 = vweird.f32 %v364
        %v1631 = vadd.s32 %v1614, 3
        %v1632 = vand.u32 %v1631, 3
        %vm1633 = vcmp.lt.s32.totalorder %v1632, 2
        %vm1634 = vcmp.eq.s32.totalorder %v1632, 0
        %v1635 = vxor.u32 %v1629, 2147483648
        %v1636 = vsel %vm1634, %v1621, %v1635
        %vm1637 = vcmp.eq.s32.totalorder %v1632, 2
        %v1638 = vxor.u32 %v1621, 2147483648
        %v1639 = vsel %vm1637, %v1638, %v1629
        %v1640 = vsel %vm1633, %v1636, %v1639
        %v1641 = vsel %vm1630, nan, %v1640
        %v1642 = vand.u32 2147483647, %v302
        %vm1643 = vcmp.le.f32.partialorder %v1642, 0.7853982
        %vm1644 = vcmp.lt.s32.totalorder %v302, 0
        %v1645 = vand.u32 %v302, 2139095040
        %v1646 = vshrl.u32 %v1645, 23
        %v1647 = vsub.s32 %v1646, 127
        %v1648 = vand.u32 2147483647, %v302
        %v1649 = vand.u32 %v1648, 8388607
        %v1650 = vor.u32 %v1649, 8388608
        %v1651 = vsub.s32 0, %v1650
        %v1652 = vadd.s32 %v1647, 1
        %vm1653 = vcmp.gt.s32.totalorder %v1652, 0
        %v1654 = vsel %vm1653, %v1652, 0
        %v1655 = vshrl.u32 %v1654, 5
        %v1656 = vand.u32 %v1654, 31
        %v1657 = vsub.s32 32, %v1656
        %v1658 = vshrl.u32 683565275, %v1657
        %v1659 = vshll.u32 683565275, %v1656
        %v1660 = vshrl.u32 2475754826, %v1657
        %v1661 = vor.u32 %v1659, %v1660
        %v1662 = vshll.u32 2475754826, %v1656
        %v1663 = vshrl.u32 2131351028, %v1657
        %v1664 = vor.u32 %v1662, %v1663
        %v1665 = vshll.u32 2131351028, %v1656
        %v1666 = vshrl.u32 2102212464, %v1657
        %v1667 = vor.u32 %v1665, %v1666
        %v1668 = vshll.u32 2102212464, %v1656
        %v1669 = vshrl.u32 920167782, %v1657
        %v1670 = vor.u32 %v1668, %v1669
        %v1671 = vshll.u32 920167782, %v1656
        %v1672 = vshrl.u32 1326507024, %v1657
        %v1673 = vor.u32 %v1671, %v1672
        %vm1674 = vcmp.lt.s32.totalorder %v1655, 1
        %vm1675 = vcmp.lt.s32.totalorder %v1655, 2
        %vm1676 = vcmp.lt.s32.totalorder %v1655, 3
        %vm1677 = vcmp.lt.s32.totalorder %v1655, 4
        %v1678 = vsel %vm1674, %v1658, %v1661
        %v1679 = vsel %vm1677, %v1667, 2102212464
        %v1680 = vsel %vm1676, %v1664, %v1679
        %v1681 = vsel %vm1675, %v1678, %v1680
        %v1682 = vsel %vm1674, %v1661, %v1664
        %v1683 = vsel %vm1677, %v1670, 920167782
        %v1684 = vsel %vm1676, %v1667, %v1683
        %v1685 = vsel %vm1675, %v1682, %v1684
        %v1686 = vsel %vm1674, %v1664, %v1667
        %v1687 = vsel %vm1677, %v1673, 1326507024
        %v1688 = vsel %vm1676, %v1670, %v1687
        %v1689 = vsel %vm1675, %v1686, %v1688
        %v1690 = vshll.u32 %v1650, 8
        %v1691 = vand.u32 %v1690, 65535
        %v1692 = vshrl.u32 %v1690, 16
        %v1693 = vand.u32 %v1689, 65535
        %v1694 = vshrl.u32 %v1689, 16
        %v1695 = vmul.u32 %v1691, %v1693
        %v1696 = vmul.u32 %v1691, %v1694
        %v1697 = vmul.u32 %v1692, %v1693
        %v1698 = vmul.u32 %v1692, %v1694
        %v1699 = vshll.u32 %v1696, 16
        %v1700 = vshrl.u32 %v1696, 16
        %v1701 = vshll.u32 %v1697, 16
        %v1702 = vshrl.u32 %v1697, 16
        %vm1703 = vc.u32 %v1695, %v1699
        %v1704 = vsel %vm1703, 1, 0
        %v1705 = vadd.s32 %v1695, %v1699
        %v1706 = vadd.s32 %v1698, %v1704
        %vm1707 = vc.u32 %v1705, %v1701
        %v1708 = vsel %vm1707, 1, 0
        %v1709 = vadd.s32 %v1705, %v1701
        %v1710 = vadd.s32 %v1706, %v1708
        %v1711 = vadd.s32 %v1710, %v1700
        %v1712 = vadd.s32 %v1711, %v1702
        %v1713 = vand.u32 %v1690, 65535
        %v1714 = vshrl.u32 %v1690, 16
        %v1715 = vand.u32 %v1685, 65535
        %v1716 = vshrl.u32 %v1685, 16
        %v1717 = vmul.u32 %v1713, %v1715
        %v1718 = vmul.u32 %v1713, %v1716
        %v1719 = vmul.u32 %v1714, %v1715
        %v1720 = vmul.u32 %v1714, %v1716
        %v1721 = vshll.u32 %v1718, 16
        %v1722 = vshrl.u32 %v1718, 16
        %v1723 = vshll.u32 %v1719, 16
        %v1724 = vshrl.u32 %v1719, 16
        %vm1725 = vc.u32 %v1717, %v1721
        %v1726 = vsel %vm1725, 1, 0
        %v1727 = vadd.s32 %v1717, %v1721
        %v1728 = vadd.s32 %v1720, %v1726
        %vm1729 = vc.u32 %v1727, %v1723
        %v1730 = vsel %vm1729, 1, 0
        %v1731 = vadd.s32 %v1727, %v1723
        %v1732 = vadd.s32 %v1728, %v1730
        %v1733 = vadd.s32 %v1732, %v1722
        %v1734 = vadd.s32 %v1733, %v1724
        %v1735 = vmul.u32 %v1690, %v1681
        %v1736 = vadd.s32 %v1712, %v1731
        %vm1737 = vc.u32 %v1712, %v1731
        %v1738 = vadd.s32 %v1734, 1
        %v1739 = vsel %vm1737, %v1738, %v1734
        %v1740 = vadd.s32 %v1735, %v1739
        %v1741 = vadd.s32 %v1740, 536870912
        %v1742 = vshrl.u32 %v1741, 30
        %v1743 = vshll.u32 %v1742, 30
        %v1744 = vsub.s32 %v1740, %v1743
        %vm1745 = vcmp.lt.s32.totalorder %v1744, 0
        %v1746 = vsub.s32 0, %v1744
        %v1747 = vsel %vm1745, %v1746, %v1744
        %v1748 = vclz %v1747
        %v1749 = vsub.s32 %v1748, 2
        %vm1750 = vcmp.gt.s32.totalorder 0, %v1749
        %v1751 = vsel %vm1750, 0, %v1749
        %v1752 = vsub.s32 32, %v1751
        %v1753 = vshll.u32 %v1744, %v1751
        %v1754 = vshrl.u32 %v1736, %v1752
        %v1755 = vor.u32 %v1753, %v1754
        %v1756 = vsub.s32 4294967266, %v1751
        %v1757 = vadd.s32 %v1756, 127
        %v1758 = vshll.u32 %v1757, 23
        %v1759 = vor.u32 4788187, %v1758
        %v1760 = vand.u32 2147483647, %v1759
        %v1762 = vcvt.s32.f32 %v1755
        %v1763 = vmul.f32 %v1762, %v1760
        %v1764 = vxor.u32 %v1763, 2147483648
        %v1765 = vsel %vm1644, %v1764, %v1763
        %v1766 = vsub.s32 4, %v1742
        %v1767 = vsel %vm1644, %v1766, %v1742
        %v1768 = vsel %vm1643, %v302, %v1765
        %v1769 = vsel %vm1643, 0, %v1767
        %v1770 = vmul.f32 %v1768, %v1768
        %v1771 = vmul.f32 %v1770, -0.001358992
        %v1772 = vadd.f32 %v1771, 0.041655596
        %v1773 = vmul.f32 %v1770, %v1772
        %v1774 = vadd.f32 %v1773, -0.4999988
        %v1775 = vmul.f32 %v1770, %v1774
        %v1776 = vadd.f32 1.0, %v1775
        %v1777 = vmul.f32 %v1768, %v1768
        %v1778 = vmul.f32 %v1777, -0.00019511016
        %v1779 = vadd.f32 %v1778, 0.008332121
        %v1780 = vmul.f32 %v1777, %v1779
        %v1781 = vadd.f32 %v1780, -0.16666654
        %v1782 = vmul.f32 %v1777, %v1781
        %v1783 = vadd.f32 %v1782, 1.0
        %v1784 = vmul.f32 %v1783, %v1768
        %vm1785 = vweird.f32 %v302
        %v1786 = vadd.s32 %v1769, 3
        %v1787 = vand.u32 %v1786, 3
        %vm1788 = vcmp.lt.s32.totalorder %v1787, 2
        %vm1789 = vcmp.eq.s32.totalorder %v1787, 0
        %v1790 = vxor.u32 %v1784, 2147483648
        %v1791 = vsel %vm1789, %v1776, %v1790
        %vm1792 = vcmp.eq.s32.totalorder %v1787, 2
        %v1793 = vxor.u32 %v1776, 2147483648
        %v1794 = vsel %vm1792, %v1793, %v1784
        %v1795 = vsel %vm1788, %v1791, %v1794
        %v1796 = vsel %vm1785, nan, %v1795
        %v1797 = vand.u32 2147483647, %v367
        %vm1798 = vcmp.le.f32.partialorder %v1797, 0.7853982
        %vm1799 = vcmp.lt.s32.totalorder %v367, 0
        %v1800 = vand.u32 %v367, 2139095040
        %v1801 = vshrl.u32 %v1800, 23
        %v1802 = vsub.s32 %v1801, 127
        %v1803 = vand.u32 2147483647, %v367
        %v1804 = vand.u32 %v1803, 8388607
        %v1805 = vor.u32 %v1804, 8388608
        %v1806 = vsub.s32 0, %v1805
        %v1807 = vadd.s32 %v1802, 1
        %vm1808 = vcmp.gt.s32.totalorder %v1807, 0
        %v1809 = vsel %vm1808, %v1807, 0
        %v1810 = vshrl.u32 %v1809, 5
        %v1811 = vand.u32 %v1809, 31
        %v1812 = vsub.s32 32, %v1811
        %v1813 = vshrl.u32 683565275, %v1812
        %v1814 = vshll.u32 683565275, %v1811
        %v1815 = vshrl.u32 2475754826, %v1812
        %v1816 = vor.u32 %v1814, %v1815
        %v1817 = vshll.u32 2475754826, %v1811
        %v1818 = vshrl.u32 2131351028, %v1812
        %v1819 = vor.u32 %v1817, %v1818
        %v1820 = vshll.u32 2131351028, %v1811
        %v1821 = vshrl.u32 2102212464, %v1812
        %v1822 = vor.u32 %v1820, %v1821
        %v1823 = vshll.u32 2102212464, %v1811
        %v1824 = vshrl.u32 920167782, %v1812
        %v1825 = vor.u32 %v1823, %v1824
        %v1826 = vshll.u32 920167782, %v1811
        %v1827 = vshrl.u32 1326507024, %v1812
        %v1828 = vor.u32 %v1826, %v1827
        %vm1829 = vcmp.lt.s32.totalorder %v1810, 1
        %vm1830 = vcmp.lt.s32.totalorder %v1810, 2
        %vm1831 = vcmp.lt.s32.totalorder %v1810, 3
        %vm1832 = vcmp.lt.s32.totalorder %v1810, 4
        %v1833 = vsel %vm1829, %v1813, %v1816
        %v1834 = vsel %vm1832, %v1822, 2102212464
        %v1835 = vsel %vm1831, %v1819, %v1834
        %v1836 = vsel %vm1830, %v1833, %v1835
        %v1837 = vsel %vm1829, %v1816, %v1819
        %v1838 = vsel %vm1832, %v1825, 920167782
        %v1839 = vsel %vm1831, %v1822, %v1838
        %v1840 = vsel %vm1830, %v1837, %v1839
        %v1841 = vsel %vm1829, %v1819, %v1822
        %v1842 = vsel %vm1832, %v1828, 1326507024
        %v1843 = vsel %vm1831, %v1825, %v1842
        %v1844 = vsel %vm1830, %v1841, %v1843
        %v1845 = vshll.u32 %v1805, 8
        %v1846 = vand.u32 %v1845, 65535
        %v1847 = vshrl.u32 %v1845, 16
        %v1848 = vand.u32 %v1844, 65535
        %v1849 = vshrl.u32 %v1844, 16
        %v1850 = vmul.u32 %v1846, %v1848
        %v1851 = vmul.u32 %v1846, %v1849
        %v1852 = vmul.u32 %v1847, %v1848
        %v1853 = vmul.u32 %v1847, %v1849
        %v1854 = vshll.u32 %v1851, 16
        %v1855 = vshrl.u32 %v1851, 16
        %v1856 = vshll.u32 %v1852, 16
        %v1857 = vshrl.u32 %v1852, 16
        %vm1858 = vc.u32 %v1850, %v1854
        %v1859 = vsel %vm1858, 1, 0
        %v1860 = vadd.s32 %v1850, %v1854
        %v1861 = vadd.s32 %v1853, %v1859
        %vm1862 = vc.u32 %v1860, %v1856
        %v1863 = vsel %vm1862, 1, 0
        %v1864 = vadd.s32 %v1860, %v1856
        %v1865 = vadd.s32 %v1861, %v1863
        %v1866 = vadd.s32 %v1865, %v1855
        %v1867 = vadd.s32 %v1866, %v1857
        %v1868 = vand.u32 %v1845, 65535
        %v1869 = vshrl.u32 %v1845, 16
        %v1870 = vand.u32 %v1840, 65535
        %v1871 = vshrl.u32 %v1840, 16
        %v1872 = vmul.u32 %v1868, %v1870
        %v1873 = vmul.u32 %v1868, %v1871
        %v1874 = vmul.u32 %v1869, %v1870
        %v1875 = vmul.u32 %v1869, %v1871
        %v1876 = vshll.u32 %v1873, 16
        %v1877 = vshrl.u32 %v1873, 16
        %v1878 = vshll.u32 %v1874, 16
        %v1879 = vshrl.u32 %v1874, 16
        %vm1880 = vc.u32 %v1872, %v1876
        %v1881 = vsel %vm1880, 1, 0
        %v1882 = vadd.s32 %v1872, %v1876
        %v1883 = vadd.s32 %v1875, %v1881
        %vm1884 = vc.u32 %v1882, %v1878
        %v1885 = vsel %vm1884, 1, 0
        %v1886 = vadd.s32 %v1882, %v1878
        %v1887 = vadd.s32 %v1883, %v1885
        %v1888 = vadd.s32 %v1887, %v1877
        %v1889 = vadd.s32 %v1888, %v1879
        %v1890 = vmul.u32 %v1845, %v1836
        %v1891 = vadd.s32 %v1867, %v1886
        %vm1892 = vc.u32 %v1867, %v1886
        %v1893 = vadd.s32 %v1889, 1
        %v1894 = vsel %vm1892, %v1893, %v1889
        %v1895 = vadd.s32 %v1890, %v1894
        %v1896 = vadd.s32 %v1895, 536870912
        %v1897 = vshrl.u32 %v1896, 30
        %v1898 = vshll.u32 %v1897, 30
        %v1899 = vsub.s32 %v1895, %v1898
        %vm1900 = vcmp.lt.s32.totalorder %v1899, 0
        %v1901 = vsub.s32 0, %v1899
        %v1902 = vsel %vm1900, %v1901, %v1899
        %v1903 = vclz %v1902
        %v1904 = vsub.s32 %v1903, 2
        %vm1905 = vcmp.gt.s32.totalorder 0, %v1904
        %v1906 = vsel %vm1905, 0, %v1904
        %v1907 = vsub.s32 32, %v1906
        %v1908 = vshll.u32 %v1899, %v1906
        %v1909 = vshrl.u32 %v1891, %v1907
        %v1910 = vor.u32 %v1908, %v1909
        %v1911 = vsub.s32 4294967266, %v1906
        %v1912 = vadd.s32 %v1911, 127
        %v1913 = vshll.u32 %v1912, 23
        %v1914 = vor.u32 4788187, %v1913
        %v1915 = vand.u32 2147483647, %v1914
        %v1917 = vcvt.s32.f32 %v1910
        %v1918 = vmul.f32 %v1917, %v1915
        %v1919 = vxor.u32 %v1918, 2147483648
        %v1920 = vsel %vm1799, %v1919, %v1918
        %v1921 = vsub.s32 4, %v1897
        %v1922 = vsel %vm1799, %v1921, %v1897
        %v1923 = vsel %vm1798, %v367, %v1920
        %v1924 = vsel %vm1798, 0, %v1922
        %v1925 = vmul.f32 %v1923, %v1923
        %v1926 = vmul.f32 %v1925, -0.001358992
        %v1927 = vadd.f32 %v1926, 0.041655596
        %v1928 = vmul.f32 %v1925, %v1927
        %v1929 = vadd.f32 %v1928, -0.4999988
        %v1930 = vmul.f32 %v1925, %v1929
        %v1931 = vadd.f32 1.0, %v1930
        %v1932 = vmul.f32 %v1923, %v1923
        %v1933 = vmul.f32 %v1932, -0.00019511016
        %v1934 = vadd.f32 %v1933, 0.008332121
        %v1935 = vmul.f32 %v1932, %v1934
        %v1936 = vadd.f32 %v1935, -0.16666654
        %v1937 = vmul.f32 %v1932, %v1936
        %v1938 = vadd.f32 %v1937, 1.0
        %v1939 = vmul.f32 %v1938, %v1923
        %vm1940 = vweird.f32 %v367
        %v1941 = vadd.s32 %v1924, 3
        %v1942 = vand.u32 %v1941, 3
        %vm1943 = vcmp.lt.s32.totalorder %v1942, 2
        %vm1944 = vcmp.eq.s32.totalorder %v1942, 0
        %v1945 = vxor.u32 %v1939, 2147483648
        %v1946 = vsel %vm1944, %v1931, %v1945
        %vm1947 = vcmp.eq.s32.totalorder %v1942, 2
        %v1948 = vxor.u32 %v1931, 2147483648
        %v1949 = vsel %vm1947, %v1948, %v1939
        %v1950 = vsel %vm1943, %v1946, %v1949
        %v1951 = vsel %vm1940, nan, %v1950
        %v1952 = vand.u32 2147483647, %v305
        %vm1953 = vcmp.le.f32.partialorder %v1952, 0.7853982
        %vm1954 = vcmp.lt.s32.totalorder %v305, 0
        %v1955 = vand.u32 %v305, 2139095040
        %v1956 = vshrl.u32 %v1955, 23
        %v1957 = vsub.s32 %v1956, 127
        %v1958 = vand.u32 2147483647, %v305
        %v1959 = vand.u32 %v1958, 8388607
        %v1960 = vor.u32 %v1959, 8388608
        %v1961 = vsub.s32 0, %v1960
        %v1962 = vadd.s32 %v1957, 1
        %vm1963 = vcmp.gt.s32.totalorder %v1962, 0
        %v1964 = vsel %vm1963, %v1962, 0
        %v1965 = vshrl.u32 %v1964, 5
        %v1966 = vand.u32 %v1964, 31
        %v1967 = vsub.s32 32, %v1966
        %v1968 = vshrl.u32 683565275, %v1967
        %v1969 = vshll.u32 683565275, %v1966
        %v1970 = vshrl.u32 2475754826, %v1967
        %v1971 = vor.u32 %v1969, %v1970
        %v1972 = vshll.u32 2475754826, %v1966
        %v1973 = vshrl.u32 2131351028, %v1967
        %v1974 = vor.u32 %v1972, %v1973
        %v1975 = vshll.u32 2131351028, %v1966
        %v1976 = vshrl.u32 2102212464, %v1967
        %v1977 = vor.u32 %v1975, %v1976
        %v1978 = vshll.u32 2102212464, %v1966
        %v1979 = vshrl.u32 920167782, %v1967
        %v1980 = vor.u32 %v1978, %v1979
        %v1981 = vshll.u32 920167782, %v1966
        %v1982 = vshrl.u32 1326507024, %v1967
        %v1983 = vor.u32 %v1981, %v1982
        %vm1984 = vcmp.lt.s32.totalorder %v1965, 1
        %vm1985 = vcmp.lt.s32.totalorder %v1965, 2
        %vm1986 = vcmp.lt.s32.totalorder %v1965, 3
        %vm1987 = vcmp.lt.s32.totalorder %v1965, 4
        %v1988 = vsel %vm1984, %v1968, %v1971
        %v1989 = vsel %vm1987, %v1977, 2102212464
        %v1990 = vsel %vm1986, %v1974, %v1989
        %v1991 = vsel %vm1985, %v1988, %v1990
        %v1992 = vsel %vm1984, %v1971, %v1974
        %v1993 = vsel %vm1987, %v1980, 920167782
        %v1994 = vsel %vm1986, %v1977, %v1993
        %v1995 = vsel %vm1985, %v1992, %v1994
        %v1996 = vsel %vm1984, %v1974, %v1977
        %v1997 = vsel %vm1987, %v1983, 1326507024
        %v1998 = vsel %vm1986, %v1980, %v1997
        %v1999 = vsel %vm1985, %v1996, %v1998
        %v2000 = vshll.u32 %v1960, 8
        %v2001 = vand.u32 %v2000, 65535
        %v2002 = vshrl.u32 %v2000, 16
        %v2003 = vand.u32 %v1999, 65535
        %v2004 = vshrl.u32 %v1999, 16
        %v2005 = vmul.u32 %v2001, %v2003
        %v2006 = vmul.u32 %v2001, %v2004
        %v2007 = vmul.u32 %v2002, %v2003
        %v2008 = vmul.u32 %v2002, %v2004
        %v2009 = vshll.u32 %v2006, 16
        %v2010 = vshrl.u32 %v2006, 16
        %v2011 = vshll.u32 %v2007, 16
        %v2012 = vshrl.u32 %v2007, 16
        %vm2013 = vc.u32 %v2005, %v2009
        %v2014 = vsel %vm2013, 1, 0
        %v2015 = vadd.s32 %v2005, %v2009
        %v2016 = vadd.s32 %v2008, %v2014
        %vm2017 = vc.u32 %v2015, %v2011
        %v2018 = vsel %vm2017, 1, 0
        %v2019 = vadd.s32 %v2015, %v2011
        %v2020 = vadd.s32 %v2016, %v2018
        %v2021 = vadd.s32 %v2020, %v2010
        %v2022 = vadd.s32 %v2021, %v2012
        %v2023 = vand.u32 %v2000, 65535
        %v2024 = vshrl.u32 %v2000, 16
        %v2025 = vand.u32 %v1995, 65535
        %v2026 = vshrl.u32 %v1995, 16
        %v2027 = vmul.u32 %v2023, %v2025
        %v2028 = vmul.u32 %v2023, %v2026
        %v2029 = vmul.u32 %v2024, %v2025
        %v2030 = vmul.u32 %v2024, %v2026
        %v2031 = vshll.u32 %v2028, 16
        %v2032 = vshrl.u32 %v2028, 16
        %v2033 = vshll.u32 %v2029, 16
        %v2034 = vshrl.u32 %v2029, 16
        %vm2035 = vc.u32 %v2027, %v2031
        %v2036 = vsel %vm2035, 1, 0
        %v2037 = vadd.s32 %v2027, %v2031
        %v2038 = vadd.s32 %v2030, %v2036
        %vm2039 = vc.u32 %v2037, %v2033
        %v2040 = vsel %vm2039, 1, 0
        %v2041 = vadd.s32 %v2037, %v2033
        %v2042 = vadd.s32 %v2038, %v2040
        %v2043 = vadd.s32 %v2042, %v2032
        %v2044 = vadd.s32 %v2043, %v2034
        %v2045 = vmul.u32 %v2000, %v1991
        %v2046 = vadd.s32 %v2022, %v2041
        %vm2047 = vc.u32 %v2022, %v2041
        %v2048 = vadd.s32 %v2044, 1
        %v2049 = vsel %vm2047, %v2048, %v2044
        %v2050 = vadd.s32 %v2045, %v2049
        %v2051 = vadd.s32 %v2050, 536870912
        %v2052 = vshrl.u32 %v2051, 30
        %v2053 = vshll.u32 %v2052, 30
        %v2054 = vsub.s32 %v2050, %v2053
        %vm2055 = vcmp.lt.s32.totalorder %v2054, 0
        %v2056 = vsub.s32 0, %v2054
        %v2057 = vsel %vm2055, %v2056, %v2054
        %v2058 = vclz %v2057
        %v2059 = vsub.s32 %v2058, 2
        %vm2060 = vcmp.gt.s32.totalorder 0, %v2059
        %v2061 = vsel %vm2060, 0, %v2059
        %v2062 = vsub.s32 32, %v2061
        %v2063 = vshll.u32 %v2054, %v2061
        %v2064 = vshrl.u32 %v2046, %v2062
        %v2065 = vor.u32 %v2063, %v2064
        %v2066 = vsub.s32 4294967266, %v2061
        %v2067 = vadd.s32 %v2066, 127
        %v2068 = vshll.u32 %v2067, 23
        %v2069 = vor.u32 4788187, %v2068
        %v2070 = vand.u32 2147483647, %v2069
        %v2072 = vcvt.s32.f32 %v2065
        %v2073 = vmul.f32 %v2072, %v2070
        %v2074 = vxor.u32 %v2073, 2147483648
        %v2075 = vsel %vm1954, %v2074, %v2073
        %v2076 = vsub.s32 4, %v2052
        %v2077 = vsel %vm1954, %v2076, %v2052
        %v2078 = vsel %vm1953, %v305, %v2075
        %v2079 = vsel %vm1953, 0, %v2077
        %v2080 = vmul.f32 %v2078, %v2078
        %v2081 = vmul.f32 %v2080, -0.001358992
        %v2082 = vadd.f32 %v2081, 0.041655596
        %v2083 = vmul.f32 %v2080, %v2082
        %v2084 = vadd.f32 %v2083, -0.4999988
        %v2085 = vmul.f32 %v2080, %v2084
        %v2086 = vadd.f32 1.0, %v2085
        %v2087 = vmul.f32 %v2078, %v2078
        %v2088 = vmul.f32 %v2087, -0.00019511016
        %v2089 = vadd.f32 %v2088, 0.008332121
        %v2090 = vmul.f32 %v2087, %v2089
        %v2091 = vadd.f32 %v2090, -0.16666654
        %v2092 = vmul.f32 %v2087, %v2091
        %v2093 = vadd.f32 %v2092, 1.0
        %v2094 = vmul.f32 %v2093, %v2078
        %vm2095 = vweird.f32 %v305
        %v2096 = vadd.s32 %v2079, 3
        %v2097 = vand.u32 %v2096, 3
        %vm2098 = vcmp.lt.s32.totalorder %v2097, 2
        %vm2099 = vcmp.eq.s32.totalorder %v2097, 0
        %v2100 = vxor.u32 %v2094, 2147483648
        %v2101 = vsel %vm2099, %v2086, %v2100
        %vm2102 = vcmp.eq.s32.totalorder %v2097, 2
        %v2103 = vxor.u32 %v2086, 2147483648
        %v2104 = vsel %vm2102, %v2103, %v2094
        %v2105 = vsel %vm2098, %v2101, %v2104
        %v2106 = vsel %vm2095, nan, %v2105
        %v2107 = vand.u32 2147483647, %v370
        %vm2108 = vcmp.le.f32.partialorder %v2107, 0.7853982
        %vm2109 = vcmp.lt.s32.totalorder %v370, 0
        %v2110 = vand.u32 %v370, 2139095040
        %v2111 = vshrl.u32 %v2110, 23
        %v2112 = vsub.s32 %v2111, 127
        %v2113 = vand.u32 2147483647, %v370
        %v2114 = vand.u32 %v2113, 8388607
        %v2115 = vor.u32 %v2114, 8388608
        %v2116 = vsub.s32 0, %v2115
        %v2117 = vadd.s32 %v2112, 1
        %vm2118 = vcmp.gt.s32.totalorder %v2117, 0
        %v2119 = vsel %vm2118, %v2117, 0
        %v2120 = vshrl.u32 %v2119, 5
        %v2121 = vand.u32 %v2119, 31
        %v2122 = vsub.s32 32, %v2121
        %v2123 = vshrl.u32 683565275, %v2122
        %v2124 = vshll.u32 683565275, %v2121
        %v2125 = vshrl.u32 2475754826, %v2122
        %v2126 = vor.u32 %v2124, %v2125
        %v2127 = vshll.u32 2475754826, %v2121
        %v2128 = vshrl.u32 2131351028, %v2122
        %v2129 = vor.u32 %v2127, %v2128
        %v2130 = vshll.u32 2131351028, %v2121
        %v2131 = vshrl.u32 2102212464, %v2122
        %v2132 = vor.u32 %v2130, %v2131
        %v2133 = vshll.u32 2102212464, %v2121
        %v2134 = vshrl.u32 920167782, %v2122
        %v2135 = vor.u32 %v2133, %v2134
        %v2136 = vshll.u32 920167782, %v2121
        %v2137 = vshrl.u32 1326507024, %v2122
        %v2138 = vor.u32 %v2136, %v2137
        %vm2139 = vcmp.lt.s32.totalorder %v2120, 1
        %vm2140 = vcmp.lt.s32.totalorder %v2120, 2
        %vm2141 = vcmp.lt.s32.totalorder %v2120, 3
        %vm2142 = vcmp.lt.s32.totalorder %v2120, 4
        %v2143 = vsel %vm2139, %v2123, %v2126
        %v2144 = vsel %vm2142, %v2132, 2102212464
        %v2145 = vsel %vm2141, %v2129, %v2144
        %v2146 = vsel %vm2140, %v2143, %v2145
        %v2147 = vsel %vm2139, %v2126, %v2129
        %v2148 = vsel %vm2142, %v2135, 920167782
        %v2149 = vsel %vm2141, %v2132, %v2148
        %v2150 = vsel %vm2140, %v2147, %v2149
        %v2151 = vsel %vm2139, %v2129, %v2132
        %v2152 = vsel %vm2142, %v2138, 1326507024
        %v2153 = vsel %vm2141, %v2135, %v2152
        %v2154 = vsel %vm2140, %v2151, %v2153
        %v2155 = vshll.u32 %v2115, 8
        %v2156 = vand.u32 %v2155, 65535
        %v2157 = vshrl.u32 %v2155, 16
        %v2158 = vand.u32 %v2154, 65535
        %v2159 = vshrl.u32 %v2154, 16
        %v2160 = vmul.u32 %v2156, %v2158
        %v2161 = vmul.u32 %v2156, %v2159
        %v2162 = vmul.u32 %v2157, %v2158
        %v2163 = vmul.u32 %v2157, %v2159
        %v2164 = vshll.u32 %v2161, 16
        %v2165 = vshrl.u32 %v2161, 16
        %v2166 = vshll.u32 %v2162, 16
        %v2167 = vshrl.u32 %v2162, 16
        %vm2168 = vc.u32 %v2160, %v2164
        %v2169 = vsel %vm2168, 1, 0
        %v2170 = vadd.s32 %v2160, %v2164
        %v2171 = vadd.s32 %v2163, %v2169
        %vm2172 = vc.u32 %v2170, %v2166
        %v2173 = vsel %vm2172, 1, 0
        %v2174 = vadd.s32 %v2170, %v2166
        %v2175 = vadd.s32 %v2171, %v2173
        %v2176 = vadd.s32 %v2175, %v2165
        %v2177 = vadd.s32 %v2176, %v2167
        %v2178 = vand.u32 %v2155, 65535
        %v2179 = vshrl.u32 %v2155, 16
        %v2180 = vand.u32 %v2150, 65535
        %v2181 = vshrl.u32 %v2150, 16
        %v2182 = vmul.u32 %v2178, %v2180
        %v2183 = vmul.u32 %v2178, %v2181
        %v2184 = vmul.u32 %v2179, %v2180
        %v2185 = vmul.u32 %v2179, %v2181
        %v2186 = vshll.u32 %v2183, 16
        %v2187 = vshrl.u32 %v2183, 16
        %v2188 = vshll.u32 %v2184, 16
        %v2189 = vshrl.u32 %v2184, 16
        %vm2190 = vc.u32 %v2182, %v2186
        %v2191 = vsel %vm2190, 1, 0
        %v2192 = vadd.s32 %v2182, %v2186
        %v2193 = vadd.s32 %v2185, %v2191
        %vm2194 = vc.u32 %v2192, %v2188
        %v2195 = vsel %vm2194, 1, 0
        %v2196 = vadd.s32 %v2192, %v2188
        %v2197 = vadd.s32 %v2193, %v2195
        %v2198 = vadd.s32 %v2197, %v2187
        %v2199 = vadd.s32 %v2198, %v2189
        %v2200 = vmul.u32 %v2155, %v2146
        %v2201 = vadd.s32 %v2177, %v2196
        %vm2202 = vc.u32 %v2177, %v2196
        %v2203 = vadd.s32 %v2199, 1
        %v2204 = vsel %vm2202, %v2203, %v2199
        %v2205 = vadd.s32 %v2200, %v2204
        %v2206 = vadd.s32 %v2205, 536870912
        %v2207 = vshrl.u32 %v2206, 30
        %v2208 = vshll.u32 %v2207, 30
        %v2209 = vsub.s32 %v2205, %v2208
        %vm2210 = vcmp.lt.s32.totalorder %v2209, 0
        %v2211 = vsub.s32 0, %v2209
        %v2212 = vsel %vm2210, %v2211, %v2209
        %v2213 = vclz %v2212
        %v2214 = vsub.s32 %v2213, 2
        %vm2215 = vcmp.gt.s32.totalorder 0, %v2214
        %v2216 = vsel %vm2215, 0, %v2214
        %v2217 = vsub.s32 32, %v2216
        %v2218 = vshll.u32 %v2209, %v2216
        %v2219 = vshrl.u32 %v2201, %v2217
        %v2220 = vor.u32 %v2218, %v2219
        %v2221 = vsub.s32 4294967266, %v2216
        %v2222 = vadd.s32 %v2221, 127
        %v2223 = vshll.u32 %v2222, 23
        %v2224 = vor.u32 4788187, %v2223
        %v2225 = vand.u32 2147483647, %v2224
        %v2227 = vcvt.s32.f32 %v2220
        %v2228 = vmul.f32 %v2227, %v2225
        %v2229 = vxor.u32 %v2228, 2147483648
        %v2230 = vsel %vm2109, %v2229, %v2228
        %v2231 = vsub.s32 4, %v2207
        %v2232 = vsel %vm2109, %v2231, %v2207
        %v2233 = vsel %vm2108, %v370, %v2230
        %v2234 = vsel %vm2108, 0, %v2232
        %v2235 = vmul.f32 %v2233, %v2233
        %v2236 = vmul.f32 %v2235, -0.001358992
        %v2237 = vadd.f32 %v2236, 0.041655596
        %v2238 = vmul.f32 %v2235, %v2237
        %v2239 = vadd.f32 %v2238, -0.4999988
        %v2240 = vmul.f32 %v2235, %v2239
        %v2241 = vadd.f32 1.0, %v2240
        %v2242 = vmul.f32 %v2233, %v2233
        %v2243 = vmul.f32 %v2242, -0.00019511016
        %v2244 = vadd.f32 %v2243, 0.008332121
        %v2245 = vmul.f32 %v2242, %v2244
        %v2246 = vadd.f32 %v2245, -0.16666654
        %v2247 = vmul.f32 %v2242, %v2246
        %v2248 = vadd.f32 %v2247, 1.0
        %v2249 = vmul.f32 %v2248, %v2233
        %vm2250 = vweird.f32 %v370
        %v2251 = vadd.s32 %v2234, 3
        %v2252 = vand.u32 %v2251, 3
        %vm2253 = vcmp.lt.s32.totalorder %v2252, 2
        %vm2254 = vcmp.eq.s32.totalorder %v2252, 0
        %v2255 = vxor.u32 %v2249, 2147483648
        %v2256 = vsel %vm2254, %v2241, %v2255
        %vm2257 = vcmp.eq.s32.totalorder %v2252, 2
        %v2258 = vxor.u32 %v2241, 2147483648
        %v2259 = vsel %vm2257, %v2258, %v2249
        %v2260 = vsel %vm2253, %v2256, %v2259
        %v2261 = vsel %vm2250, nan, %v2260
        %v2262 = vand.u32 2147483647, %v308
        %vm2263 = vcmp.le.f32.partialorder %v2262, 0.7853982
        %vm2264 = vcmp.lt.s32.totalorder %v308, 0
        %v2265 = vand.u32 %v308, 2139095040
        %v2266 = vshrl.u32 %v2265, 23
        %v2267 = vsub.s32 %v2266, 127
        %v2268 = vand.u32 2147483647, %v308
        %v2269 = vand.u32 %v2268, 8388607
        %v2270 = vor.u32 %v2269, 8388608
        %v2271 = vsub.s32 0, %v2270
        %v2272 = vadd.s32 %v2267, 1
        %vm2273 = vcmp.gt.s32.totalorder %v2272, 0
        %v2274 = vsel %vm2273, %v2272, 0
        %v2275 = vshrl.u32 %v2274, 5
        %v2276 = vand.u32 %v2274, 31
        %v2277 = vsub.s32 32, %v2276
        %v2278 = vshrl.u32 683565275, %v2277
        %v2279 = vshll.u32 683565275, %v2276
        %v2280 = vshrl.u32 2475754826, %v2277
        %v2281 = vor.u32 %v2279, %v2280
        %v2282 = vshll.u32 2475754826, %v2276
        %v2283 = vshrl.u32 2131351028, %v2277
        %v2284 = vor.u32 %v2282, %v2283
        %v2285 = vshll.u32 2131351028, %v2276
        %v2286 = vshrl.u32 2102212464, %v2277
        %v2287 = vor.u32 %v2285, %v2286
        %v2288 = vshll.u32 2102212464, %v2276
        %v2289 = vshrl.u32 920167782, %v2277
        %v2290 = vor.u32 %v2288, %v2289
        %v2291 = vshll.u32 920167782, %v2276
        %v2292 = vshrl.u32 1326507024, %v2277
        %v2293 = vor.u32 %v2291, %v2292
        %vm2294 = vcmp.lt.s32.totalorder %v2275, 1
        %vm2295 = vcmp.lt.s32.totalorder %v2275, 2
        %vm2296 = vcmp.lt.s32.totalorder %v2275, 3
        %vm2297 = vcmp.lt.s32.totalorder %v2275, 4
        %v2298 = vsel %vm2294, %v2278, %v2281
        %v2299 = vsel %vm2297, %v2287, 2102212464
        %v2300 = vsel %vm2296, %v2284, %v2299
        %v2301 = vsel %vm2295, %v2298, %v2300
        %v2302 = vsel %vm2294, %v2281, %v2284
        %v2303 = vsel %vm2297, %v2290, 920167782
        %v2304 = vsel %vm2296, %v2287, %v2303
        %v2305 = vsel %vm2295, %v2302, %v2304
        %v2306 = vsel %vm2294, %v2284, %v2287
        %v2307 = vsel %vm2297, %v2293, 1326507024
        %v2308 = vsel %vm2296, %v2290, %v2307
        %v2309 = vsel %vm2295, %v2306, %v2308
        %v2310 = vshll.u32 %v2270, 8
        %v2311 = vand.u32 %v2310, 65535
        %v2312 = vshrl.u32 %v2310, 16
        %v2313 = vand.u32 %v2309, 65535
        %v2314 = vshrl.u32 %v2309, 16
        %v2315 = vmul.u32 %v2311, %v2313
        %v2316 = vmul.u32 %v2311, %v2314
        %v2317 = vmul.u32 %v2312, %v2313
        %v2318 = vmul.u32 %v2312, %v2314
        %v2319 = vshll.u32 %v2316, 16
        %v2320 = vshrl.u32 %v2316, 16
        %v2321 = vshll.u32 %v2317, 16
        %v2322 = vshrl.u32 %v2317, 16
        %vm2323 = vc.u32 %v2315, %v2319
        %v2324 = vsel %vm2323, 1, 0
        %v2325 = vadd.s32 %v2315, %v2319
        %v2326 = vadd.s32 %v2318, %v2324
        %vm2327 = vc.u32 %v2325, %v2321
        %v2328 = vsel %vm2327, 1, 0
        %v2329 = vadd.s32 %v2325, %v2321
        %v2330 = vadd.s32 %v2326, %v2328
        %v2331 = vadd.s32 %v2330, %v2320
        %v2332 = vadd.s32 %v2331, %v2322
        %v2333 = vand.u32 %v2310, 65535
        %v2334 = vshrl.u32 %v2310, 16
        %v2335 = vand.u32 %v2305, 65535
        %v2336 = vshrl.u32 %v2305, 16
        %v2337 = vmul.u32 %v2333, %v2335
        %v2338 = vmul.u32 %v2333, %v2336
        %v2339 = vmul.u32 %v2334, %v2335
        %v2340 = vmul.u32 %v2334, %v2336
        %v2341 = vshll.u32 %v2338, 16
        %v2342 = vshrl.u32 %v2338, 16
        %v2343 = vshll.u32 %v2339, 16
        %v2344 = vshrl.u32 %v2339, 16
        %vm2345 = vc.u32 %v2337, %v2341
        %v2346 = vsel %vm2345, 1, 0
        %v2347 = vadd.s32 %v2337, %v2341
        %v2348 = vadd.s32 %v2340, %v2346
        %vm2349 = vc.u32 %v2347, %v2343
        %v2350 = vsel %vm2349, 1, 0
        %v2351 = vadd.s32 %v2347, %v2343
        %v2352 = vadd.s32 %v2348, %v2350
        %v2353 = vadd.s32 %v2352, %v2342
        %v2354 = vadd.s32 %v2353, %v2344
        %v2355 = vmul.u32 %v2310, %v2301
        %v2356 = vadd.s32 %v2332, %v2351
        %vm2357 = vc.u32 %v2332, %v2351
        %v2358 = vadd.s32 %v2354, 1
        %v2359 = vsel %vm2357, %v2358, %v2354
        %v2360 = vadd.s32 %v2355, %v2359
        %v2361 = vadd.s32 %v2360, 536870912
        %v2362 = vshrl.u32 %v2361, 30
        %v2363 = vshll.u32 %v2362, 30
        %v2364 = vsub.s32 %v2360, %v2363
        %vm2365 = vcmp.lt.s32.totalorder %v2364, 0
        %v2366 = vsub.s32 0, %v2364
        %v2367 = vsel %vm2365, %v2366, %v2364
        %v2368 = vclz %v2367
        %v2369 = vsub.s32 %v2368, 2
        %vm2370 = vcmp.gt.s32.totalorder 0, %v2369
        %v2371 = vsel %vm2370, 0, %v2369
        %v2372 = vsub.s32 32, %v2371
        %v2373 = vshll.u32 %v2364, %v2371
        %v2374 = vshrl.u32 %v2356, %v2372
        %v2375 = vor.u32 %v2373, %v2374
        %v2376 = vsub.s32 4294967266, %v2371
        %v2377 = vadd.s32 %v2376, 127
        %v2378 = vshll.u32 %v2377, 23
        %v2379 = vor.u32 4788187, %v2378
        %v2380 = vand.u32 2147483647, %v2379
        %v2382 = vcvt.s32.f32 %v2375
        %v2383 = vmul.f32 %v2382, %v2380
        %v2384 = vxor.u32 %v2383, 2147483648
        %v2385 = vsel %vm2264, %v2384, %v2383
        %v2386 = vsub.s32 4, %v2362
        %v2387 = vsel %vm2264, %v2386, %v2362
        %v2388 = vsel %vm2263, %v308, %v2385
        %v2389 = vsel %vm2263, 0, %v2387
        %v2390 = vmul.f32 %v2388, %v2388
        %v2391 = vmul.f32 %v2390, -0.001358992
        %v2392 = vadd.f32 %v2391, 0.041655596
        %v2393 = vmul.f32 %v2390, %v2392
        %v2394 = vadd.f32 %v2393, -0.4999988
        %v2395 = vmul.f32 %v2390, %v2394
        %v2396 = vadd.f32 1.0, %v2395
        %v2397 = vmul.f32 %v2388, %v2388
        %v2398 = vmul.f32 %v2397, -0.00019511016
        %v2399 = vadd.f32 %v2398, 0.008332121
        %v2400 = vmul.f32 %v2397, %v2399
        %v2401 = vadd.f32 %v2400, -0.16666654
        %v2402 = vmul.f32 %v2397, %v2401
        %v2403 = vadd.f32 %v2402, 1.0
        %v2404 = vmul.f32 %v2403, %v2388
        %vm2405 = vweird.f32 %v308
        %v2406 = vadd.s32 %v2389, 3
        %v2407 = vand.u32 %v2406, 3
        %vm2408 = vcmp.lt.s32.totalorder %v2407, 2
        %vm2409 = vcmp.eq.s32.totalorder %v2407, 0
        %v2410 = vxor.u32 %v2404, 2147483648
        %v2411 = vsel %vm2409, %v2396, %v2410
        %vm2412 = vcmp.eq.s32.totalorder %v2407, 2
        %v2413 = vxor.u32 %v2396, 2147483648
        %v2414 = vsel %vm2412, %v2413, %v2404
        %v2415 = vsel %vm2408, %v2411, %v2414
        %v2416 = vsel %vm2405, nan, %v2415
        %v2417 = vand.u32 2147483647, %v373
        %vm2418 = vcmp.le.f32.partialorder %v2417, 0.7853982
        %vm2419 = vcmp.lt.s32.totalorder %v373, 0
        %v2420 = vand.u32 %v373, 2139095040
        %v2421 = vshrl.u32 %v2420, 23
        %v2422 = vsub.s32 %v2421, 127
        %v2423 = vand.u32 2147483647, %v373
        %v2424 = vand.u32 %v2423, 8388607
        %v2425 = vor.u32 %v2424, 8388608
        %v2426 = vsub.s32 0, %v2425
        %v2427 = vadd.s32 %v2422, 1
        %vm2428 = vcmp.gt.s32.totalorder %v2427, 0
        %v2429 = vsel %vm2428, %v2427, 0
        %v2430 = vshrl.u32 %v2429, 5
        %v2431 = vand.u32 %v2429, 31
        %v2432 = vsub.s32 32, %v2431
        %v2433 = vshrl.u32 683565275, %v2432
        %v2434 = vshll.u32 683565275, %v2431
        %v2435 = vshrl.u32 2475754826, %v2432
        %v2436 = vor.u32 %v2434, %v2435
        %v2437 = vshll.u32 2475754826, %v2431
        %v2438 = vshrl.u32 2131351028, %v2432
        %v2439 = vor.u32 %v2437, %v2438
        %v2440 = vshll.u32 2131351028, %v2431
        %v2441 = vshrl.u32 2102212464, %v2432
        %v2442 = vor.u32 %v2440, %v2441
        %v2443 = vshll.u32 2102212464, %v2431
        %v2444 = vshrl.u32 920167782, %v2432
        %v2445 = vor.u32 %v2443, %v2444
        %v2446 = vshll.u32 920167782, %v2431
        %v2447 = vshrl.u32 1326507024, %v2432
        %v2448 = vor.u32 %v2446, %v2447
        %vm2449 = vcmp.lt.s32.totalorder %v2430, 1
        %vm2450 = vcmp.lt.s32.totalorder %v2430, 2
        %vm2451 = vcmp.lt.s32.totalorder %v2430, 3
        %vm2452 = vcmp.lt.s32.totalorder %v2430, 4
        %v2453 = vsel %vm2449, %v2433, %v2436
        %v2454 = vsel %vm2452, %v2442, 2102212464
        %v2455 = vsel %vm2451, %v2439, %v2454
        %v2456 = vsel %vm2450, %v2453, %v2455
        %v2457 = vsel %vm2449, %v2436, %v2439
        %v2458 = vsel %vm2452, %v2445, 920167782
        %v2459 = vsel %vm2451, %v2442, %v2458
        %v2460 = vsel %vm2450, %v2457, %v2459
        %v2461 = vsel %vm2449, %v2439, %v2442
        %v2462 = vsel %vm2452, %v2448, 1326507024
        %v2463 = vsel %vm2451, %v2445, %v2462
        %v2464 = vsel %vm2450, %v2461, %v2463
        %v2465 = vshll.u32 %v2425, 8
        %v2466 = vand.u32 %v2465, 65535
        %v2467 = vshrl.u32 %v2465, 16
        %v2468 = vand.u32 %v2464, 65535
        %v2469 = vshrl.u32 %v2464, 16
        %v2470 = vmul.u32 %v2466, %v2468
        %v2471 = vmul.u32 %v2466, %v2469
        %v2472 = vmul.u32 %v2467, %v2468
        %v2473 = vmul.u32 %v2467, %v2469
        %v2474 = vshll.u32 %v2471, 16
        %v2475 = vshrl.u32 %v2471, 16
        %v2476 = vshll.u32 %v2472, 16
        %v2477 = vshrl.u32 %v2472, 16
        %vm2478 = vc.u32 %v2470, %v2474
        %v2479 = vsel %vm2478, 1, 0
        %v2480 = vadd.s32 %v2470, %v2474
        %v2481 = vadd.s32 %v2473, %v2479
        %vm2482 = vc.u32 %v2480, %v2476
        %v2483 = vsel %vm2482, 1, 0
        %v2484 = vadd.s32 %v2480, %v2476
        %v2485 = vadd.s32 %v2481, %v2483
        %v2486 = vadd.s32 %v2485, %v2475
        %v2487 = vadd.s32 %v2486, %v2477
        %v2488 = vand.u32 %v2465, 65535
        %v2489 = vshrl.u32 %v2465, 16
        %v2490 = vand.u32 %v2460, 65535
        %v2491 = vshrl.u32 %v2460, 16
        %v2492 = vmul.u32 %v2488, %v2490
        %v2493 = vmul.u32 %v2488, %v2491
        %v2494 = vmul.u32 %v2489, %v2490
        %v2495 = vmul.u32 %v2489, %v2491
        %v2496 = vshll.u32 %v2493, 16
        %v2497 = vshrl.u32 %v2493, 16
        %v2498 = vshll.u32 %v2494, 16
        %v2499 = vshrl.u32 %v2494, 16
        %vm2500 = vc.u32 %v2492, %v2496
        %v2501 = vsel %vm2500, 1, 0
        %v2502 = vadd.s32 %v2492, %v2496
        %v2503 = vadd.s32 %v2495, %v2501
        %vm2504 = vc.u32 %v2502, %v2498
        %v2505 = vsel %vm2504, 1, 0
        %v2506 = vadd.s32 %v2502, %v2498
        %v2507 = vadd.s32 %v2503, %v2505
        %v2508 = vadd.s32 %v2507, %v2497
        %v2509 = vadd.s32 %v2508, %v2499
        %v2510 = vmul.u32 %v2465, %v2456
        %v2511 = vadd.s32 %v2487, %v2506
        %vm2512 = vc.u32 %v2487, %v2506
        %v2513 = vadd.s32 %v2509, 1
        %v2514 = vsel %vm2512, %v2513, %v2509
        %v2515 = vadd.s32 %v2510, %v2514
        %v2516 = vadd.s32 %v2515, 536870912
        %v2517 = vshrl.u32 %v2516, 30
        %v2518 = vshll.u32 %v2517, 30
        %v2519 = vsub.s32 %v2515, %v2518
        %vm2520 = vcmp.lt.s32.totalorder %v2519, 0
        %v2521 = vsub.s32 0, %v2519
        %v2522 = vsel %vm2520, %v2521, %v2519
        %v2523 = vclz %v2522
        %v2524 = vsub.s32 %v2523, 2
        %vm2525 = vcmp.gt.s32.totalorder 0, %v2524
        %v2526 = vsel %vm2525, 0, %v2524
        %v2527 = vsub.s32 32, %v2526
        %v2528 = vshll.u32 %v2519, %v2526
        %v2529 = vshrl.u32 %v2511, %v2527
        %v2530 = vor.u32 %v2528, %v2529
        %v2531 = vsub.s32 4294967266, %v2526
        %v2532 = vadd.s32 %v2531, 127
        %v2533 = vshll.u32 %v2532, 23
        %v2534 = vor.u32 4788187, %v2533
        %v2535 = vand.u32 2147483647, %v2534
        %v2537 = vcvt.s32.f32 %v2530
        %v2538 = vmul.f32 %v2537, %v2535
        %v2539 = vxor.u32 %v2538, 2147483648
        %v2540 = vsel %vm2419, %v2539, %v2538
        %v2541 = vsub.s32 4, %v2517
        %v2542 = vsel %vm2419, %v2541, %v2517
        %v2543 = vsel %vm2418, %v373, %v2540
        %v2544 = vsel %vm2418, 0, %v2542
        %v2545 = vmul.f32 %v2543, %v2543
        %v2546 = vmul.f32 %v2545, -0.001358992
        %v2547 = vadd.f32 %v2546, 0.041655596
        %v2548 = vmul.f32 %v2545, %v2547
        %v2549 = vadd.f32 %v2548, -0.4999988
        %v2550 = vmul.f32 %v2545, %v2549
        %v2551 = vadd.f32 1.0, %v2550
        %v2552 = vmul.f32 %v2543, %v2543
        %v2553 = vmul.f32 %v2552, -0.00019511016
        %v2554 = vadd.f32 %v2553, 0.008332121
        %v2555 = vmul.f32 %v2552, %v2554
        %v2556 = vadd.f32 %v2555, -0.16666654
        %v2557 = vmul.f32 %v2552, %v2556
        %v2558 = vadd.f32 %v2557, 1.0
        %v2559 = vmul.f32 %v2558, %v2543
        %vm2560 = vweird.f32 %v373
        %v2561 = vadd.s32 %v2544, 3
        %v2562 = vand.u32 %v2561, 3
        %vm2563 = vcmp.lt.s32.totalorder %v2562, 2
        %vm2564 = vcmp.eq.s32.totalorder %v2562, 0
        %v2565 = vxor.u32 %v2559, 2147483648
        %v2566 = vsel %vm2564, %v2551, %v2565
        %vm2567 = vcmp.eq.s32.totalorder %v2562, 2
        %v2568 = vxor.u32 %v2551, 2147483648
        %v2569 = vsel %vm2567, %v2568, %v2559
        %v2570 = vsel %vm2563, %v2566, %v2569
        %v2571 = vsel %vm2560, nan, %v2570
        %v2572 = vand.u32 2147483647, %v311
        %vm2573 = vcmp.le.f32.partialorder %v2572, 0.7853982
        %vm2574 = vcmp.lt.s32.totalorder %v311, 0
        %v2575 = vand.u32 %v311, 2139095040
        %v2576 = vshrl.u32 %v2575, 23
        %v2577 = vsub.s32 %v2576, 127
        %v2578 = vand.u32 2147483647, %v311
        %v2579 = vand.u32 %v2578, 8388607
        %v2580 = vor.u32 %v2579, 8388608
        %v2581 = vsub.s32 0, %v2580
        %v2582 = vadd.s32 %v2577, 1
        %vm2583 = vcmp.gt.s32.totalorder %v2582, 0
        %v2584 = vsel %vm2583, %v2582, 0
        %v2585 = vshrl.u32 %v2584, 5
        %v2586 = vand.u32 %v2584, 31
        %v2587 = vsub.s32 32, %v2586
        %v2588 = vshrl.u32 683565275, %v2587
        %v2589 = vshll.u32 683565275, %v2586
        %v2590 = vshrl.u32 2475754826, %v2587
        %v2591 = vor.u32 %v2589, %v2590
        %v2592 = vshll.u32 2475754826, %v2586
        %v2593 = vshrl.u32 2131351028, %v2587
        %v2594 = vor.u32 %v2592, %v2593
        %v2595 = vshll.u32 2131351028, %v2586
        %v2596 = vshrl.u32 2102212464, %v2587
        %v2597 = vor.u32 %v2595, %v2596
        %v2598 = vshll.u32 2102212464, %v2586
        %v2599 = vshrl.u32 920167782, %v2587
        %v2600 = vor.u32 %v2598, %v2599
        %v2601 = vshll.u32 920167782, %v2586
        %v2602 = vshrl.u32 1326507024, %v2587
        %v2603 = vor.u32 %v2601, %v2602
        %vm2604 = vcmp.lt.s32.totalorder %v2585, 1
        %vm2605 = vcmp.lt.s32.totalorder %v2585, 2
        %vm2606 = vcmp.lt.s32.totalorder %v2585, 3
        %vm2607 = vcmp.lt.s32.totalorder %v2585, 4
        %v2608 = vsel %vm2604, %v2588, %v2591
        %v2609 = vsel %vm2607, %v2597, 2102212464
        %v2610 = vsel %vm2606, %v2594, %v2609
        %v2611 = vsel %vm2605, %v2608, %v2610
        %v2612 = vsel %vm2604, %v2591, %v2594
        %v2613 = vsel %vm2607, %v2600, 920167782
        %v2614 = vsel %vm2606, %v2597, %v2613
        %v2615 = vsel %vm2605, %v2612, %v2614
        %v2616 = vsel %vm2604, %v2594, %v2597
        %v2617 = vsel %vm2607, %v2603, 1326507024
        %v2618 = vsel %vm2606, %v2600, %v2617
        %v2619 = vsel %vm2605, %v2616, %v2618
        %v2620 = vshll.u32 %v2580, 8
        %v2621 = vand.u32 %v2620, 65535
        %v2622 = vshrl.u32 %v2620, 16
        %v2623 = vand.u32 %v2619, 65535
        %v2624 = vshrl.u32 %v2619, 16
        %v2625 = vmul.u32 %v2621, %v2623
        %v2626 = vmul.u32 %v2621, %v2624
        %v2627 = vmul.u32 %v2622, %v2623
        %v2628 = vmul.u32 %v2622, %v2624
        %v2629 = vshll.u32 %v2626, 16
        %v2630 = vshrl.u32 %v2626, 16
        %v2631 = vshll.u32 %v2627, 16
        %v2632 = vshrl.u32 %v2627, 16
        %vm2633 = vc.u32 %v2625, %v2629
        %v2634 = vsel %vm2633, 1, 0
        %v2635 = vadd.s32 %v2625, %v2629
        %v2636 = vadd.s32 %v2628, %v2634
        %vm2637 = vc.u32 %v2635, %v2631
        %v2638 = vsel %vm2637, 1, 0
        %v2639 = vadd.s32 %v2635, %v2631
        %v2640 = vadd.s32 %v2636, %v2638
        %v2641 = vadd.s32 %v2640, %v2630
        %v2642 = vadd.s32 %v2641, %v2632
        %v2643 = vand.u32 %v2620, 65535
        %v2644 = vshrl.u32 %v2620, 16
        %v2645 = vand.u32 %v2615, 65535
        %v2646 = vshrl.u32 %v2615, 16
        %v2647 = vmul.u32 %v2643, %v2645
        %v2648 = vmul.u32 %v2643, %v2646
        %v2649 = vmul.u32 %v2644, %v2645
        %v2650 = vmul.u32 %v2644, %v2646
        %v2651 = vshll.u32 %v2648, 16
        %v2652 = vshrl.u32 %v2648, 16
        %v2653 = vshll.u32 %v2649, 16
        %v2654 = vshrl.u32 %v2649, 16
        %vm2655 = vc.u32 %v2647, %v2651
        %v2656 = vsel %vm2655, 1, 0
        %v2657 = vadd.s32 %v2647, %v2651
        %v2658 = vadd.s32 %v2650, %v2656
        %vm2659 = vc.u32 %v2657, %v2653
        %v2660 = vsel %vm2659, 1, 0
        %v2661 = vadd.s32 %v2657, %v2653
        %v2662 = vadd.s32 %v2658, %v2660
        %v2663 = vadd.s32 %v2662, %v2652
        %v2664 = vadd.s32 %v2663, %v2654
        %v2665 = vmul.u32 %v2620, %v2611
        %v2666 = vadd.s32 %v2642, %v2661
        %vm2667 = vc.u32 %v2642, %v2661
        %v2668 = vadd.s32 %v2664, 1
        %v2669 = vsel %vm2667, %v2668, %v2664
        %v2670 = vadd.s32 %v2665, %v2669
        %v2671 = vadd.s32 %v2670, 536870912
        %v2672 = vshrl.u32 %v2671, 30
        %v2673 = vshll.u32 %v2672, 30
        %v2674 = vsub.s32 %v2670, %v2673
        %vm2675 = vcmp.lt.s32.totalorder %v2674, 0
        %v2676 = vsub.s32 0, %v2674
        %v2677 = vsel %vm2675, %v2676, %v2674
        %v2678 = vclz %v2677
        %v2679 = vsub.s32 %v2678, 2
        %vm2680 = vcmp.gt.s32.totalorder 0, %v2679
        %v2681 = vsel %vm2680, 0, %v2679
        %v2682 = vsub.s32 32, %v2681
        %v2683 = vshll.u32 %v2674, %v2681
        %v2684 = vshrl.u32 %v2666, %v2682
        %v2685 = vor.u32 %v2683, %v2684
        %v2686 = vsub.s32 4294967266, %v2681
        %v2687 = vadd.s32 %v2686, 127
        %v2688 = vshll.u32 %v2687, 23
        %v2689 = vor.u32 4788187, %v2688
        %v2690 = vand.u32 2147483647, %v2689
        %v2692 = vcvt.s32.f32 %v2685
        %v2693 = vmul.f32 %v2692, %v2690
        %v2694 = vxor.u32 %v2693, 2147483648
        %v2695 = vsel %vm2574, %v2694, %v2693
        %v2696 = vsub.s32 4, %v2672
        %v2697 = vsel %vm2574, %v2696, %v2672
        %v2698 = vsel %vm2573, %v311, %v2695
        %v2699 = vsel %vm2573, 0, %v2697
        %v2700 = vmul.f32 %v2698, %v2698
        %v2701 = vmul.f32 %v2700, -0.001358992
        %v2702 = vadd.f32 %v2701, 0.041655596
        %v2703 = vmul.f32 %v2700, %v2702
        %v2704 = vadd.f32 %v2703, -0.4999988
        %v2705 = vmul.f32 %v2700, %v2704
        %v2706 = vadd.f32 1.0, %v2705
        %v2707 = vmul.f32 %v2698, %v2698
        %v2708 = vmul.f32 %v2707, -0.00019511016
        %v2709 = vadd.f32 %v2708, 0.008332121
        %v2710 = vmul.f32 %v2707, %v2709
        %v2711 = vadd.f32 %v2710, -0.16666654
        %v2712 = vmul.f32 %v2707, %v2711
        %v2713 = vadd.f32 %v2712, 1.0
        %v2714 = vmul.f32 %v2713, %v2698
        %vm2715 = vweird.f32 %v311
        %v2716 = vadd.s32 %v2699, 3
        %v2717 = vand.u32 %v2716, 3
        %vm2718 = vcmp.lt.s32.totalorder %v2717, 2
        %vm2719 = vcmp.eq.s32.totalorder %v2717, 0
        %v2720 = vxor.u32 %v2714, 2147483648
        %v2721 = vsel %vm2719, %v2706, %v2720
        %vm2722 = vcmp.eq.s32.totalorder %v2717, 2
        %v2723 = vxor.u32 %v2706, 2147483648
        %v2724 = vsel %vm2722, %v2723, %v2714
        %v2725 = vsel %vm2718, %v2721, %v2724
        %v2726 = vsel %vm2715, nan, %v2725
        %v2727 = vand.u32 2147483647, %v376
        %vm2728 = vcmp.le.f32.partialorder %v2727, 0.7853982
        %vm2729 = vcmp.lt.s32.totalorder %v376, 0
        %v2730 = vand.u32 %v376, 2139095040
        %v2731 = vshrl.u32 %v2730, 23
        %v2732 = vsub.s32 %v2731, 127
        %v2733 = vand.u32 2147483647, %v376
        %v2734 = vand.u32 %v2733, 8388607
        %v2735 = vor.u32 %v2734, 8388608
        %v2736 = vsub.s32 0, %v2735
        %v2737 = vadd.s32 %v2732, 1
        %vm2738 = vcmp.gt.s32.totalorder %v2737, 0
        %v2739 = vsel %vm2738, %v2737, 0
        %v2740 = vshrl.u32 %v2739, 5
        %v2741 = vand.u32 %v2739, 31
        %v2742 = vsub.s32 32, %v2741
        %v2743 = vshrl.u32 683565275, %v2742
        %v2744 = vshll.u32 683565275, %v2741
        %v2745 = vshrl.u32 2475754826, %v2742
        %v2746 = vor.u32 %v2744, %v2745
        %v2747 = vshll.u32 2475754826, %v2741
        %v2748 = vshrl.u32 2131351028, %v2742
        %v2749 = vor.u32 %v2747, %v2748
        %v2750 = vshll.u32 2131351028, %v2741
        %v2751 = vshrl.u32 2102212464, %v2742
        %v2752 = vor.u32 %v2750, %v2751
        %v2753 = vshll.u32 2102212464, %v2741
        %v2754 = vshrl.u32 920167782, %v2742
        %v2755 = vor.u32 %v2753, %v2754
        %v2756 = vshll.u32 920167782, %v2741
        %v2757 = vshrl.u32 1326507024, %v2742
        %v2758 = vor.u32 %v2756, %v2757
        %vm2759 = vcmp.lt.s32.totalorder %v2740, 1
        %vm2760 = vcmp.lt.s32.totalorder %v2740, 2
        %vm2761 = vcmp.lt.s32.totalorder %v2740, 3
        %vm2762 = vcmp.lt.s32.totalorder %v2740, 4
        %v2763 = vsel %vm2759, %v2743, %v2746
        %v2764 = vsel %vm2762, %v2752, 2102212464
        %v2765 = vsel %vm2761, %v2749, %v2764
        %v2766 = vsel %vm2760, %v2763, %v2765
        %v2767 = vsel %vm2759, %v2746, %v2749
        %v2768 = vsel %vm2762, %v2755, 920167782
        %v2769 = vsel %vm2761, %v2752, %v2768
        %v2770 = vsel %vm2760, %v2767, %v2769
        %v2771 = vsel %vm2759, %v2749, %v2752
        %v2772 = vsel %vm2762, %v2758, 1326507024
        %v2773 = vsel %vm2761, %v2755, %v2772
        %v2774 = vsel %vm2760, %v2771, %v2773
        %v2775 = vshll.u32 %v2735, 8
        %v2776 = vand.u32 %v2775, 65535
        %v2777 = vshrl.u32 %v2775, 16
        %v2778 = vand.u32 %v2774, 65535
        %v2779 = vshrl.u32 %v2774, 16
        %v2780 = vmul.u32 %v2776, %v2778
        %v2781 = vmul.u32 %v2776, %v2779
        %v2782 = vmul.u32 %v2777, %v2778
        %v2783 = vmul.u32 %v2777, %v2779
        %v2784 = vshll.u32 %v2781, 16
        %v2785 = vshrl.u32 %v2781, 16
        %v2786 = vshll.u32 %v2782, 16
        %v2787 = vshrl.u32 %v2782, 16
        %vm2788 = vc.u32 %v2780, %v2784
        %v2789 = vsel %vm2788, 1, 0
        %v2790 = vadd.s32 %v2780, %v2784
        %v2791 = vadd.s32 %v2783, %v2789
        %vm2792 = vc.u32 %v2790, %v2786
        %v2793 = vsel %vm2792, 1, 0
        %v2794 = vadd.s32 %v2790, %v2786
        %v2795 = vadd.s32 %v2791, %v2793
        %v2796 = vadd.s32 %v2795, %v2785
        %v2797 = vadd.s32 %v2796, %v2787
        %v2798 = vand.u32 %v2775, 65535
        %v2799 = vshrl.u32 %v2775, 16
        %v2800 = vand.u32 %v2770, 65535
        %v2801 = vshrl.u32 %v2770, 16
        %v2802 = vmul.u32 %v2798, %v2800
        %v2803 = vmul.u32 %v2798, %v2801
        %v2804 = vmul.u32 %v2799, %v2800
        %v2805 = vmul.u32 %v2799, %v2801
        %v2806 = vshll.u32 %v2803, 16
        %v2807 = vshrl.u32 %v2803, 16
        %v2808 = vshll.u32 %v2804, 16
        %v2809 = vshrl.u32 %v2804, 16
        %vm2810 = vc.u32 %v2802, %v2806
        %v2811 = vsel %vm2810, 1, 0
        %v2812 = vadd.s32 %v2802, %v2806
        %v2813 = vadd.s32 %v2805, %v2811
        %vm2814 = vc.u32 %v2812, %v2808
        %v2815 = vsel %vm2814, 1, 0
        %v2816 = vadd.s32 %v2812, %v2808
        %v2817 = vadd.s32 %v2813, %v2815
        %v2818 = vadd.s32 %v2817, %v2807
        %v2819 = vadd.s32 %v2818, %v2809
        %v2820 = vmul.u32 %v2775, %v2766
        %v2821 = vadd.s32 %v2797, %v2816
        %vm2822 = vc.u32 %v2797, %v2816
        %v2823 = vadd.s32 %v2819, 1
        %v2824 = vsel %vm2822, %v2823, %v2819
        %v2825 = vadd.s32 %v2820, %v2824
        %v2826 = vadd.s32 %v2825, 536870912
        %v2827 = vshrl.u32 %v2826, 30
        %v2828 = vshll.u32 %v2827, 30
        %v2829 = vsub.s32 %v2825, %v2828
        %vm2830 = vcmp.lt.s32.totalorder %v2829, 0
        %v2831 = vsub.s32 0, %v2829
        %v2832 = vsel %vm2830, %v2831, %v2829
        %v2833 = vclz %v2832
        %v2834 = vsub.s32 %v2833, 2
        %vm2835 = vcmp.gt.s32.totalorder 0, %v2834
        %v2836 = vsel %vm2835, 0, %v2834
        %v2837 = vsub.s32 32, %v2836
        %v2838 = vshll.u32 %v2829, %v2836
        %v2839 = vshrl.u32 %v2821, %v2837
        %v2840 = vor.u32 %v2838, %v2839
        %v2841 = vsub.s32 4294967266, %v2836
        %v2842 = vadd.s32 %v2841, 127
        %v2843 = vshll.u32 %v2842, 23
        %v2844 = vor.u32 4788187, %v2843
        %v2845 = vand.u32 2147483647, %v2844
        %v2847 = vcvt.s32.f32 %v2840
        %v2848 = vmul.f32 %v2847, %v2845
        %v2849 = vxor.u32 %v2848, 2147483648
        %v2850 = vsel %vm2729, %v2849, %v2848
        %v2851 = vsub.s32 4, %v2827
        %v2852 = vsel %vm2729, %v2851, %v2827
        %v2853 = vsel %vm2728, %v376, %v2850
        %v2854 = vsel %vm2728, 0, %v2852
        %v2855 = vmul.f32 %v2853, %v2853
        %v2856 = vmul.f32 %v2855, -0.001358992
        %v2857 = vadd.f32 %v2856, 0.041655596
        %v2858 = vmul.f32 %v2855, %v2857
        %v2859 = vadd.f32 %v2858, -0.4999988
        %v2860 = vmul.f32 %v2855, %v2859
        %v2861 = vadd.f32 1.0, %v2860
        %v2862 = vmul.f32 %v2853, %v2853
        %v2863 = vmul.f32 %v2862, -0.00019511016
        %v2864 = vadd.f32 %v2863, 0.008332121
        %v2865 = vmul.f32 %v2862, %v2864
        %v2866 = vadd.f32 %v2865, -0.16666654
        %v2867 = vmul.f32 %v2862, %v2866
        %v2868 = vadd.f32 %v2867, 1.0
        %v2869 = vmul.f32 %v2868, %v2853
        %vm2870 = vweird.f32 %v376
        %v2871 = vadd.s32 %v2854, 3
        %v2872 = vand.u32 %v2871, 3
        %vm2873 = vcmp.lt.s32.totalorder %v2872, 2
        %vm2874 = vcmp.eq.s32.totalorder %v2872, 0
        %v2875 = vxor.u32 %v2869, 2147483648
        %v2876 = vsel %vm2874, %v2861, %v2875
        %vm2877 = vcmp.eq.s32.totalorder %v2872, 2
        %v2878 = vxor.u32 %v2861, 2147483648
        %v2879 = vsel %vm2877, %v2878, %v2869
        %v2880 = vsel %vm2873, %v2876, %v2879
        %v2881 = vsel %vm2870, nan, %v2880
        %v2882 = vand.u32 2147483647, %v314
        %vm2883 = vcmp.le.f32.partialorder %v2882, 0.7853982
        %vm2884 = vcmp.lt.s32.totalorder %v314, 0
        %v2885 = vand.u32 %v314, 2139095040
        %v2886 = vshrl.u32 %v2885, 23
        %v2887 = vsub.s32 %v2886, 127
        %v2888 = vand.u32 2147483647, %v314
        %v2889 = vand.u32 %v2888, 8388607
        %v2890 = vor.u32 %v2889, 8388608
        %v2891 = vsub.s32 0, %v2890
        %v2892 = vadd.s32 %v2887, 1
        %vm2893 = vcmp.gt.s32.totalorder %v2892, 0
        %v2894 = vsel %vm2893, %v2892, 0
        %v2895 = vshrl.u32 %v2894, 5
        %v2896 = vand.u32 %v2894, 31
        %v2897 = vsub.s32 32, %v2896
        %v2898 = vshrl.u32 683565275, %v2897
        %v2899 = vshll.u32 683565275, %v2896
        %v2900 = vshrl.u32 2475754826, %v2897
        %v2901 = vor.u32 %v2899, %v2900
        %v2902 = vshll.u32 2475754826, %v2896
        %v2903 = vshrl.u32 2131351028, %v2897
        %v2904 = vor.u32 %v2902, %v2903
        %v2905 = vshll.u32 2131351028, %v2896
        %v2906 = vshrl.u32 2102212464, %v2897
        %v2907 = vor.u32 %v2905, %v2906
        %v2908 = vshll.u32 2102212464, %v2896
        %v2909 = vshrl.u32 920167782, %v2897
        %v2910 = vor.u32 %v2908, %v2909
        %v2911 = vshll.u32 920167782, %v2896
        %v2912 = vshrl.u32 1326507024, %v2897
        %v2913 = vor.u32 %v2911, %v2912
        %vm2914 = vcmp.lt.s32.totalorder %v2895, 1
        %vm2915 = vcmp.lt.s32.totalorder %v2895, 2
        %vm2916 = vcmp.lt.s32.totalorder %v2895, 3
        %vm2917 = vcmp.lt.s32.totalorder %v2895, 4
        %v2918 = vsel %vm2914, %v2898, %v2901
        %v2919 = vsel %vm2917, %v2907, 2102212464
        %v2920 = vsel %vm2916, %v2904, %v2919
        %v2921 = vsel %vm2915, %v2918, %v2920
        %v2922 = vsel %vm2914, %v2901, %v2904
        %v2923 = vsel %vm2917, %v2910, 920167782
        %v2924 = vsel %vm2916, %v2907, %v2923
        %v2925 = vsel %vm2915, %v2922, %v2924
        %v2926 = vsel %vm2914, %v2904, %v2907
        %v2927 = vsel %vm2917, %v2913, 1326507024
        %v2928 = vsel %vm2916, %v2910, %v2927
        %v2929 = vsel %vm2915, %v2926, %v2928
        %v2930 = vshll.u32 %v2890, 8
        %v2931 = vand.u32 %v2930, 65535
        %v2932 = vshrl.u32 %v2930, 16
        %v2933 = vand.u32 %v2929, 65535
        %v2934 = vshrl.u32 %v2929, 16
        %v2935 = vmul.u32 %v2931, %v2933
        %v2936 = vmul.u32 %v2931, %v2934
        %v2937 = vmul.u32 %v2932, %v2933
        %v2938 = vmul.u32 %v2932, %v2934
        %v2939 = vshll.u32 %v2936, 16
        %v2940 = vshrl.u32 %v2936, 16
        %v2941 = vshll.u32 %v2937, 16
        %v2942 = vshrl.u32 %v2937, 16
        %vm2943 = vc.u32 %v2935, %v2939
        %v2944 = vsel %vm2943, 1, 0
        %v2945 = vadd.s32 %v2935, %v2939
        %v2946 = vadd.s32 %v2938, %v2944
        %vm2947 = vc.u32 %v2945, %v2941
        %v2948 = vsel %vm2947, 1, 0
        %v2949 = vadd.s32 %v2945, %v2941
        %v2950 = vadd.s32 %v2946, %v2948
        %v2951 = vadd.s32 %v2950, %v2940
        %v2952 = vadd.s32 %v2951, %v2942
        %v2953 = vand.u32 %v2930, 65535
        %v2954 = vshrl.u32 %v2930, 16
        %v2955 = vand.u32 %v2925, 65535
        %v2956 = vshrl.u32 %v2925, 16
        %v2957 = vmul.u32 %v2953, %v2955
        %v2958 = vmul.u32 %v2953, %v2956
        %v2959 = vmul.u32 %v2954, %v2955
        %v2960 = vmul.u32 %v2954, %v2956
        %v2961 = vshll.u32 %v2958, 16
        %v2962 = vshrl.u32 %v2958, 16
        %v2963 = vshll.u32 %v2959, 16
        %v2964 = vshrl.u32 %v2959, 16
        %vm2965 = vc.u32 %v2957, %v2961
        %v2966 = vsel %vm2965, 1, 0
        %v2967 = vadd.s32 %v2957, %v2961
        %v2968 = vadd.s32 %v2960, %v2966
        %vm2969 = vc.u32 %v2967, %v2963
        %v2970 = vsel %vm2969, 1, 0
        %v2971 = vadd.s32 %v2967, %v2963
        %v2972 = vadd.s32 %v2968, %v2970
        %v2973 = vadd.s32 %v2972, %v2962
        %v2974 = vadd.s32 %v2973, %v2964
        %v2975 = vmul.u32 %v2930, %v2921
        %v2976 = vadd.s32 %v2952, %v2971
        %vm2977 = vc.u32 %v2952, %v2971
        %v2978 = vadd.s32 %v2974, 1
        %v2979 = vsel %vm2977, %v2978, %v2974
        %v2980 = vadd.s32 %v2975, %v2979
        %v2981 = vadd.s32 %v2980, 536870912
        %v2982 = vshrl.u32 %v2981, 30
        %v2983 = vshll.u32 %v2982, 30
        %v2984 = vsub.s32 %v2980, %v2983
        %vm2985 = vcmp.lt.s32.totalorder %v2984, 0
        %v2986 = vsub.s32 0, %v2984
        %v2987 = vsel %vm2985, %v2986, %v2984
        %v2988 = vclz %v2987
        %v2989 = vsub.s32 %v2988, 2
        %vm2990 = vcmp.gt.s32.totalorder 0, %v2989
        %v2991 = vsel %vm2990, 0, %v2989
        %v2992 = vsub.s32 32, %v2991
        %v2993 = vshll.u32 %v2984, %v2991
        %v2994 = vshrl.u32 %v2976, %v2992
        %v2995 = vor.u32 %v2993, %v2994
        %v2996 = vsub.s32 4294967266, %v2991
        %v2997 = vadd.s32 %v2996, 127
        %v2998 = vshll.u32 %v2997, 23
        %v2999 = vor.u32 4788187, %v2998
        %v3000 = vand.u32 2147483647, %v2999
        %v3002 = vcvt.s32.f32 %v2995
        %v3003 = vmul.f32 %v3002, %v3000
        %v3004 = vxor.u32 %v3003, 2147483648
        %v3005 = vsel %vm2884, %v3004, %v3003
        %v3006 = vsub.s32 4, %v2982
        %v3007 = vsel %vm2884, %v3006, %v2982
        %v3008 = vsel %vm2883, %v314, %v3005
        %v3009 = vsel %vm2883, 0, %v3007
        %v3010 = vmul.f32 %v3008, %v3008
        %v3011 = vmul.f32 %v3010, -0.001358992
        %v3012 = vadd.f32 %v3011, 0.041655596
        %v3013 = vmul.f32 %v3010, %v3012
        %v3014 = vadd.f32 %v3013, -0.4999988
        %v3015 = vmul.f32 %v3010, %v3014
        %v3016 = vadd.f32 1.0, %v3015
        %v3017 = vmul.f32 %v3008, %v3008
        %v3018 = vmul.f32 %v3017, -0.00019511016
        %v3019 = vadd.f32 %v3018, 0.008332121
        %v3020 = vmul.f32 %v3017, %v3019
        %v3021 = vadd.f32 %v3020, -0.16666654
        %v3022 = vmul.f32 %v3017, %v3021
        %v3023 = vadd.f32 %v3022, 1.0
        %v3024 = vmul.f32 %v3023, %v3008
        %vm3025 = vweird.f32 %v314
        %v3026 = vadd.s32 %v3009, 3
        %v3027 = vand.u32 %v3026, 3
        %vm3028 = vcmp.lt.s32.totalorder %v3027, 2
        %vm3029 = vcmp.eq.s32.totalorder %v3027, 0
        %v3030 = vxor.u32 %v3024, 2147483648
        %v3031 = vsel %vm3029, %v3016, %v3030
        %vm3032 = vcmp.eq.s32.totalorder %v3027, 2
        %v3033 = vxor.u32 %v3016, 2147483648
        %v3034 = vsel %vm3032, %v3033, %v3024
        %v3035 = vsel %vm3028, %v3031, %v3034
        %v3036 = vsel %vm3025, nan, %v3035
        %v3037 = vand.u32 2147483647, %v379
        %vm3038 = vcmp.le.f32.partialorder %v3037, 0.7853982
        %vm3039 = vcmp.lt.s32.totalorder %v379, 0
        %v3040 = vand.u32 %v379, 2139095040
        %v3041 = vshrl.u32 %v3040, 23
        %v3042 = vsub.s32 %v3041, 127
        %v3043 = vand.u32 2147483647, %v379
        %v3044 = vand.u32 %v3043, 8388607
        %v3045 = vor.u32 %v3044, 8388608
        %v3046 = vsub.s32 0, %v3045
        %v3047 = vadd.s32 %v3042, 1
        %vm3048 = vcmp.gt.s32.totalorder %v3047, 0
        %v3049 = vsel %vm3048, %v3047, 0
        %v3050 = vshrl.u32 %v3049, 5
        %v3051 = vand.u32 %v3049, 31
        %v3052 = vsub.s32 32, %v3051
        %v3053 = vshrl.u32 683565275, %v3052
        %v3054 = vshll.u32 683565275, %v3051
        %v3055 = vshrl.u32 2475754826, %v3052
        %v3056 = vor.u32 %v3054, %v3055
        %v3057 = vshll.u32 2475754826, %v3051
        %v3058 = vshrl.u32 2131351028, %v3052
        %v3059 = vor.u32 %v3057, %v3058
        %v3060 = vshll.u32 2131351028, %v3051
        %v3061 = vshrl.u32 2102212464, %v3052
        %v3062 = vor.u32 %v3060, %v3061
        %v3063 = vshll.u32 2102212464, %v3051
        %v3064 = vshrl.u32 920167782, %v3052
        %v3065 = vor.u32 %v3063, %v3064
        %v3066 = vshll.u32 920167782, %v3051
        %v3067 = vshrl.u32 1326507024, %v3052
        %v3068 = vor.u32 %v3066, %v3067
        %vm3069 = vcmp.lt.s32.totalorder %v3050, 1
        %vm3070 = vcmp.lt.s32.totalorder %v3050, 2
        %vm3071 = vcmp.lt.s32.totalorder %v3050, 3
        %vm3072 = vcmp.lt.s32.totalorder %v3050, 4
        %v3073 = vsel %vm3069, %v3053, %v3056
        %v3074 = vsel %vm3072, %v3062, 2102212464
        %v3075 = vsel %vm3071, %v3059, %v3074
        %v3076 = vsel %vm3070, %v3073, %v3075
        %v3077 = vsel %vm3069, %v3056, %v3059
        %v3078 = vsel %vm3072, %v3065, 920167782
        %v3079 = vsel %vm3071, %v3062, %v3078
        %v3080 = vsel %vm3070, %v3077, %v3079
        %v3081 = vsel %vm3069, %v3059, %v3062
        %v3082 = vsel %vm3072, %v3068, 1326507024
        %v3083 = vsel %vm3071, %v3065, %v3082
        %v3084 = vsel %vm3070, %v3081, %v3083
        %v3085 = vshll.u32 %v3045, 8
        %v3086 = vand.u32 %v3085, 65535
        %v3087 = vshrl.u32 %v3085, 16
        %v3088 = vand.u32 %v3084, 65535
        %v3089 = vshrl.u32 %v3084, 16
        %v3090 = vmul.u32 %v3086, %v3088
        %v3091 = vmul.u32 %v3086, %v3089
        %v3092 = vmul.u32 %v3087, %v3088
        %v3093 = vmul.u32 %v3087, %v3089
        %v3094 = vshll.u32 %v3091, 16
        %v3095 = vshrl.u32 %v3091, 16
        %v3096 = vshll.u32 %v3092, 16
        %v3097 = vshrl.u32 %v3092, 16
        %vm3098 = vc.u32 %v3090, %v3094
        %v3099 = vsel %vm3098, 1, 0
        %v3100 = vadd.s32 %v3090, %v3094
        %v3101 = vadd.s32 %v3093, %v3099
        %vm3102 = vc.u32 %v3100, %v3096
        %v3103 = vsel %vm3102, 1, 0
        %v3104 = vadd.s32 %v3100, %v3096
        %v3105 = vadd.s32 %v3101, %v3103
        %v3106 = vadd.s32 %v3105, %v3095
        %v3107 = vadd.s32 %v3106, %v3097
        %v3108 = vand.u32 %v3085, 65535
        %v3109 = vshrl.u32 %v3085, 16
        %v3110 = vand.u32 %v3080, 65535
        %v3111 = vshrl.u32 %v3080, 16
        %v3112 = vmul.u32 %v3108, %v3110
        %v3113 = vmul.u32 %v3108, %v3111
        %v3114 = vmul.u32 %v3109, %v3110
        %v3115 = vmul.u32 %v3109, %v3111
        %v3116 = vshll.u32 %v3113, 16
        %v3117 = vshrl.u32 %v3113, 16
        %v3118 = vshll.u32 %v3114, 16
        %v3119 = vshrl.u32 %v3114, 16
        %vm3120 = vc.u32 %v3112, %v3116
        %v3121 = vsel %vm3120, 1, 0
        %v3122 = vadd.s32 %v3112, %v3116
        %v3123 = vadd.s32 %v3115, %v3121
        %vm3124 = vc.u32 %v3122, %v3118
        %v3125 = vsel %vm3124, 1, 0
        %v3126 = vadd.s32 %v3122, %v3118
        %v3127 = vadd.s32 %v3123, %v3125
        %v3128 = vadd.s32 %v3127, %v3117
        %v3129 = vadd.s32 %v3128, %v3119
        %v3130 = vmul.u32 %v3085, %v3076
        %v3131 = vadd.s32 %v3107, %v3126
        %vm3132 = vc.u32 %v3107, %v3126
        %v3133 = vadd.s32 %v3129, 1
        %v3134 = vsel %vm3132, %v3133, %v3129
        %v3135 = vadd.s32 %v3130, %v3134
        %v3136 = vadd.s32 %v3135, 536870912
        %v3137 = vshrl.u32 %v3136, 30
        %v3138 = vshll.u32 %v3137, 30
        %v3139 = vsub.s32 %v3135, %v3138
        %vm3140 = vcmp.lt.s32.totalorder %v3139, 0
        %v3141 = vsub.s32 0, %v3139
        %v3142 = vsel %vm3140, %v3141, %v3139
        %v3143 = vclz %v3142
        %v3144 = vsub.s32 %v3143, 2
        %vm3145 = vcmp.gt.s32.totalorder 0, %v3144
        %v3146 = vsel %vm3145, 0, %v3144
        %v3147 = vsub.s32 32, %v3146
        %v3148 = vshll.u32 %v3139, %v3146
        %v3149 = vshrl.u32 %v3131, %v3147
        %v3150 = vor.u32 %v3148, %v3149
        %v3151 = vsub.s32 4294967266, %v3146
        %v3152 = vadd.s32 %v3151, 127
        %v3153 = vshll.u32 %v3152, 23
        %v3154 = vor.u32 4788187, %v3153
        %v3155 = vand.u32 2147483647, %v3154
        %v3157 = vcvt.s32.f32 %v3150
        %v3158 = vmul.f32 %v3157, %v3155
        %v3159 = vxor.u32 %v3158, 2147483648
        %v3160 = vsel %vm3039, %v3159, %v3158
        %v3161 = vsub.s32 4, %v3137
        %v3162 = vsel %vm3039, %v3161, %v3137
        %v3163 = vsel %vm3038, %v379, %v3160
        %v3164 = vsel %vm3038, 0, %v3162
        %v3165 = vmul.f32 %v3163, %v3163
        %v3166 = vmul.f32 %v3165, -0.001358992
        %v3167 = vadd.f32 %v3166, 0.041655596
        %v3168 = vmul.f32 %v3165, %v3167
        %v3169 = vadd.f32 %v3168, -0.4999988
        %v3170 = vmul.f32 %v3165, %v3169
        %v3171 = vadd.f32 1.0, %v3170
        %v3172 = vmul.f32 %v3163, %v3163
        %v3173 = vmul.f32 %v3172, -0.00019511016
        %v3174 = vadd.f32 %v3173, 0.008332121
        %v3175 = vmul.f32 %v3172, %v3174
        %v3176 = vadd.f32 %v3175, -0.16666654
        %v3177 = vmul.f32 %v3172, %v3176
        %v3178 = vadd.f32 %v3177, 1.0
        %v3179 = vmul.f32 %v3178, %v3163
        %vm3180 = vweird.f32 %v379
        %v3181 = vadd.s32 %v3164, 3
        %v3182 = vand.u32 %v3181, 3
        %vm3183 = vcmp.lt.s32.totalorder %v3182, 2
        %vm3184 = vcmp.eq.s32.totalorder %v3182, 0
        %v3185 = vxor.u32 %v3179, 2147483648
        %v3186 = vsel %vm3184, %v3171, %v3185
        %vm3187 = vcmp.eq.s32.totalorder %v3182, 2
        %v3188 = vxor.u32 %v3171, 2147483648
        %v3189 = vsel %vm3187, %v3188, %v3179
        %v3190 = vsel %vm3183, %v3186, %v3189
        %v3191 = vsel %vm3180, nan, %v3190
        %v3192 = vand.u32 2147483647, %v317
        %vm3193 = vcmp.le.f32.partialorder %v3192, 0.7853982
        %vm3194 = vcmp.lt.s32.totalorder %v317, 0
        %v3195 = vand.u32 %v317, 2139095040
        %v3196 = vshrl.u32 %v3195, 23
        %v3197 = vsub.s32 %v3196, 127
        %v3198 = vand.u32 2147483647, %v317
        %v3199 = vand.u32 %v3198, 8388607
        %v3200 = vor.u32 %v3199, 8388608
        %v3201 = vsub.s32 0, %v3200
        %v3202 = vadd.s32 %v3197, 1
        %vm3203 = vcmp.gt.s32.totalorder %v3202, 0
        %v3204 = vsel %vm3203, %v3202, 0
        %v3205 = vshrl.u32 %v3204, 5
        %v3206 = vand.u32 %v3204, 31
        %v3207 = vsub.s32 32, %v3206
        %v3208 = vshrl.u32 683565275, %v3207
        %v3209 = vshll.u32 683565275, %v3206
        %v3210 = vshrl.u32 2475754826, %v3207
        %v3211 = vor.u32 %v3209, %v3210
        %v3212 = vshll.u32 2475754826, %v3206
        %v3213 = vshrl.u32 2131351028, %v3207
        %v3214 = vor.u32 %v3212, %v3213
        %v3215 = vshll.u32 2131351028, %v3206
        %v3216 = vshrl.u32 2102212464, %v3207
        %v3217 = vor.u32 %v3215, %v3216
        %v3218 = vshll.u32 2102212464, %v3206
        %v3219 = vshrl.u32 920167782, %v3207
        %v3220 = vor.u32 %v3218, %v3219
        %v3221 = vshll.u32 920167782, %v3206
        %v3222 = vshrl.u32 1326507024, %v3207
        %v3223 = vor.u32 %v3221, %v3222
        %vm3224 = vcmp.lt.s32.totalorder %v3205, 1
        %vm3225 = vcmp.lt.s32.totalorder %v3205, 2
        %vm3226 = vcmp.lt.s32.totalorder %v3205, 3
        %vm3227 = vcmp.lt.s32.totalorder %v3205, 4
        %v3228 = vsel %vm3224, %v3208, %v3211
        %v3229 = vsel %vm3227, %v3217, 2102212464
        %v3230 = vsel %vm3226, %v3214, %v3229
        %v3231 = vsel %vm3225, %v3228, %v3230
        %v3232 = vsel %vm3224, %v3211, %v3214
        %v3233 = vsel %vm3227, %v3220, 920167782
        %v3234 = vsel %vm3226, %v3217, %v3233
        %v3235 = vsel %vm3225, %v3232, %v3234
        %v3236 = vsel %vm3224, %v3214, %v3217
        %v3237 = vsel %vm3227, %v3223, 1326507024
        %v3238 = vsel %vm3226, %v3220, %v3237
        %v3239 = vsel %vm3225, %v3236, %v3238
        %v3240 = vshll.u32 %v3200, 8
        %v3241 = vand.u32 %v3240, 65535
        %v3242 = vshrl.u32 %v3240, 16
        %v3243 = vand.u32 %v3239, 65535
        %v3244 = vshrl.u32 %v3239, 16
        %v3245 = vmul.u32 %v3241, %v3243
        %v3246 = vmul.u32 %v3241, %v3244
        %v3247 = vmul.u32 %v3242, %v3243
        %v3248 = vmul.u32 %v3242, %v3244
        %v3249 = vshll.u32 %v3246, 16
        %v3250 = vshrl.u32 %v3246, 16
        %v3251 = vshll.u32 %v3247, 16
        %v3252 = vshrl.u32 %v3247, 16
        %vm3253 = vc.u32 %v3245, %v3249
        %v3254 = vsel %vm3253, 1, 0
        %v3255 = vadd.s32 %v3245, %v3249
        %v3256 = vadd.s32 %v3248, %v3254
        %vm3257 = vc.u32 %v3255, %v3251
        %v3258 = vsel %vm3257, 1, 0
        %v3259 = vadd.s32 %v3255, %v3251
        %v3260 = vadd.s32 %v3256, %v3258
        %v3261 = vadd.s32 %v3260, %v3250
        %v3262 = vadd.s32 %v3261, %v3252
        %v3263 = vand.u32 %v3240, 65535
        %v3264 = vshrl.u32 %v3240, 16
        %v3265 = vand.u32 %v3235, 65535
        %v3266 = vshrl.u32 %v3235, 16
        %v3267 = vmul.u32 %v3263, %v3265
        %v3268 = vmul.u32 %v3263, %v3266
        %v3269 = vmul.u32 %v3264, %v3265
        %v3270 = vmul.u32 %v3264, %v3266
        %v3271 = vshll.u32 %v3268, 16
        %v3272 = vshrl.u32 %v3268, 16
        %v3273 = vshll.u32 %v3269, 16
        %v3274 = vshrl.u32 %v3269, 16
        %vm3275 = vc.u32 %v3267, %v3271
        %v3276 = vsel %vm3275, 1, 0
        %v3277 = vadd.s32 %v3267, %v3271
        %v3278 = vadd.s32 %v3270, %v3276
        %vm3279 = vc.u32 %v3277, %v3273
        %v3280 = vsel %vm3279, 1, 0
        %v3281 = vadd.s32 %v3277, %v3273
        %v3282 = vadd.s32 %v3278, %v3280
        %v3283 = vadd.s32 %v3282, %v3272
        %v3284 = vadd.s32 %v3283, %v3274
        %v3285 = vmul.u32 %v3240, %v3231
        %v3286 = vadd.s32 %v3262, %v3281
        %vm3287 = vc.u32 %v3262, %v3281
        %v3288 = vadd.s32 %v3284, 1
        %v3289 = vsel %vm3287, %v3288, %v3284
        %v3290 = vadd.s32 %v3285, %v3289
        %v3291 = vadd.s32 %v3290, 536870912
        %v3292 = vshrl.u32 %v3291, 30
        %v3293 = vshll.u32 %v3292, 30
        %v3294 = vsub.s32 %v3290, %v3293
        %vm3295 = vcmp.lt.s32.totalorder %v3294, 0
        %v3296 = vsub.s32 0, %v3294
        %v3297 = vsel %vm3295, %v3296, %v3294
        %v3298 = vclz %v3297
        %v3299 = vsub.s32 %v3298, 2
        %vm3300 = vcmp.gt.s32.totalorder 0, %v3299
        %v3301 = vsel %vm3300, 0, %v3299
        %v3302 = vsub.s32 32, %v3301
        %v3303 = vshll.u32 %v3294, %v3301
        %v3304 = vshrl.u32 %v3286, %v3302
        %v3305 = vor.u32 %v3303, %v3304
        %v3306 = vsub.s32 4294967266, %v3301
        %v3307 = vadd.s32 %v3306, 127
        %v3308 = vshll.u32 %v3307, 23
        %v3309 = vor.u32 4788187, %v3308
        %v3310 = vand.u32 2147483647, %v3309
        %v3312 = vcvt.s32.f32 %v3305
        %v3313 = vmul.f32 %v3312, %v3310
        %v3314 = vxor.u32 %v3313, 2147483648
        %v3315 = vsel %vm3194, %v3314, %v3313
        %v3316 = vsub.s32 4, %v3292
        %v3317 = vsel %vm3194, %v3316, %v3292
        %v3318 = vsel %vm3193, %v317, %v3315
        %v3319 = vsel %vm3193, 0, %v3317
        %v3320 = vmul.f32 %v3318, %v3318
        %v3321 = vmul.f32 %v3320, -0.001358992
        %v3322 = vadd.f32 %v3321, 0.041655596
        %v3323 = vmul.f32 %v3320, %v3322
        %v3324 = vadd.f32 %v3323, -0.4999988
        %v3325 = vmul.f32 %v3320, %v3324
        %v3326 = vadd.f32 1.0, %v3325
        %v3327 = vmul.f32 %v3318, %v3318
        %v3328 = vmul.f32 %v3327, -0.00019511016
        %v3329 = vadd.f32 %v3328, 0.008332121
        %v3330 = vmul.f32 %v3327, %v3329
        %v3331 = vadd.f32 %v3330, -0.16666654
        %v3332 = vmul.f32 %v3327, %v3331
        %v3333 = vadd.f32 %v3332, 1.0
        %v3334 = vmul.f32 %v3333, %v3318
        %vm3335 = vweird.f32 %v317
        %v3336 = vadd.s32 %v3319, 3
        %v3337 = vand.u32 %v3336, 3
        %vm3338 = vcmp.lt.s32.totalorder %v3337, 2
        %vm3339 = vcmp.eq.s32.totalorder %v3337, 0
        %v3340 = vxor.u32 %v3334, 2147483648
        %v3341 = vsel %vm3339, %v3326, %v3340
        %vm3342 = vcmp.eq.s32.totalorder %v3337, 2
        %v3343 = vxor.u32 %v3326, 2147483648
        %v3344 = vsel %vm3342, %v3343, %v3334
        %v3345 = vsel %vm3338, %v3341, %v3344
        %v3346 = vsel %vm3335, nan, %v3345
        %v3347 = vand.u32 2147483647, %v382
        %vm3348 = vcmp.le.f32.partialorder %v3347, 0.7853982
        %vm3349 = vcmp.lt.s32.totalorder %v382, 0
        %v3350 = vand.u32 %v382, 2139095040
        %v3351 = vshrl.u32 %v3350, 23
        %v3352 = vsub.s32 %v3351, 127
        %v3353 = vand.u32 2147483647, %v382
        %v3354 = vand.u32 %v3353, 8388607
        %v3355 = vor.u32 %v3354, 8388608
        %v3356 = vsub.s32 0, %v3355
        %v3357 = vadd.s32 %v3352, 1
        %vm3358 = vcmp.gt.s32.totalorder %v3357, 0
        %v3359 = vsel %vm3358, %v3357, 0
        %v3360 = vshrl.u32 %v3359, 5
        %v3361 = vand.u32 %v3359, 31
        %v3362 = vsub.s32 32, %v3361
        %v3363 = vshrl.u32 683565275, %v3362
        %v3364 = vshll.u32 683565275, %v3361
        %v3365 = vshrl.u32 2475754826, %v3362
        %v3366 = vor.u32 %v3364, %v3365
        %v3367 = vshll.u32 2475754826, %v3361
        %v3368 = vshrl.u32 2131351028, %v3362
        %v3369 = vor.u32 %v3367, %v3368
        %v3370 = vshll.u32 2131351028, %v3361
        %v3371 = vshrl.u32 2102212464, %v3362
        %v3372 = vor.u32 %v3370, %v3371
        %v3373 = vshll.u32 2102212464, %v3361
        %v3374 = vshrl.u32 920167782, %v3362
        %v3375 = vor.u32 %v3373, %v3374
        %v3376 = vshll.u32 920167782, %v3361
        %v3377 = vshrl.u32 1326507024, %v3362
        %v3378 = vor.u32 %v3376, %v3377
        %vm3379 = vcmp.lt.s32.totalorder %v3360, 1
        %vm3380 = vcmp.lt.s32.totalorder %v3360, 2
        %vm3381 = vcmp.lt.s32.totalorder %v3360, 3
        %vm3382 = vcmp.lt.s32.totalorder %v3360, 4
        %v3383 = vsel %vm3379, %v3363, %v3366
        %v3384 = vsel %vm3382, %v3372, 2102212464
        %v3385 = vsel %vm3381, %v3369, %v3384
        %v3386 = vsel %vm3380, %v3383, %v3385
        %v3387 = vsel %vm3379, %v3366, %v3369
        %v3388 = vsel %vm3382, %v3375, 920167782
        %v3389 = vsel %vm3381, %v3372, %v3388
        %v3390 = vsel %vm3380, %v3387, %v3389
        %v3391 = vsel %vm3379, %v3369, %v3372
        %v3392 = vsel %vm3382, %v3378, 1326507024
        %v3393 = vsel %vm3381, %v3375, %v3392
        %v3394 = vsel %vm3380, %v3391, %v3393
        %v3395 = vshll.u32 %v3355, 8
        %v3396 = vand.u32 %v3395, 65535
        %v3397 = vshrl.u32 %v3395, 16
        %v3398 = vand.u32 %v3394, 65535
        %v3399 = vshrl.u32 %v3394, 16
        %v3400 = vmul.u32 %v3396, %v3398
        %v3401 = vmul.u32 %v3396, %v3399
        %v3402 = vmul.u32 %v3397, %v3398
        %v3403 = vmul.u32 %v3397, %v3399
        %v3404 = vshll.u32 %v3401, 16
        %v3405 = vshrl.u32 %v3401, 16
        %v3406 = vshll.u32 %v3402, 16
        %v3407 = vshrl.u32 %v3402, 16
        %vm3408 = vc.u32 %v3400, %v3404
        %v3409 = vsel %vm3408, 1, 0
        %v3410 = vadd.s32 %v3400, %v3404
        %v3411 = vadd.s32 %v3403, %v3409
        %vm3412 = vc.u32 %v3410, %v3406
        %v3413 = vsel %vm3412, 1, 0
        %v3414 = vadd.s32 %v3410, %v3406
        %v3415 = vadd.s32 %v3411, %v3413
        %v3416 = vadd.s32 %v3415, %v3405
        %v3417 = vadd.s32 %v3416, %v3407
        %v3418 = vand.u32 %v3395, 65535
        %v3419 = vshrl.u32 %v3395, 16
        %v3420 = vand.u32 %v3390, 65535
        %v3421 = vshrl.u32 %v3390, 16
        %v3422 = vmul.u32 %v3418, %v3420
        %v3423 = vmul.u32 %v3418, %v3421
        %v3424 = vmul.u32 %v3419, %v3420
        %v3425 = vmul.u32 %v3419, %v3421
        %v3426 = vshll.u32 %v3423, 16
        %v3427 = vshrl.u32 %v3423, 16
        %v3428 = vshll.u32 %v3424, 16
        %v3429 = vshrl.u32 %v3424, 16
        %vm3430 = vc.u32 %v3422, %v3426
        %v3431 = vsel %vm3430, 1, 0
        %v3432 = vadd.s32 %v3422, %v3426
        %v3433 = vadd.s32 %v3425, %v3431
        %vm3434 = vc.u32 %v3432, %v3428
        %v3435 = vsel %vm3434, 1, 0
        %v3436 = vadd.s32 %v3432, %v3428
        %v3437 = vadd.s32 %v3433, %v3435
        %v3438 = vadd.s32 %v3437, %v3427
        %v3439 = vadd.s32 %v3438, %v3429
        %v3440 = vmul.u32 %v3395, %v3386
        %v3441 = vadd.s32 %v3417, %v3436
        %vm3442 = vc.u32 %v3417, %v3436
        %v3443 = vadd.s32 %v3439, 1
        %v3444 = vsel %vm3442, %v3443, %v3439
        %v3445 = vadd.s32 %v3440, %v3444
        %v3446 = vadd.s32 %v3445, 536870912
        %v3447 = vshrl.u32 %v3446, 30
        %v3448 = vshll.u32 %v3447, 30
        %v3449 = vsub.s32 %v3445, %v3448
        %vm3450 = vcmp.lt.s32.totalorder %v3449, 0
        %v3451 = vsub.s32 0, %v3449
        %v3452 = vsel %vm3450, %v3451, %v3449
        %v3453 = vclz %v3452
        %v3454 = vsub.s32 %v3453, 2
        %vm3455 = vcmp.gt.s32.totalorder 0, %v3454
        %v3456 = vsel %vm3455, 0, %v3454
        %v3457 = vsub.s32 32, %v3456
        %v3458 = vshll.u32 %v3449, %v3456
        %v3459 = vshrl.u32 %v3441, %v3457
        %v3460 = vor.u32 %v3458, %v3459
        %v3461 = vsub.s32 4294967266, %v3456
        %v3462 = vadd.s32 %v3461, 127
        %v3463 = vshll.u32 %v3462, 23
        %v3464 = vor.u32 4788187, %v3463
        %v3465 = vand.u32 2147483647, %v3464
        %v3467 = vcvt.s32.f32 %v3460
        %v3468 = vmul.f32 %v3467, %v3465
        %v3469 = vxor.u32 %v3468, 2147483648
        %v3470 = vsel %vm3349, %v3469, %v3468
        %v3471 = vsub.s32 4, %v3447
        %v3472 = vsel %vm3349, %v3471, %v3447
        %v3473 = vsel %vm3348, %v382, %v3470
        %v3474 = vsel %vm3348, 0, %v3472
        %v3475 = vmul.f32 %v3473, %v3473
        %v3476 = vmul.f32 %v3475, -0.001358992
        %v3477 = vadd.f32 %v3476, 0.041655596
        %v3478 = vmul.f32 %v3475, %v3477
        %v3479 = vadd.f32 %v3478, -0.4999988
        %v3480 = vmul.f32 %v3475, %v3479
        %v3481 = vadd.f32 1.0, %v3480
        %v3482 = vmul.f32 %v3473, %v3473
        %v3483 = vmul.f32 %v3482, -0.00019511016
        %v3484 = vadd.f32 %v3483, 0.008332121
        %v3485 = vmul.f32 %v3482, %v3484
        %v3486 = vadd.f32 %v3485, -0.16666654
        %v3487 = vmul.f32 %v3482, %v3486
        %v3488 = vadd.f32 %v3487, 1.0
        %v3489 = vmul.f32 %v3488, %v3473
        %vm3490 = vweird.f32 %v382
        %v3491 = vadd.s32 %v3474, 3
        %v3492 = vand.u32 %v3491, 3
        %vm3493 = vcmp.lt.s32.totalorder %v3492, 2
        %vm3494 = vcmp.eq.s32.totalorder %v3492, 0
        %v3495 = vxor.u32 %v3489, 2147483648
        %v3496 = vsel %vm3494, %v3481, %v3495
        %vm3497 = vcmp.eq.s32.totalorder %v3492, 2
        %v3498 = vxor.u32 %v3481, 2147483648
        %v3499 = vsel %vm3497, %v3498, %v3489
        %v3500 = vsel %vm3493, %v3496, %v3499
        %v3501 = vsel %vm3490, nan, %v3500
        %v3502 = vand.u32 2147483647, %v320
        %vm3503 = vcmp.le.f32.partialorder %v3502, 0.7853982
        %vm3504 = vcmp.lt.s32.totalorder %v320, 0
        %v3505 = vand.u32 %v320, 2139095040
        %v3506 = vshrl.u32 %v3505, 23
        %v3507 = vsub.s32 %v3506, 127
        %v3508 = vand.u32 2147483647, %v320
        %v3509 = vand.u32 %v3508, 8388607
        %v3510 = vor.u32 %v3509, 8388608
        %v3511 = vsub.s32 0, %v3510
        %v3512 = vadd.s32 %v3507, 1
        %vm3513 = vcmp.gt.s32.totalorder %v3512, 0
        %v3514 = vsel %vm3513, %v3512, 0
        %v3515 = vshrl.u32 %v3514, 5
        %v3516 = vand.u32 %v3514, 31
        %v3517 = vsub.s32 32, %v3516
        %v3518 = vshrl.u32 683565275, %v3517
        %v3519 = vshll.u32 683565275, %v3516
        %v3520 = vshrl.u32 2475754826, %v3517
        %v3521 = vor.u32 %v3519, %v3520
        %v3522 = vshll.u32 2475754826, %v3516
        %v3523 = vshrl.u32 2131351028, %v3517
        %v3524 = vor.u32 %v3522, %v3523
        %v3525 = vshll.u32 2131351028, %v3516
        %v3526 = vshrl.u32 2102212464, %v3517
        %v3527 = vor.u32 %v3525, %v3526
        %v3528 = vshll.u32 2102212464, %v3516
        %v3529 = vshrl.u32 920167782, %v3517
        %v3530 = vor.u32 %v3528, %v3529
        %v3531 = vshll.u32 920167782, %v3516
        %v3532 = vshrl.u32 1326507024, %v3517
        %v3533 = vor.u32 %v3531, %v3532
        %vm3534 = vcmp.lt.s32.totalorder %v3515, 1
        %vm3535 = vcmp.lt.s32.totalorder %v3515, 2
        %vm3536 = vcmp.lt.s32.totalorder %v3515, 3
        %vm3537 = vcmp.lt.s32.totalorder %v3515, 4
        %v3538 = vsel %vm3534, %v3518, %v3521
        %v3539 = vsel %vm3537, %v3527, 2102212464
        %v3540 = vsel %vm3536, %v3524, %v3539
        %v3541 = vsel %vm3535, %v3538, %v3540
        %v3542 = vsel %vm3534, %v3521, %v3524
        %v3543 = vsel %vm3537, %v3530, 920167782
        %v3544 = vsel %vm3536, %v3527, %v3543
        %v3545 = vsel %vm3535, %v3542, %v3544
        %v3546 = vsel %vm3534, %v3524, %v3527
        %v3547 = vsel %vm3537, %v3533, 1326507024
        %v3548 = vsel %vm3536, %v3530, %v3547
        %v3549 = vsel %vm3535, %v3546, %v3548
        %v3550 = vshll.u32 %v3510, 8
        %v3551 = vand.u32 %v3550, 65535
        %v3552 = vshrl.u32 %v3550, 16
        %v3553 = vand.u32 %v3549, 65535
        %v3554 = vshrl.u32 %v3549, 16
        %v3555 = vmul.u32 %v3551, %v3553
        %v3556 = vmul.u32 %v3551, %v3554
        %v3557 = vmul.u32 %v3552, %v3553
        %v3558 = vmul.u32 %v3552, %v3554
        %v3559 = vshll.u32 %v3556, 16
        %v3560 = vshrl.u32 %v3556, 16
        %v3561 = vshll.u32 %v3557, 16
        %v3562 = vshrl.u32 %v3557, 16
        %vm3563 = vc.u32 %v3555, %v3559
        %v3564 = vsel %vm3563, 1, 0
        %v3565 = vadd.s32 %v3555, %v3559
        %v3566 = vadd.s32 %v3558, %v3564
        %vm3567 = vc.u32 %v3565, %v3561
        %v3568 = vsel %vm3567, 1, 0
        %v3569 = vadd.s32 %v3565, %v3561
        %v3570 = vadd.s32 %v3566, %v3568
        %v3571 = vadd.s32 %v3570, %v3560
        %v3572 = vadd.s32 %v3571, %v3562
        %v3573 = vand.u32 %v3550, 65535
        %v3574 = vshrl.u32 %v3550, 16
        %v3575 = vand.u32 %v3545, 65535
        %v3576 = vshrl.u32 %v3545, 16
        %v3577 = vmul.u32 %v3573, %v3575
        %v3578 = vmul.u32 %v3573, %v3576
        %v3579 = vmul.u32 %v3574, %v3575
        %v3580 = vmul.u32 %v3574, %v3576
        %v3581 = vshll.u32 %v3578, 16
        %v3582 = vshrl.u32 %v3578, 16
        %v3583 = vshll.u32 %v3579, 16
        %v3584 = vshrl.u32 %v3579, 16
        %vm3585 = vc.u32 %v3577, %v3581
        %v3586 = vsel %vm3585, 1, 0
        %v3587 = vadd.s32 %v3577, %v3581
        %v3588 = vadd.s32 %v3580, %v3586
        %vm3589 = vc.u32 %v3587, %v3583
        %v3590 = vsel %vm3589, 1, 0
        %v3591 = vadd.s32 %v3587, %v3583
        %v3592 = vadd.s32 %v3588, %v3590
        %v3593 = vadd.s32 %v3592, %v3582
        %v3594 = vadd.s32 %v3593, %v3584
        %v3595 = vmul.u32 %v3550, %v3541
        %v3596 = vadd.s32 %v3572, %v3591
        %vm3597 = vc.u32 %v3572, %v3591
        %v3598 = vadd.s32 %v3594, 1
        %v3599 = vsel %vm3597, %v3598, %v3594
        %v3600 = vadd.s32 %v3595, %v3599
        %v3601 = vadd.s32 %v3600, 536870912
        %v3602 = vshrl.u32 %v3601, 30
        %v3603 = vshll.u32 %v3602, 30
        %v3604 = vsub.s32 %v3600, %v3603
        %vm3605 = vcmp.lt.s32.totalorder %v3604, 0
        %v3606 = vsub.s32 0, %v3604
        %v3607 = vsel %vm3605, %v3606, %v3604
        %v3608 = vclz %v3607
        %v3609 = vsub.s32 %v3608, 2
        %vm3610 = vcmp.gt.s32.totalorder 0, %v3609
        %v3611 = vsel %vm3610, 0, %v3609
        %v3612 = vsub.s32 32, %v3611
        %v3613 = vshll.u32 %v3604, %v3611
        %v3614 = vshrl.u32 %v3596, %v3612
        %v3615 = vor.u32 %v3613, %v3614
        %v3616 = vsub.s32 4294967266, %v3611
        %v3617 = vadd.s32 %v3616, 127
        %v3618 = vshll.u32 %v3617, 23
        %v3619 = vor.u32 4788187, %v3618
        %v3620 = vand.u32 2147483647, %v3619
        %v3622 = vcvt.s32.f32 %v3615
        %v3623 = vmul.f32 %v3622, %v3620
        %v3624 = vxor.u32 %v3623, 2147483648
        %v3625 = vsel %vm3504, %v3624, %v3623
        %v3626 = vsub.s32 4, %v3602
        %v3627 = vsel %vm3504, %v3626, %v3602
        %v3628 = vsel %vm3503, %v320, %v3625
        %v3629 = vsel %vm3503, 0, %v3627
        %v3630 = vmul.f32 %v3628, %v3628
        %v3631 = vmul.f32 %v3630, -0.001358992
        %v3632 = vadd.f32 %v3631, 0.041655596
        %v3633 = vmul.f32 %v3630, %v3632
        %v3634 = vadd.f32 %v3633, -0.4999988
        %v3635 = vmul.f32 %v3630, %v3634
        %v3636 = vadd.f32 1.0, %v3635
        %v3637 = vmul.f32 %v3628, %v3628
        %v3638 = vmul.f32 %v3637, -0.00019511016
        %v3639 = vadd.f32 %v3638, 0.008332121
        %v3640 = vmul.f32 %v3637, %v3639
        %v3641 = vadd.f32 %v3640, -0.16666654
        %v3642 = vmul.f32 %v3637, %v3641
        %v3643 = vadd.f32 %v3642, 1.0
        %v3644 = vmul.f32 %v3643, %v3628
        %vm3645 = vweird.f32 %v320
        %v3646 = vadd.s32 %v3629, 3
        %v3647 = vand.u32 %v3646, 3
        %vm3648 = vcmp.lt.s32.totalorder %v3647, 2
        %vm3649 = vcmp.eq.s32.totalorder %v3647, 0
        %v3650 = vxor.u32 %v3644, 2147483648
        %v3651 = vsel %vm3649, %v3636, %v3650
        %vm3652 = vcmp.eq.s32.totalorder %v3647, 2
        %v3653 = vxor.u32 %v3636, 2147483648
        %v3654 = vsel %vm3652, %v3653, %v3644
        %v3655 = vsel %vm3648, %v3651, %v3654
        %v3656 = vsel %vm3645, nan, %v3655
        %v3657 = vand.u32 2147483647, %v385
        %vm3658 = vcmp.le.f32.partialorder %v3657, 0.7853982
        %vm3659 = vcmp.lt.s32.totalorder %v385, 0
        %v3660 = vand.u32 %v385, 2139095040
        %v3661 = vshrl.u32 %v3660, 23
        %v3662 = vsub.s32 %v3661, 127
        %v3663 = vand.u32 2147483647, %v385
        %v3664 = vand.u32 %v3663, 8388607
        %v3665 = vor.u32 %v3664, 8388608
        %v3666 = vsub.s32 0, %v3665
        %v3667 = vadd.s32 %v3662, 1
        %vm3668 = vcmp.gt.s32.totalorder %v3667, 0
        %v3669 = vsel %vm3668, %v3667, 0
        %v3670 = vshrl.u32 %v3669, 5
        %v3671 = vand.u32 %v3669, 31
        %v3672 = vsub.s32 32, %v3671
        %v3673 = vshrl.u32 683565275, %v3672
        %v3674 = vshll.u32 683565275, %v3671
        %v3675 = vshrl.u32 2475754826, %v3672
        %v3676 = vor.u32 %v3674, %v3675
        %v3677 = vshll.u32 2475754826, %v3671
        %v3678 = vshrl.u32 2131351028, %v3672
        %v3679 = vor.u32 %v3677, %v3678
        %v3680 = vshll.u32 2131351028, %v3671
        %v3681 = vshrl.u32 2102212464, %v3672
        %v3682 = vor.u32 %v3680, %v3681
        %v3683 = vshll.u32 2102212464, %v3671
        %v3684 = vshrl.u32 920167782, %v3672
        %v3685 = vor.u32 %v3683, %v3684
        %v3686 = vshll.u32 920167782, %v3671
        %v3687 = vshrl.u32 1326507024, %v3672
        %v3688 = vor.u32 %v3686, %v3687
        %vm3689 = vcmp.lt.s32.totalorder %v3670, 1
        %vm3690 = vcmp.lt.s32.totalorder %v3670, 2
        %vm3691 = vcmp.lt.s32.totalorder %v3670, 3
        %vm3692 = vcmp.lt.s32.totalorder %v3670, 4
        %v3693 = vsel %vm3689, %v3673, %v3676
        %v3694 = vsel %vm3692, %v3682, 2102212464
        %v3695 = vsel %vm3691, %v3679, %v3694
        %v3696 = vsel %vm3690, %v3693, %v3695
        %v3697 = vsel %vm3689, %v3676, %v3679
        %v3698 = vsel %vm3692, %v3685, 920167782
        %v3699 = vsel %vm3691, %v3682, %v3698
        %v3700 = vsel %vm3690, %v3697, %v3699
        %v3701 = vsel %vm3689, %v3679, %v3682
        %v3702 = vsel %vm3692, %v3688, 1326507024
        %v3703 = vsel %vm3691, %v3685, %v3702
        %v3704 = vsel %vm3690, %v3701, %v3703
        %v3705 = vshll.u32 %v3665, 8
        %v3706 = vand.u32 %v3705, 65535
        %v3707 = vshrl.u32 %v3705, 16
        %v3708 = vand.u32 %v3704, 65535
        %v3709 = vshrl.u32 %v3704, 16
        %v3710 = vmul.u32 %v3706, %v3708
        %v3711 = vmul.u32 %v3706, %v3709
        %v3712 = vmul.u32 %v3707, %v3708
        %v3713 = vmul.u32 %v3707, %v3709
        %v3714 = vshll.u32 %v3711, 16
        %v3715 = vshrl.u32 %v3711, 16
        %v3716 = vshll.u32 %v3712, 16
        %v3717 = vshrl.u32 %v3712, 16
        %vm3718 = vc.u32 %v3710, %v3714
        %v3719 = vsel %vm3718, 1, 0
        %v3720 = vadd.s32 %v3710, %v3714
        %v3721 = vadd.s32 %v3713, %v3719
        %vm3722 = vc.u32 %v3720, %v3716
        %v3723 = vsel %vm3722, 1, 0
        %v3724 = vadd.s32 %v3720, %v3716
        %v3725 = vadd.s32 %v3721, %v3723
        %v3726 = vadd.s32 %v3725, %v3715
        %v3727 = vadd.s32 %v3726, %v3717
        %v3728 = vand.u32 %v3705, 65535
        %v3729 = vshrl.u32 %v3705, 16
        %v3730 = vand.u32 %v3700, 65535
        %v3731 = vshrl.u32 %v3700, 16
        %v3732 = vmul.u32 %v3728, %v3730
        %v3733 = vmul.u32 %v3728, %v3731
        %v3734 = vmul.u32 %v3729, %v3730
        %v3735 = vmul.u32 %v3729, %v3731
        %v3736 = vshll.u32 %v3733, 16
        %v3737 = vshrl.u32 %v3733, 16
        %v3738 = vshll.u32 %v3734, 16
        %v3739 = vshrl.u32 %v3734, 16
        %vm3740 = vc.u32 %v3732, %v3736
        %v3741 = vsel %vm3740, 1, 0
        %v3742 = vadd.s32 %v3732, %v3736
        %v3743 = vadd.s32 %v3735, %v3741
        %vm3744 = vc.u32 %v3742, %v3738
        %v3745 = vsel %vm3744, 1, 0
        %v3746 = vadd.s32 %v3742, %v3738
        %v3747 = vadd.s32 %v3743, %v3745
        %v3748 = vadd.s32 %v3747, %v3737
        %v3749 = vadd.s32 %v3748, %v3739
        %v3750 = vmul.u32 %v3705, %v3696
        %v3751 = vadd.s32 %v3727, %v3746
        %vm3752 = vc.u32 %v3727, %v3746
        %v3753 = vadd.s32 %v3749, 1
        %v3754 = vsel %vm3752, %v3753, %v3749
        %v3755 = vadd.s32 %v3750, %v3754
        %v3756 = vadd.s32 %v3755, 536870912
        %v3757 = vshrl.u32 %v3756, 30
        %v3758 = vshll.u32 %v3757, 30
        %v3759 = vsub.s32 %v3755, %v3758
        %vm3760 = vcmp.lt.s32.totalorder %v3759, 0
        %v3761 = vsub.s32 0, %v3759
        %v3762 = vsel %vm3760, %v3761, %v3759
        %v3763 = vclz %v3762
        %v3764 = vsub.s32 %v3763, 2
        %vm3765 = vcmp.gt.s32.totalorder 0, %v3764
        %v3766 = vsel %vm3765, 0, %v3764
        %v3767 = vsub.s32 32, %v3766
        %v3768 = vshll.u32 %v3759, %v3766
        %v3769 = vshrl.u32 %v3751, %v3767
        %v3770 = vor.u32 %v3768, %v3769
        %v3771 = vsub.s32 4294967266, %v3766
        %v3772 = vadd.s32 %v3771, 127
        %v3773 = vshll.u32 %v3772, 23
        %v3774 = vor.u32 4788187, %v3773
        %v3775 = vand.u32 2147483647, %v3774
        %v3777 = vcvt.s32.f32 %v3770
        %v3778 = vmul.f32 %v3777, %v3775
        %v3779 = vxor.u32 %v3778, 2147483648
        %v3780 = vsel %vm3659, %v3779, %v3778
        %v3781 = vsub.s32 4, %v3757
        %v3782 = vsel %vm3659, %v3781, %v3757
        %v3783 = vsel %vm3658, %v385, %v3780
        %v3784 = vsel %vm3658, 0, %v3782
        %v3785 = vmul.f32 %v3783, %v3783
        %v3786 = vmul.f32 %v3785, -0.001358992
        %v3787 = vadd.f32 %v3786, 0.041655596
        %v3788 = vmul.f32 %v3785, %v3787
        %v3789 = vadd.f32 %v3788, -0.4999988
        %v3790 = vmul.f32 %v3785, %v3789
        %v3791 = vadd.f32 1.0, %v3790
        %v3792 = vmul.f32 %v3783, %v3783
        %v3793 = vmul.f32 %v3792, -0.00019511016
        %v3794 = vadd.f32 %v3793, 0.008332121
        %v3795 = vmul.f32 %v3792, %v3794
        %v3796 = vadd.f32 %v3795, -0.16666654
        %v3797 = vmul.f32 %v3792, %v3796
        %v3798 = vadd.f32 %v3797, 1.0
        %v3799 = vmul.f32 %v3798, %v3783
        %vm3800 = vweird.f32 %v385
        %v3801 = vadd.s32 %v3784, 3
        %v3802 = vand.u32 %v3801, 3
        %vm3803 = vcmp.lt.s32.totalorder %v3802, 2
        %vm3804 = vcmp.eq.s32.totalorder %v3802, 0
        %v3805 = vxor.u32 %v3799, 2147483648
        %v3806 = vsel %vm3804, %v3791, %v3805
        %vm3807 = vcmp.eq.s32.totalorder %v3802, 2
        %v3808 = vxor.u32 %v3791, 2147483648
        %v3809 = vsel %vm3807, %v3808, %v3799
        %v3810 = vsel %vm3803, %v3806, %v3809
        %v3811 = vsel %vm3800, nan, %v3810
        %v3812 = vand.u32 2147483647, %v323
        %vm3813 = vcmp.le.f32.partialorder %v3812, 0.7853982
        %vm3814 = vcmp.lt.s32.totalorder %v323, 0
        %v3815 = vand.u32 %v323, 2139095040
        %v3816 = vshrl.u32 %v3815, 23
        %v3817 = vsub.s32 %v3816, 127
        %v3818 = vand.u32 2147483647, %v323
        %v3819 = vand.u32 %v3818, 8388607
        %v3820 = vor.u32 %v3819, 8388608
        %v3821 = vsub.s32 0, %v3820
        %v3822 = vadd.s32 %v3817, 1
        %vm3823 = vcmp.gt.s32.totalorder %v3822, 0
        %v3824 = vsel %vm3823, %v3822, 0
        %v3825 = vshrl.u32 %v3824, 5
        %v3826 = vand.u32 %v3824, 31
        %v3827 = vsub.s32 32, %v3826
        %v3828 = vshrl.u32 683565275, %v3827
        %v3829 = vshll.u32 683565275, %v3826
        %v3830 = vshrl.u32 2475754826, %v3827
        %v3831 = vor.u32 %v3829, %v3830
        %v3832 = vshll.u32 2475754826, %v3826
        %v3833 = vshrl.u32 2131351028, %v3827
        %v3834 = vor.u32 %v3832, %v3833
        %v3835 = vshll.u32 2131351028, %v3826
        %v3836 = vshrl.u32 2102212464, %v3827
        %v3837 = vor.u32 %v3835, %v3836
        %v3838 = vshll.u32 2102212464, %v3826
        %v3839 = vshrl.u32 920167782, %v3827
        %v3840 = vor.u32 %v3838, %v3839
        %v3841 = vshll.u32 920167782, %v3826
        %v3842 = vshrl.u32 1326507024, %v3827
        %v3843 = vor.u32 %v3841, %v3842
        %vm3844 = vcmp.lt.s32.totalorder %v3825, 1
        %vm3845 = vcmp.lt.s32.totalorder %v3825, 2
        %vm3846 = vcmp.lt.s32.totalorder %v3825, 3
        %vm3847 = vcmp.lt.s32.totalorder %v3825, 4
        %v3848 = vsel %vm3844, %v3828, %v3831
        %v3849 = vsel %vm3847, %v3837, 2102212464
        %v3850 = vsel %vm3846, %v3834, %v3849
        %v3851 = vsel %vm3845, %v3848, %v3850
        %v3852 = vsel %vm3844, %v3831, %v3834
        %v3853 = vsel %vm3847, %v3840, 920167782
        %v3854 = vsel %vm3846, %v3837, %v3853
        %v3855 = vsel %vm3845, %v3852, %v3854
        %v3856 = vsel %vm3844, %v3834, %v3837
        %v3857 = vsel %vm3847, %v3843, 1326507024
        %v3858 = vsel %vm3846, %v3840, %v3857
        %v3859 = vsel %vm3845, %v3856, %v3858
        %v3860 = vshll.u32 %v3820, 8
        %v3861 = vand.u32 %v3860, 65535
        %v3862 = vshrl.u32 %v3860, 16
        %v3863 = vand.u32 %v3859, 65535
        %v3864 = vshrl.u32 %v3859, 16
        %v3865 = vmul.u32 %v3861, %v3863
        %v3866 = vmul.u32 %v3861, %v3864
        %v3867 = vmul.u32 %v3862, %v3863
        %v3868 = vmul.u32 %v3862, %v3864
        %v3869 = vshll.u32 %v3866, 16
        %v3870 = vshrl.u32 %v3866, 16
        %v3871 = vshll.u32 %v3867, 16
        %v3872 = vshrl.u32 %v3867, 16
        %vm3873 = vc.u32 %v3865, %v3869
        %v3874 = vsel %vm3873, 1, 0
        %v3875 = vadd.s32 %v3865, %v3869
        %v3876 = vadd.s32 %v3868, %v3874
        %vm3877 = vc.u32 %v3875, %v3871
        %v3878 = vsel %vm3877, 1, 0
        %v3879 = vadd.s32 %v3875, %v3871
        %v3880 = vadd.s32 %v3876, %v3878
        %v3881 = vadd.s32 %v3880, %v3870
        %v3882 = vadd.s32 %v3881, %v3872
        %v3883 = vand.u32 %v3860, 65535
        %v3884 = vshrl.u32 %v3860, 16
        %v3885 = vand.u32 %v3855, 65535
        %v3886 = vshrl.u32 %v3855, 16
        %v3887 = vmul.u32 %v3883, %v3885
        %v3888 = vmul.u32 %v3883, %v3886
        %v3889 = vmul.u32 %v3884, %v3885
        %v3890 = vmul.u32 %v3884, %v3886
        %v3891 = vshll.u32 %v3888, 16
        %v3892 = vshrl.u32 %v3888, 16
        %v3893 = vshll.u32 %v3889, 16
        %v3894 = vshrl.u32 %v3889, 16
        %vm3895 = vc.u32 %v3887, %v3891
        %v3896 = vsel %vm3895, 1, 0
        %v3897 = vadd.s32 %v3887, %v3891
        %v3898 = vadd.s32 %v3890, %v3896
        %vm3899 = vc.u32 %v3897, %v3893
        %v3900 = vsel %vm3899, 1, 0
        %v3901 = vadd.s32 %v3897, %v3893
        %v3902 = vadd.s32 %v3898, %v3900
        %v3903 = vadd.s32 %v3902, %v3892
        %v3904 = vadd.s32 %v3903, %v3894
        %v3905 = vmul.u32 %v3860, %v3851
        %v3906 = vadd.s32 %v3882, %v3901
        %vm3907 = vc.u32 %v3882, %v3901
        %v3908 = vadd.s32 %v3904, 1
        %v3909 = vsel %vm3907, %v3908, %v3904
        %v3910 = vadd.s32 %v3905, %v3909
        %v3911 = vadd.s32 %v3910, 536870912
        %v3912 = vshrl.u32 %v3911, 30
        %v3913 = vshll.u32 %v3912, 30
        %v3914 = vsub.s32 %v3910, %v3913
        %vm3915 = vcmp.lt.s32.totalorder %v3914, 0
        %v3916 = vsub.s32 0, %v3914
        %v3917 = vsel %vm3915, %v3916, %v3914
        %v3918 = vclz %v3917
        %v3919 = vsub.s32 %v3918, 2
        %vm3920 = vcmp.gt.s32.totalorder 0, %v3919
        %v3921 = vsel %vm3920, 0, %v3919
        %v3922 = vsub.s32 32, %v3921
        %v3923 = vshll.u32 %v3914, %v3921
        %v3924 = vshrl.u32 %v3906, %v3922
        %v3925 = vor.u32 %v3923, %v3924
        %v3926 = vsub.s32 4294967266, %v3921
        %v3927 = vadd.s32 %v3926, 127
        %v3928 = vshll.u32 %v3927, 23
        %v3929 = vor.u32 4788187, %v3928
        %v3930 = vand.u32 2147483647, %v3929
        %v3932 = vcvt.s32.f32 %v3925
        %v3933 = vmul.f32 %v3932, %v3930
        %v3934 = vxor.u32 %v3933, 2147483648
        %v3935 = vsel %vm3814, %v3934, %v3933
        %v3936 = vsub.s32 4, %v3912
        %v3937 = vsel %vm3814, %v3936, %v3912
        %v3938 = vsel %vm3813, %v323, %v3935
        %v3939 = vsel %vm3813, 0, %v3937
        %v3940 = vmul.f32 %v3938, %v3938
        %v3941 = vmul.f32 %v3940, -0.001358992
        %v3942 = vadd.f32 %v3941, 0.041655596
        %v3943 = vmul.f32 %v3940, %v3942
        %v3944 = vadd.f32 %v3943, -0.4999988
        %v3945 = vmul.f32 %v3940, %v3944
        %v3946 = vadd.f32 1.0, %v3945
        %v3947 = vmul.f32 %v3938, %v3938
        %v3948 = vmul.f32 %v3947, -0.00019511016
        %v3949 = vadd.f32 %v3948, 0.008332121
        %v3950 = vmul.f32 %v3947, %v3949
        %v3951 = vadd.f32 %v3950, -0.16666654
        %v3952 = vmul.f32 %v3947, %v3951
        %v3953 = vadd.f32 %v3952, 1.0
        %v3954 = vmul.f32 %v3953, %v3938
        %vm3955 = vweird.f32 %v323
        %v3956 = vadd.s32 %v3939, 3
        %v3957 = vand.u32 %v3956, 3
        %vm3958 = vcmp.lt.s32.totalorder %v3957, 2
        %vm3959 = vcmp.eq.s32.totalorder %v3957, 0
        %v3960 = vxor.u32 %v3954, 2147483648
        %v3961 = vsel %vm3959, %v3946, %v3960
        %vm3962 = vcmp.eq.s32.totalorder %v3957, 2
        %v3963 = vxor.u32 %v3946, 2147483648
        %v3964 = vsel %vm3962, %v3963, %v3954
        %v3965 = vsel %vm3958, %v3961, %v3964
        %v3966 = vsel %vm3955, nan, %v3965
        %v3967 = vand.u32 2147483647, %v388
        %vm3968 = vcmp.le.f32.partialorder %v3967, 0.7853982
        %vm3969 = vcmp.lt.s32.totalorder %v388, 0
        %v3970 = vand.u32 %v388, 2139095040
        %v3971 = vshrl.u32 %v3970, 23
        %v3972 = vsub.s32 %v3971, 127
        %v3973 = vand.u32 2147483647, %v388
        %v3974 = vand.u32 %v3973, 8388607
        %v3975 = vor.u32 %v3974, 8388608
        %v3976 = vsub.s32 0, %v3975
        %v3977 = vadd.s32 %v3972, 1
        %vm3978 = vcmp.gt.s32.totalorder %v3977, 0
        %v3979 = vsel %vm3978, %v3977, 0
        %v3980 = vshrl.u32 %v3979, 5
        %v3981 = vand.u32 %v3979, 31
        %v3982 = vsub.s32 32, %v3981
        %v3983 = vshrl.u32 683565275, %v3982
        %v3984 = vshll.u32 683565275, %v3981
        %v3985 = vshrl.u32 2475754826, %v3982
        %v3986 = vor.u32 %v3984, %v3985
        %v3987 = vshll.u32 2475754826, %v3981
        %v3988 = vshrl.u32 2131351028, %v3982
        %v3989 = vor.u32 %v3987, %v3988
        %v3990 = vshll.u32 2131351028, %v3981
        %v3991 = vshrl.u32 2102212464, %v3982
        %v3992 = vor.u32 %v3990, %v3991
        %v3993 = vshll.u32 2102212464, %v3981
        %v3994 = vshrl.u32 920167782, %v3982
        %v3995 = vor.u32 %v3993, %v3994
        %v3996 = vshll.u32 920167782, %v3981
        %v3997 = vshrl.u32 1326507024, %v3982
        %v3998 = vor.u32 %v3996, %v3997
        %vm3999 = vcmp.lt.s32.totalorder %v3980, 1
        %vm4000 = vcmp.lt.s32.totalorder %v3980, 2
        %vm4001 = vcmp.lt.s32.totalorder %v3980, 3
        %vm4002 = vcmp.lt.s32.totalorder %v3980, 4
        %v4003 = vsel %vm3999, %v3983, %v3986
        %v4004 = vsel %vm4002, %v3992, 2102212464
        %v4005 = vsel %vm4001, %v3989, %v4004
        %v4006 = vsel %vm4000, %v4003, %v4005
        %v4007 = vsel %vm3999, %v3986, %v3989
        %v4008 = vsel %vm4002, %v3995, 920167782
        %v4009 = vsel %vm4001, %v3992, %v4008
        %v4010 = vsel %vm4000, %v4007, %v4009
        %v4011 = vsel %vm3999, %v3989, %v3992
        %v4012 = vsel %vm4002, %v3998, 1326507024
        %v4013 = vsel %vm4001, %v3995, %v4012
        %v4014 = vsel %vm4000, %v4011, %v4013
        %v4015 = vshll.u32 %v3975, 8
        %v4016 = vand.u32 %v4015, 65535
        %v4017 = vshrl.u32 %v4015, 16
        %v4018 = vand.u32 %v4014, 65535
        %v4019 = vshrl.u32 %v4014, 16
        %v4020 = vmul.u32 %v4016, %v4018
        %v4021 = vmul.u32 %v4016, %v4019
        %v4022 = vmul.u32 %v4017, %v4018
        %v4023 = vmul.u32 %v4017, %v4019
        %v4024 = vshll.u32 %v4021, 16
        %v4025 = vshrl.u32 %v4021, 16
        %v4026 = vshll.u32 %v4022, 16
        %v4027 = vshrl.u32 %v4022, 16
        %vm4028 = vc.u32 %v4020, %v4024
        %v4029 = vsel %vm4028, 1, 0
        %v4030 = vadd.s32 %v4020, %v4024
        %v4031 = vadd.s32 %v4023, %v4029
        %vm4032 = vc.u32 %v4030, %v4026
        %v4033 = vsel %vm4032, 1, 0
        %v4034 = vadd.s32 %v4030, %v4026
        %v4035 = vadd.s32 %v4031, %v4033
        %v4036 = vadd.s32 %v4035, %v4025
        %v4037 = vadd.s32 %v4036, %v4027
        %v4038 = vand.u32 %v4015, 65535
        %v4039 = vshrl.u32 %v4015, 16
        %v4040 = vand.u32 %v4010, 65535
        %v4041 = vshrl.u32 %v4010, 16
        %v4042 = vmul.u32 %v4038, %v4040
        %v4043 = vmul.u32 %v4038, %v4041
        %v4044 = vmul.u32 %v4039, %v4040
        %v4045 = vmul.u32 %v4039, %v4041
        %v4046 = vshll.u32 %v4043, 16
        %v4047 = vshrl.u32 %v4043, 16
        %v4048 = vshll.u32 %v4044, 16
        %v4049 = vshrl.u32 %v4044, 16
        %vm4050 = vc.u32 %v4042, %v4046
        %v4051 = vsel %vm4050, 1, 0
        %v4052 = vadd.s32 %v4042, %v4046
        %v4053 = vadd.s32 %v4045, %v4051
        %vm4054 = vc.u32 %v4052, %v4048
        %v4055 = vsel %vm4054, 1, 0
        %v4056 = vadd.s32 %v4052, %v4048
        %v4057 = vadd.s32 %v4053, %v4055
        %v4058 = vadd.s32 %v4057, %v4047
        %v4059 = vadd.s32 %v4058, %v4049
        %v4060 = vmul.u32 %v4015, %v4006
        %v4061 = vadd.s32 %v4037, %v4056
        %vm4062 = vc.u32 %v4037, %v4056
        %v4063 = vadd.s32 %v4059, 1
        %v4064 = vsel %vm4062, %v4063, %v4059
        %v4065 = vadd.s32 %v4060, %v4064
        %v4066 = vadd.s32 %v4065, 536870912
        %v4067 = vshrl.u32 %v4066, 30
        %v4068 = vshll.u32 %v4067, 30
        %v4069 = vsub.s32 %v4065, %v4068
        %vm4070 = vcmp.lt.s32.totalorder %v4069, 0
        %v4071 = vsub.s32 0, %v4069
        %v4072 = vsel %vm4070, %v4071, %v4069
        %v4073 = vclz %v4072
        %v4074 = vsub.s32 %v4073, 2
        %vm4075 = vcmp.gt.s32.totalorder 0, %v4074
        %v4076 = vsel %vm4075, 0, %v4074
        %v4077 = vsub.s32 32, %v4076
        %v4078 = vshll.u32 %v4069, %v4076
        %v4079 = vshrl.u32 %v4061, %v4077
        %v4080 = vor.u32 %v4078, %v4079
        %v4081 = vsub.s32 4294967266, %v4076
        %v4082 = vadd.s32 %v4081, 127
        %v4083 = vshll.u32 %v4082, 23
        %v4084 = vor.u32 4788187, %v4083
        %v4085 = vand.u32 2147483647, %v4084
        %v4087 = vcvt.s32.f32 %v4080
        %v4088 = vmul.f32 %v4087, %v4085
        %v4089 = vxor.u32 %v4088, 2147483648
        %v4090 = vsel %vm3969, %v4089, %v4088
        %v4091 = vsub.s32 4, %v4067
        %v4092 = vsel %vm3969, %v4091, %v4067
        %v4093 = vsel %vm3968, %v388, %v4090
        %v4094 = vsel %vm3968, 0, %v4092
        %v4095 = vmul.f32 %v4093, %v4093
        %v4096 = vmul.f32 %v4095, -0.001358992
        %v4097 = vadd.f32 %v4096, 0.041655596
        %v4098 = vmul.f32 %v4095, %v4097
        %v4099 = vadd.f32 %v4098, -0.4999988
        %v4100 = vmul.f32 %v4095, %v4099
        %v4101 = vadd.f32 1.0, %v4100
        %v4102 = vmul.f32 %v4093, %v4093
        %v4103 = vmul.f32 %v4102, -0.00019511016
        %v4104 = vadd.f32 %v4103, 0.008332121
        %v4105 = vmul.f32 %v4102, %v4104
        %v4106 = vadd.f32 %v4105, -0.16666654
        %v4107 = vmul.f32 %v4102, %v4106
        %v4108 = vadd.f32 %v4107, 1.0
        %v4109 = vmul.f32 %v4108, %v4093
        %vm4110 = vweird.f32 %v388
        %v4111 = vadd.s32 %v4094, 3
        %v4112 = vand.u32 %v4111, 3
        %vm4113 = vcmp.lt.s32.totalorder %v4112, 2
        %vm4114 = vcmp.eq.s32.totalorder %v4112, 0
        %v4115 = vxor.u32 %v4109, 2147483648
        %v4116 = vsel %vm4114, %v4101, %v4115
        %vm4117 = vcmp.eq.s32.totalorder %v4112, 2
        %v4118 = vxor.u32 %v4101, 2147483648
        %v4119 = vsel %vm4117, %v4118, %v4109
        %v4120 = vsel %vm4113, %v4116, %v4119
        %v4121 = vsel %vm4110, nan, %v4120
        %v4122 = vand.u32 2147483647, %v326
        %vm4123 = vcmp.le.f32.partialorder %v4122, 0.7853982
        %vm4124 = vcmp.lt.s32.totalorder %v326, 0
        %v4125 = vand.u32 %v326, 2139095040
        %v4126 = vshrl.u32 %v4125, 23
        %v4127 = vsub.s32 %v4126, 127
        %v4128 = vand.u32 2147483647, %v326
        %v4129 = vand.u32 %v4128, 8388607
        %v4130 = vor.u32 %v4129, 8388608
        %v4131 = vsub.s32 0, %v4130
        %v4132 = vadd.s32 %v4127, 1
        %vm4133 = vcmp.gt.s32.totalorder %v4132, 0
        %v4134 = vsel %vm4133, %v4132, 0
        %v4135 = vshrl.u32 %v4134, 5
        %v4136 = vand.u32 %v4134, 31
        %v4137 = vsub.s32 32, %v4136
        %v4138 = vshrl.u32 683565275, %v4137
        %v4139 = vshll.u32 683565275, %v4136
        %v4140 = vshrl.u32 2475754826, %v4137
        %v4141 = vor.u32 %v4139, %v4140
        %v4142 = vshll.u32 2475754826, %v4136
        %v4143 = vshrl.u32 2131351028, %v4137
        %v4144 = vor.u32 %v4142, %v4143
        %v4145 = vshll.u32 2131351028, %v4136
        %v4146 = vshrl.u32 2102212464, %v4137
        %v4147 = vor.u32 %v4145, %v4146
        %v4148 = vshll.u32 2102212464, %v4136
        %v4149 = vshrl.u32 920167782, %v4137
        %v4150 = vor.u32 %v4148, %v4149
        %v4151 = vshll.u32 920167782, %v4136
        %v4152 = vshrl.u32 1326507024, %v4137
        %v4153 = vor.u32 %v4151, %v4152
        %vm4154 = vcmp.lt.s32.totalorder %v4135, 1
        %vm4155 = vcmp.lt.s32.totalorder %v4135, 2
        %vm4156 = vcmp.lt.s32.totalorder %v4135, 3
        %vm4157 = vcmp.lt.s32.totalorder %v4135, 4
        %v4158 = vsel %vm4154, %v4138, %v4141
        %v4159 = vsel %vm4157, %v4147, 2102212464
        %v4160 = vsel %vm4156, %v4144, %v4159
        %v4161 = vsel %vm4155, %v4158, %v4160
        %v4162 = vsel %vm4154, %v4141, %v4144
        %v4163 = vsel %vm4157, %v4150, 920167782
        %v4164 = vsel %vm4156, %v4147, %v4163
        %v4165 = vsel %vm4155, %v4162, %v4164
        %v4166 = vsel %vm4154, %v4144, %v4147
        %v4167 = vsel %vm4157, %v4153, 1326507024
        %v4168 = vsel %vm4156, %v4150, %v4167
        %v4169 = vsel %vm4155, %v4166, %v4168
        %v4170 = vshll.u32 %v4130, 8
        %v4171 = vand.u32 %v4170, 65535
        %v4172 = vshrl.u32 %v4170, 16
        %v4173 = vand.u32 %v4169, 65535
        %v4174 = vshrl.u32 %v4169, 16
        %v4175 = vmul.u32 %v4171, %v4173
        %v4176 = vmul.u32 %v4171, %v4174
        %v4177 = vmul.u32 %v4172, %v4173
        %v4178 = vmul.u32 %v4172, %v4174
        %v4179 = vshll.u32 %v4176, 16
        %v4180 = vshrl.u32 %v4176, 16
        %v4181 = vshll.u32 %v4177, 16
        %v4182 = vshrl.u32 %v4177, 16
        %vm4183 = vc.u32 %v4175, %v4179
        %v4184 = vsel %vm4183, 1, 0
        %v4185 = vadd.s32 %v4175, %v4179
        %v4186 = vadd.s32 %v4178, %v4184
        %vm4187 = vc.u32 %v4185, %v4181
        %v4188 = vsel %vm4187, 1, 0
        %v4189 = vadd.s32 %v4185, %v4181
        %v4190 = vadd.s32 %v4186, %v4188
        %v4191 = vadd.s32 %v4190, %v4180
        %v4192 = vadd.s32 %v4191, %v4182
        %v4193 = vand.u32 %v4170, 65535
        %v4194 = vshrl.u32 %v4170, 16
        %v4195 = vand.u32 %v4165, 65535
        %v4196 = vshrl.u32 %v4165, 16
        %v4197 = vmul.u32 %v4193, %v4195
        %v4198 = vmul.u32 %v4193, %v4196
        %v4199 = vmul.u32 %v4194, %v4195
        %v4200 = vmul.u32 %v4194, %v4196
        %v4201 = vshll.u32 %v4198, 16
        %v4202 = vshrl.u32 %v4198, 16
        %v4203 = vshll.u32 %v4199, 16
        %v4204 = vshrl.u32 %v4199, 16
        %vm4205 = vc.u32 %v4197, %v4201
        %v4206 = vsel %vm4205, 1, 0
        %v4207 = vadd.s32 %v4197, %v4201
        %v4208 = vadd.s32 %v4200, %v4206
        %vm4209 = vc.u32 %v4207, %v4203
        %v4210 = vsel %vm4209, 1, 0
        %v4211 = vadd.s32 %v4207, %v4203
        %v4212 = vadd.s32 %v4208, %v4210
        %v4213 = vadd.s32 %v4212, %v4202
        %v4214 = vadd.s32 %v4213, %v4204
        %v4215 = vmul.u32 %v4170, %v4161
        %v4216 = vadd.s32 %v4192, %v4211
        %vm4217 = vc.u32 %v4192, %v4211
        %v4218 = vadd.s32 %v4214, 1
        %v4219 = vsel %vm4217, %v4218, %v4214
        %v4220 = vadd.s32 %v4215, %v4219
        %v4221 = vadd.s32 %v4220, 536870912
        %v4222 = vshrl.u32 %v4221, 30
        %v4223 = vshll.u32 %v4222, 30
        %v4224 = vsub.s32 %v4220, %v4223
        %vm4225 = vcmp.lt.s32.totalorder %v4224, 0
        %v4226 = vsub.s32 0, %v4224
        %v4227 = vsel %vm4225, %v4226, %v4224
        %v4228 = vclz %v4227
        %v4229 = vsub.s32 %v4228, 2
        %vm4230 = vcmp.gt.s32.totalorder 0, %v4229
        %v4231 = vsel %vm4230, 0, %v4229
        %v4232 = vsub.s32 32, %v4231
        %v4233 = vshll.u32 %v4224, %v4231
        %v4234 = vshrl.u32 %v4216, %v4232
        %v4235 = vor.u32 %v4233, %v4234
        %v4236 = vsub.s32 4294967266, %v4231
        %v4237 = vadd.s32 %v4236, 127
        %v4238 = vshll.u32 %v4237, 23
        %v4239 = vor.u32 4788187, %v4238
        %v4240 = vand.u32 2147483647, %v4239
        %v4242 = vcvt.s32.f32 %v4235
        %v4243 = vmul.f32 %v4242, %v4240
        %v4244 = vxor.u32 %v4243, 2147483648
        %v4245 = vsel %vm4124, %v4244, %v4243
        %v4246 = vsub.s32 4, %v4222
        %v4247 = vsel %vm4124, %v4246, %v4222
        %v4248 = vsel %vm4123, %v326, %v4245
        %v4249 = vsel %vm4123, 0, %v4247
        %v4250 = vmul.f32 %v4248, %v4248
        %v4251 = vmul.f32 %v4250, -0.001358992
        %v4252 = vadd.f32 %v4251, 0.041655596
        %v4253 = vmul.f32 %v4250, %v4252
        %v4254 = vadd.f32 %v4253, -0.4999988
        %v4255 = vmul.f32 %v4250, %v4254
        %v4256 = vadd.f32 1.0, %v4255
        %v4257 = vmul.f32 %v4248, %v4248
        %v4258 = vmul.f32 %v4257, -0.00019511016
        %v4259 = vadd.f32 %v4258, 0.008332121
        %v4260 = vmul.f32 %v4257, %v4259
        %v4261 = vadd.f32 %v4260, -0.16666654
        %v4262 = vmul.f32 %v4257, %v4261
        %v4263 = vadd.f32 %v4262, 1.0
        %v4264 = vmul.f32 %v4263, %v4248
        %vm4265 = vweird.f32 %v326
        %v4266 = vadd.s32 %v4249, 3
        %v4267 = vand.u32 %v4266, 3
        %vm4268 = vcmp.lt.s32.totalorder %v4267, 2
        %vm4269 = vcmp.eq.s32.totalorder %v4267, 0
        %v4270 = vxor.u32 %v4264, 2147483648
        %v4271 = vsel %vm4269, %v4256, %v4270
        %vm4272 = vcmp.eq.s32.totalorder %v4267, 2
        %v4273 = vxor.u32 %v4256, 2147483648
        %v4274 = vsel %vm4272, %v4273, %v4264
        %v4275 = vsel %vm4268, %v4271, %v4274
        %v4276 = vsel %vm4265, nan, %v4275
        %v4277 = vand.u32 2147483647, %v391
        %vm4278 = vcmp.le.f32.partialorder %v4277, 0.7853982
        %vm4279 = vcmp.lt.s32.totalorder %v391, 0
        %v4280 = vand.u32 %v391, 2139095040
        %v4281 = vshrl.u32 %v4280, 23
        %v4282 = vsub.s32 %v4281, 127
        %v4283 = vand.u32 2147483647, %v391
        %v4284 = vand.u32 %v4283, 8388607
        %v4285 = vor.u32 %v4284, 8388608
        %v4286 = vsub.s32 0, %v4285
        %v4287 = vadd.s32 %v4282, 1
        %vm4288 = vcmp.gt.s32.totalorder %v4287, 0
        %v4289 = vsel %vm4288, %v4287, 0
        %v4290 = vshrl.u32 %v4289, 5
        %v4291 = vand.u32 %v4289, 31
        %v4292 = vsub.s32 32, %v4291
        %v4293 = vshrl.u32 683565275, %v4292
        %v4294 = vshll.u32 683565275, %v4291
        %v4295 = vshrl.u32 2475754826, %v4292
        %v4296 = vor.u32 %v4294, %v4295
        %v4297 = vshll.u32 2475754826, %v4291
        %v4298 = vshrl.u32 2131351028, %v4292
        %v4299 = vor.u32 %v4297, %v4298
        %v4300 = vshll.u32 2131351028, %v4291
        %v4301 = vshrl.u32 2102212464, %v4292
        %v4302 = vor.u32 %v4300, %v4301
        %v4303 = vshll.u32 2102212464, %v4291
        %v4304 = vshrl.u32 920167782, %v4292
        %v4305 = vor.u32 %v4303, %v4304
        %v4306 = vshll.u32 920167782, %v4291
        %v4307 = vshrl.u32 1326507024, %v4292
        %v4308 = vor.u32 %v4306, %v4307
        %vm4309 = vcmp.lt.s32.totalorder %v4290, 1
        %vm4310 = vcmp.lt.s32.totalorder %v4290, 2
        %vm4311 = vcmp.lt.s32.totalorder %v4290, 3
        %vm4312 = vcmp.lt.s32.totalorder %v4290, 4
        %v4313 = vsel %vm4309, %v4293, %v4296
        %v4314 = vsel %vm4312, %v4302, 2102212464
        %v4315 = vsel %vm4311, %v4299, %v4314
        %v4316 = vsel %vm4310, %v4313, %v4315
        %v4317 = vsel %vm4309, %v4296, %v4299
        %v4318 = vsel %vm4312, %v4305, 920167782
        %v4319 = vsel %vm4311, %v4302, %v4318
        %v4320 = vsel %vm4310, %v4317, %v4319
        %v4321 = vsel %vm4309, %v4299, %v4302
        %v4322 = vsel %vm4312, %v4308, 1326507024
        %v4323 = vsel %vm4311, %v4305, %v4322
        %v4324 = vsel %vm4310, %v4321, %v4323
        %v4325 = vshll.u32 %v4285, 8
        %v4326 = vand.u32 %v4325, 65535
        %v4327 = vshrl.u32 %v4325, 16
        %v4328 = vand.u32 %v4324, 65535
        %v4329 = vshrl.u32 %v4324, 16
        %v4330 = vmul.u32 %v4326, %v4328
        %v4331 = vmul.u32 %v4326, %v4329
        %v4332 = vmul.u32 %v4327, %v4328
        %v4333 = vmul.u32 %v4327, %v4329
        %v4334 = vshll.u32 %v4331, 16
        %v4335 = vshrl.u32 %v4331, 16
        %v4336 = vshll.u32 %v4332, 16
        %v4337 = vshrl.u32 %v4332, 16
        %vm4338 = vc.u32 %v4330, %v4334
        %v4339 = vsel %vm4338, 1, 0
        %v4340 = vadd.s32 %v4330, %v4334
        %v4341 = vadd.s32 %v4333, %v4339
        %vm4342 = vc.u32 %v4340, %v4336
        %v4343 = vsel %vm4342, 1, 0
        %v4344 = vadd.s32 %v4340, %v4336
        %v4345 = vadd.s32 %v4341, %v4343
        %v4346 = vadd.s32 %v4345, %v4335
        %v4347 = vadd.s32 %v4346, %v4337
        %v4348 = vand.u32 %v4325, 65535
        %v4349 = vshrl.u32 %v4325, 16
        %v4350 = vand.u32 %v4320, 65535
        %v4351 = vshrl.u32 %v4320, 16
        %v4352 = vmul.u32 %v4348, %v4350
        %v4353 = vmul.u32 %v4348, %v4351
        %v4354 = vmul.u32 %v4349, %v4350
        %v4355 = vmul.u32 %v4349, %v4351
        %v4356 = vshll.u32 %v4353, 16
        %v4357 = vshrl.u32 %v4353, 16
        %v4358 = vshll.u32 %v4354, 16
        %v4359 = vshrl.u32 %v4354, 16
        %vm4360 = vc.u32 %v4352, %v4356
        %v4361 = vsel %vm4360, 1, 0
        %v4362 = vadd.s32 %v4352, %v4356
        %v4363 = vadd.s32 %v4355, %v4361
        %vm4364 = vc.u32 %v4362, %v4358
        %v4365 = vsel %vm4364, 1, 0
        %v4366 = vadd.s32 %v4362, %v4358
        %v4367 = vadd.s32 %v4363, %v4365
        %v4368 = vadd.s32 %v4367, %v4357
        %v4369 = vadd.s32 %v4368, %v4359
        %v4370 = vmul.u32 %v4325, %v4316
        %v4371 = vadd.s32 %v4347, %v4366
        %vm4372 = vc.u32 %v4347, %v4366
        %v4373 = vadd.s32 %v4369, 1
        %v4374 = vsel %vm4372, %v4373, %v4369
        %v4375 = vadd.s32 %v4370, %v4374
        %v4376 = vadd.s32 %v4375, 536870912
        %v4377 = vshrl.u32 %v4376, 30
        %v4378 = vshll.u32 %v4377, 30
        %v4379 = vsub.s32 %v4375, %v4378
        %vm4380 = vcmp.lt.s32.totalorder %v4379, 0
        %v4381 = vsub.s32 0, %v4379
        %v4382 = vsel %vm4380, %v4381, %v4379
        %v4383 = vclz %v4382
        %v4384 = vsub.s32 %v4383, 2
        %vm4385 = vcmp.gt.s32.totalorder 0, %v4384
        %v4386 = vsel %vm4385, 0, %v4384
        %v4387 = vsub.s32 32, %v4386
        %v4388 = vshll.u32 %v4379, %v4386
        %v4389 = vshrl.u32 %v4371, %v4387
        %v4390 = vor.u32 %v4388, %v4389
        %v4391 = vsub.s32 4294967266, %v4386
        %v4392 = vadd.s32 %v4391, 127
        %v4393 = vshll.u32 %v4392, 23
        %v4394 = vor.u32 4788187, %v4393
        %v4395 = vand.u32 2147483647, %v4394
        %v4397 = vcvt.s32.f32 %v4390
        %v4398 = vmul.f32 %v4397, %v4395
        %v4399 = vxor.u32 %v4398, 2147483648
        %v4400 = vsel %vm4279, %v4399, %v4398
        %v4401 = vsub.s32 4, %v4377
        %v4402 = vsel %vm4279, %v4401, %v4377
        %v4403 = vsel %vm4278, %v391, %v4400
        %v4404 = vsel %vm4278, 0, %v4402
        %v4405 = vmul.f32 %v4403, %v4403
        %v4406 = vmul.f32 %v4405, -0.001358992
        %v4407 = vadd.f32 %v4406, 0.041655596
        %v4408 = vmul.f32 %v4405, %v4407
        %v4409 = vadd.f32 %v4408, -0.4999988
        %v4410 = vmul.f32 %v4405, %v4409
        %v4411 = vadd.f32 1.0, %v4410
        %v4412 = vmul.f32 %v4403, %v4403
        %v4413 = vmul.f32 %v4412, -0.00019511016
        %v4414 = vadd.f32 %v4413, 0.008332121
        %v4415 = vmul.f32 %v4412, %v4414
        %v4416 = vadd.f32 %v4415, -0.16666654
        %v4417 = vmul.f32 %v4412, %v4416
        %v4418 = vadd.f32 %v4417, 1.0
        %v4419 = vmul.f32 %v4418, %v4403
        %vm4420 = vweird.f32 %v391
        %v4421 = vadd.s32 %v4404, 3
        %v4422 = vand.u32 %v4421, 3
        %vm4423 = vcmp.lt.s32.totalorder %v4422, 2
        %vm4424 = vcmp.eq.s32.totalorder %v4422, 0
        %v4425 = vxor.u32 %v4419, 2147483648
        %v4426 = vsel %vm4424, %v4411, %v4425
        %vm4427 = vcmp.eq.s32.totalorder %v4422, 2
        %v4428 = vxor.u32 %v4411, 2147483648
        %v4429 = vsel %vm4427, %v4428, %v4419
        %v4430 = vsel %vm4423, %v4426, %v4429
        %v4431 = vsel %vm4420, nan, %v4430
        %v4432 = vand.u32 2147483647, %v329
        %vm4433 = vcmp.le.f32.partialorder %v4432, 0.7853982
        %vm4434 = vcmp.lt.s32.totalorder %v329, 0
        %v4435 = vand.u32 %v329, 2139095040
        %v4436 = vshrl.u32 %v4435, 23
        %v4437 = vsub.s32 %v4436, 127
        %v4438 = vand.u32 2147483647, %v329
        %v4439 = vand.u32 %v4438, 8388607
        %v4440 = vor.u32 %v4439, 8388608
        %v4441 = vsub.s32 0, %v4440
        %v4442 = vadd.s32 %v4437, 1
        %vm4443 = vcmp.gt.s32.totalorder %v4442, 0
        %v4444 = vsel %vm4443, %v4442, 0
        %v4445 = vshrl.u32 %v4444, 5
        %v4446 = vand.u32 %v4444, 31
        %v4447 = vsub.s32 32, %v4446
        %v4448 = vshrl.u32 683565275, %v4447
        %v4449 = vshll.u32 683565275, %v4446
        %v4450 = vshrl.u32 2475754826, %v4447
        %v4451 = vor.u32 %v4449, %v4450
        %v4452 = vshll.u32 2475754826, %v4446
        %v4453 = vshrl.u32 2131351028, %v4447
        %v4454 = vor.u32 %v4452, %v4453
        %v4455 = vshll.u32 2131351028, %v4446
        %v4456 = vshrl.u32 2102212464, %v4447
        %v4457 = vor.u32 %v4455, %v4456
        %v4458 = vshll.u32 2102212464, %v4446
        %v4459 = vshrl.u32 920167782, %v4447
        %v4460 = vor.u32 %v4458, %v4459
        %v4461 = vshll.u32 920167782, %v4446
        %v4462 = vshrl.u32 1326507024, %v4447
        %v4463 = vor.u32 %v4461, %v4462
        %vm4464 = vcmp.lt.s32.totalorder %v4445, 1
        %vm4465 = vcmp.lt.s32.totalorder %v4445, 2
        %vm4466 = vcmp.lt.s32.totalorder %v4445, 3
        %vm4467 = vcmp.lt.s32.totalorder %v4445, 4
        %v4468 = vsel %vm4464, %v4448, %v4451
        %v4469 = vsel %vm4467, %v4457, 2102212464
        %v4470 = vsel %vm4466, %v4454, %v4469
        %v4471 = vsel %vm4465, %v4468, %v4470
        %v4472 = vsel %vm4464, %v4451, %v4454
        %v4473 = vsel %vm4467, %v4460, 920167782
        %v4474 = vsel %vm4466, %v4457, %v4473
        %v4475 = vsel %vm4465, %v4472, %v4474
        %v4476 = vsel %vm4464, %v4454, %v4457
        %v4477 = vsel %vm4467, %v4463, 1326507024
        %v4478 = vsel %vm4466, %v4460, %v4477
        %v4479 = vsel %vm4465, %v4476, %v4478
        %v4480 = vshll.u32 %v4440, 8
        %v4481 = vand.u32 %v4480, 65535
        %v4482 = vshrl.u32 %v4480, 16
        %v4483 = vand.u32 %v4479, 65535
        %v4484 = vshrl.u32 %v4479, 16
        %v4485 = vmul.u32 %v4481, %v4483
        %v4486 = vmul.u32 %v4481, %v4484
        %v4487 = vmul.u32 %v4482, %v4483
        %v4488 = vmul.u32 %v4482, %v4484
        %v4489 = vshll.u32 %v4486, 16
        %v4490 = vshrl.u32 %v4486, 16
        %v4491 = vshll.u32 %v4487, 16
        %v4492 = vshrl.u32 %v4487, 16
        %vm4493 = vc.u32 %v4485, %v4489
        %v4494 = vsel %vm4493, 1, 0
        %v4495 = vadd.s32 %v4485, %v4489
        %v4496 = vadd.s32 %v4488, %v4494
        %vm4497 = vc.u32 %v4495, %v4491
        %v4498 = vsel %vm4497, 1, 0
        %v4499 = vadd.s32 %v4495, %v4491
        %v4500 = vadd.s32 %v4496, %v4498
        %v4501 = vadd.s32 %v4500, %v4490
        %v4502 = vadd.s32 %v4501, %v4492
        %v4503 = vand.u32 %v4480, 65535
        %v4504 = vshrl.u32 %v4480, 16
        %v4505 = vand.u32 %v4475, 65535
        %v4506 = vshrl.u32 %v4475, 16
        %v4507 = vmul.u32 %v4503, %v4505
        %v4508 = vmul.u32 %v4503, %v4506
        %v4509 = vmul.u32 %v4504, %v4505
        %v4510 = vmul.u32 %v4504, %v4506
        %v4511 = vshll.u32 %v4508, 16
        %v4512 = vshrl.u32 %v4508, 16
        %v4513 = vshll.u32 %v4509, 16
        %v4514 = vshrl.u32 %v4509, 16
        %vm4515 = vc.u32 %v4507, %v4511
        %v4516 = vsel %vm4515, 1, 0
        %v4517 = vadd.s32 %v4507, %v4511
        %v4518 = vadd.s32 %v4510, %v4516
        %vm4519 = vc.u32 %v4517, %v4513
        %v4520 = vsel %vm4519, 1, 0
        %v4521 = vadd.s32 %v4517, %v4513
        %v4522 = vadd.s32 %v4518, %v4520
        %v4523 = vadd.s32 %v4522, %v4512
        %v4524 = vadd.s32 %v4523, %v4514
        %v4525 = vmul.u32 %v4480, %v4471
        %v4526 = vadd.s32 %v4502, %v4521
        %vm4527 = vc.u32 %v4502, %v4521
        %v4528 = vadd.s32 %v4524, 1
        %v4529 = vsel %vm4527, %v4528, %v4524
        %v4530 = vadd.s32 %v4525, %v4529
        %v4531 = vadd.s32 %v4530, 536870912
        %v4532 = vshrl.u32 %v4531, 30
        %v4533 = vshll.u32 %v4532, 30
        %v4534 = vsub.s32 %v4530, %v4533
        %vm4535 = vcmp.lt.s32.totalorder %v4534, 0
        %v4536 = vsub.s32 0, %v4534
        %v4537 = vsel %vm4535, %v4536, %v4534
        %v4538 = vclz %v4537
        %v4539 = vsub.s32 %v4538, 2
        %vm4540 = vcmp.gt.s32.totalorder 0, %v4539
        %v4541 = vsel %vm4540, 0, %v4539
        %v4542 = vsub.s32 32, %v4541
        %v4543 = vshll.u32 %v4534, %v4541
        %v4544 = vshrl.u32 %v4526, %v4542
        %v4545 = vor.u32 %v4543, %v4544
        %v4546 = vsub.s32 4294967266, %v4541
        %v4547 = vadd.s32 %v4546, 127
        %v4548 = vshll.u32 %v4547, 23
        %v4549 = vor.u32 4788187, %v4548
        %v4550 = vand.u32 2147483647, %v4549
        %v4552 = vcvt.s32.f32 %v4545
        %v4553 = vmul.f32 %v4552, %v4550
        %v4554 = vxor.u32 %v4553, 2147483648
        %v4555 = vsel %vm4434, %v4554, %v4553
        %v4556 = vsub.s32 4, %v4532
        %v4557 = vsel %vm4434, %v4556, %v4532
        %v4558 = vsel %vm4433, %v329, %v4555
        %v4559 = vsel %vm4433, 0, %v4557
        %v4560 = vmul.f32 %v4558, %v4558
        %v4561 = vmul.f32 %v4560, -0.001358992
        %v4562 = vadd.f32 %v4561, 0.041655596
        %v4563 = vmul.f32 %v4560, %v4562
        %v4564 = vadd.f32 %v4563, -0.4999988
        %v4565 = vmul.f32 %v4560, %v4564
        %v4566 = vadd.f32 1.0, %v4565
        %v4567 = vmul.f32 %v4558, %v4558
        %v4568 = vmul.f32 %v4567, -0.00019511016
        %v4569 = vadd.f32 %v4568, 0.008332121
        %v4570 = vmul.f32 %v4567, %v4569
        %v4571 = vadd.f32 %v4570, -0.16666654
        %v4572 = vmul.f32 %v4567, %v4571
        %v4573 = vadd.f32 %v4572, 1.0
        %v4574 = vmul.f32 %v4573, %v4558
        %vm4575 = vweird.f32 %v329
        %v4576 = vadd.s32 %v4559, 3
        %v4577 = vand.u32 %v4576, 3
        %vm4578 = vcmp.lt.s32.totalorder %v4577, 2
        %vm4579 = vcmp.eq.s32.totalorder %v4577, 0
        %v4580 = vxor.u32 %v4574, 2147483648
        %v4581 = vsel %vm4579, %v4566, %v4580
        %vm4582 = vcmp.eq.s32.totalorder %v4577, 2
        %v4583 = vxor.u32 %v4566, 2147483648
        %v4584 = vsel %vm4582, %v4583, %v4574
        %v4585 = vsel %vm4578, %v4581, %v4584
        %v4586 = vsel %vm4575, nan, %v4585
        %v4587 = vand.u32 2147483647, %v394
        %vm4588 = vcmp.le.f32.partialorder %v4587, 0.7853982
        %vm4589 = vcmp.lt.s32.totalorder %v394, 0
        %v4590 = vand.u32 %v394, 2139095040
        %v4591 = vshrl.u32 %v4590, 23
        %v4592 = vsub.s32 %v4591, 127
        %v4593 = vand.u32 2147483647, %v394
        %v4594 = vand.u32 %v4593, 8388607
        %v4595 = vor.u32 %v4594, 8388608
        %v4596 = vsub.s32 0, %v4595
        %v4597 = vadd.s32 %v4592, 1
        %vm4598 = vcmp.gt.s32.totalorder %v4597, 0
        %v4599 = vsel %vm4598, %v4597, 0
        %v4600 = vshrl.u32 %v4599, 5
        %v4601 = vand.u32 %v4599, 31
        %v4602 = vsub.s32 32, %v4601
        %v4603 = vshrl.u32 683565275, %v4602
        %v4604 = vshll.u32 683565275, %v4601
        %v4605 = vshrl.u32 2475754826, %v4602
        %v4606 = vor.u32 %v4604, %v4605
        %v4607 = vshll.u32 2475754826, %v4601
        %v4608 = vshrl.u32 2131351028, %v4602
        %v4609 = vor.u32 %v4607, %v4608
        %v4610 = vshll.u32 2131351028, %v4601
        %v4611 = vshrl.u32 2102212464, %v4602
        %v4612 = vor.u32 %v4610, %v4611
        %v4613 = vshll.u32 2102212464, %v4601
        %v4614 = vshrl.u32 920167782, %v4602
        %v4615 = vor.u32 %v4613, %v4614
        %v4616 = vshll.u32 920167782, %v4601
        %v4617 = vshrl.u32 1326507024, %v4602
        %v4618 = vor.u32 %v4616, %v4617
        %vm4619 = vcmp.lt.s32.totalorder %v4600, 1
        %vm4620 = vcmp.lt.s32.totalorder %v4600, 2
        %vm4621 = vcmp.lt.s32.totalorder %v4600, 3
        %vm4622 = vcmp.lt.s32.totalorder %v4600, 4
        %v4623 = vsel %vm4619, %v4603, %v4606
        %v4624 = vsel %vm4622, %v4612, 2102212464
        %v4625 = vsel %vm4621, %v4609, %v4624
        %v4626 = vsel %vm4620, %v4623, %v4625
        %v4627 = vsel %vm4619, %v4606, %v4609
        %v4628 = vsel %vm4622, %v4615, 920167782
        %v4629 = vsel %vm4621, %v4612, %v4628
        %v4630 = vsel %vm4620, %v4627, %v4629
        %v4631 = vsel %vm4619, %v4609, %v4612
        %v4632 = vsel %vm4622, %v4618, 1326507024
        %v4633 = vsel %vm4621, %v4615, %v4632
        %v4634 = vsel %vm4620, %v4631, %v4633
        %v4635 = vshll.u32 %v4595, 8
        %v4636 = vand.u32 %v4635, 65535
        %v4637 = vshrl.u32 %v4635, 16
        %v4638 = vand.u32 %v4634, 65535
        %v4639 = vshrl.u32 %v4634, 16
        %v4640 = vmul.u32 %v4636, %v4638
        %v4641 = vmul.u32 %v4636, %v4639
        %v4642 = vmul.u32 %v4637, %v4638
        %v4643 = vmul.u32 %v4637, %v4639
        %v4644 = vshll.u32 %v4641, 16
        %v4645 = vshrl.u32 %v4641, 16
        %v4646 = vshll.u32 %v4642, 16
        %v4647 = vshrl.u32 %v4642, 16
        %vm4648 = vc.u32 %v4640, %v4644
        %v4649 = vsel %vm4648, 1, 0
        %v4650 = vadd.s32 %v4640, %v4644
        %v4651 = vadd.s32 %v4643, %v4649
        %vm4652 = vc.u32 %v4650, %v4646
        %v4653 = vsel %vm4652, 1, 0
        %v4654 = vadd.s32 %v4650, %v4646
        %v4655 = vadd.s32 %v4651, %v4653
        %v4656 = vadd.s32 %v4655, %v4645
        %v4657 = vadd.s32 %v4656, %v4647
        %v4658 = vand.u32 %v4635, 65535
        %v4659 = vshrl.u32 %v4635, 16
        %v4660 = vand.u32 %v4630, 65535
        %v4661 = vshrl.u32 %v4630, 16
        %v4662 = vmul.u32 %v4658, %v4660
        %v4663 = vmul.u32 %v4658, %v4661
        %v4664 = vmul.u32 %v4659, %v4660
        %v4665 = vmul.u32 %v4659, %v4661
        %v4666 = vshll.u32 %v4663, 16
        %v4667 = vshrl.u32 %v4663, 16
        %v4668 = vshll.u32 %v4664, 16
        %v4669 = vshrl.u32 %v4664, 16
        %vm4670 = vc.u32 %v4662, %v4666
        %v4671 = vsel %vm4670, 1, 0
        %v4672 = vadd.s32 %v4662, %v4666
        %v4673 = vadd.s32 %v4665, %v4671
        %vm4674 = vc.u32 %v4672, %v4668
        %v4675 = vsel %vm4674, 1, 0
        %v4676 = vadd.s32 %v4672, %v4668
        %v4677 = vadd.s32 %v4673, %v4675
        %v4678 = vadd.s32 %v4677, %v4667
        %v4679 = vadd.s32 %v4678, %v4669
        %v4680 = vmul.u32 %v4635, %v4626
        %v4681 = vadd.s32 %v4657, %v4676
        %vm4682 = vc.u32 %v4657, %v4676
        %v4683 = vadd.s32 %v4679, 1
        %v4684 = vsel %vm4682, %v4683, %v4679
        %v4685 = vadd.s32 %v4680, %v4684
        %v4686 = vadd.s32 %v4685, 536870912
        %v4687 = vshrl.u32 %v4686, 30
        %v4688 = vshll.u32 %v4687, 30
        %v4689 = vsub.s32 %v4685, %v4688
        %vm4690 = vcmp.lt.s32.totalorder %v4689, 0
        %v4691 = vsub.s32 0, %v4689
        %v4692 = vsel %vm4690, %v4691, %v4689
        %v4693 = vclz %v4692
        %v4694 = vsub.s32 %v4693, 2
        %vm4695 = vcmp.gt.s32.totalorder 0, %v4694
        %v4696 = vsel %vm4695, 0, %v4694
        %v4697 = vsub.s32 32, %v4696
        %v4698 = vshll.u32 %v4689, %v4696
        %v4699 = vshrl.u32 %v4681, %v4697
        %v4700 = vor.u32 %v4698, %v4699
        %v4701 = vsub.s32 4294967266, %v4696
        %v4702 = vadd.s32 %v4701, 127
        %v4703 = vshll.u32 %v4702, 23
        %v4704 = vor.u32 4788187, %v4703
        %v4705 = vand.u32 2147483647, %v4704
        %v4707 = vcvt.s32.f32 %v4700
        %v4708 = vmul.f32 %v4707, %v4705
        %v4709 = vxor.u32 %v4708, 2147483648
        %v4710 = vsel %vm4589, %v4709, %v4708
        %v4711 = vsub.s32 4, %v4687
        %v4712 = vsel %vm4589, %v4711, %v4687
        %v4713 = vsel %vm4588, %v394, %v4710
        %v4714 = vsel %vm4588, 0, %v4712
        %v4715 = vmul.f32 %v4713, %v4713
        %v4716 = vmul.f32 %v4715, -0.001358992
        %v4717 = vadd.f32 %v4716, 0.041655596
        %v4718 = vmul.f32 %v4715, %v4717
        %v4719 = vadd.f32 %v4718, -0.4999988
        %v4720 = vmul.f32 %v4715, %v4719
        %v4721 = vadd.f32 1.0, %v4720
        %v4722 = vmul.f32 %v4713, %v4713
        %v4723 = vmul.f32 %v4722, -0.00019511016
        %v4724 = vadd.f32 %v4723, 0.008332121
        %v4725 = vmul.f32 %v4722, %v4724
        %v4726 = vadd.f32 %v4725, -0.16666654
        %v4727 = vmul.f32 %v4722, %v4726
        %v4728 = vadd.f32 %v4727, 1.0
        %v4729 = vmul.f32 %v4728, %v4713
        %vm4730 = vweird.f32 %v394
        %v4731 = vadd.s32 %v4714, 3
        %v4732 = vand.u32 %v4731, 3
        %vm4733 = vcmp.lt.s32.totalorder %v4732, 2
        %vm4734 = vcmp.eq.s32.totalorder %v4732, 0
        %v4735 = vxor.u32 %v4729, 2147483648
        %v4736 = vsel %vm4734, %v4721, %v4735
        %vm4737 = vcmp.eq.s32.totalorder %v4732, 2
        %v4738 = vxor.u32 %v4721, 2147483648
        %v4739 = vsel %vm4737, %v4738, %v4729
        %v4740 = vsel %vm4733, %v4736, %v4739
        %v4741 = vsel %vm4730, nan, %v4740
        %v4742 = vand.u32 2147483647, %v332
        %vm4743 = vcmp.le.f32.partialorder %v4742, 0.7853982
        %vm4744 = vcmp.lt.s32.totalorder %v332, 0
        %v4745 = vand.u32 %v332, 2139095040
        %v4746 = vshrl.u32 %v4745, 23
        %v4747 = vsub.s32 %v4746, 127
        %v4748 = vand.u32 2147483647, %v332
        %v4749 = vand.u32 %v4748, 8388607
        %v4750 = vor.u32 %v4749, 8388608
        %v4751 = vsub.s32 0, %v4750
        %v4752 = vadd.s32 %v4747, 1
        %vm4753 = vcmp.gt.s32.totalorder %v4752, 0
        %v4754 = vsel %vm4753, %v4752, 0
        %v4755 = vshrl.u32 %v4754, 5
        %v4756 = vand.u32 %v4754, 31
        %v4757 = vsub.s32 32, %v4756
        %v4758 = vshrl.u32 683565275, %v4757
        %v4759 = vshll.u32 683565275, %v4756
        %v4760 = vshrl.u32 2475754826, %v4757
        %v4761 = vor.u32 %v4759, %v4760
        %v4762 = vshll.u32 2475754826, %v4756
        %v4763 = vshrl.u32 2131351028, %v4757
        %v4764 = vor.u32 %v4762, %v4763
        %v4765 = vshll.u32 2131351028, %v4756
        %v4766 = vshrl.u32 2102212464, %v4757
        %v4767 = vor.u32 %v4765, %v4766
        %v4768 = vshll.u32 2102212464, %v4756
        %v4769 = vshrl.u32 920167782, %v4757
        %v4770 = vor.u32 %v4768, %v4769
        %v4771 = vshll.u32 920167782, %v4756
        %v4772 = vshrl.u32 1326507024, %v4757
        %v4773 = vor.u32 %v4771, %v4772
        %vm4774 = vcmp.lt.s32.totalorder %v4755, 1
        %vm4775 = vcmp.lt.s32.totalorder %v4755, 2
        %vm4776 = vcmp.lt.s32.totalorder %v4755, 3
        %vm4777 = vcmp.lt.s32.totalorder %v4755, 4
        %v4778 = vsel %vm4774, %v4758, %v4761
        %v4779 = vsel %vm4777, %v4767, 2102212464
        %v4780 = vsel %vm4776, %v4764, %v4779
        %v4781 = vsel %vm4775, %v4778, %v4780
        %v4782 = vsel %vm4774, %v4761, %v4764
        %v4783 = vsel %vm4777, %v4770, 920167782
        %v4784 = vsel %vm4776, %v4767, %v4783
        %v4785 = vsel %vm4775, %v4782, %v4784
        %v4786 = vsel %vm4774, %v4764, %v4767
        %v4787 = vsel %vm4777, %v4773, 1326507024
        %v4788 = vsel %vm4776, %v4770, %v4787
        %v4789 = vsel %vm4775, %v4786, %v4788
        %v4790 = vshll.u32 %v4750, 8
        %v4791 = vand.u32 %v4790, 65535
        %v4792 = vshrl.u32 %v4790, 16
        %v4793 = vand.u32 %v4789, 65535
        %v4794 = vshrl.u32 %v4789, 16
        %v4795 = vmul.u32 %v4791, %v4793
        %v4796 = vmul.u32 %v4791, %v4794
        %v4797 = vmul.u32 %v4792, %v4793
        %v4798 = vmul.u32 %v4792, %v4794
        %v4799 = vshll.u32 %v4796, 16
        %v4800 = vshrl.u32 %v4796, 16
        %v4801 = vshll.u32 %v4797, 16
        %v4802 = vshrl.u32 %v4797, 16
        %vm4803 = vc.u32 %v4795, %v4799
        %v4804 = vsel %vm4803, 1, 0
        %v4805 = vadd.s32 %v4795, %v4799
        %v4806 = vadd.s32 %v4798, %v4804
        %vm4807 = vc.u32 %v4805, %v4801
        %v4808 = vsel %vm4807, 1, 0
        %v4809 = vadd.s32 %v4805, %v4801
        %v4810 = vadd.s32 %v4806, %v4808
        %v4811 = vadd.s32 %v4810, %v4800
        %v4812 = vadd.s32 %v4811, %v4802
        %v4813 = vand.u32 %v4790, 65535
        %v4814 = vshrl.u32 %v4790, 16
        %v4815 = vand.u32 %v4785, 65535
        %v4816 = vshrl.u32 %v4785, 16
        %v4817 = vmul.u32 %v4813, %v4815
        %v4818 = vmul.u32 %v4813, %v4816
        %v4819 = vmul.u32 %v4814, %v4815
        %v4820 = vmul.u32 %v4814, %v4816
        %v4821 = vshll.u32 %v4818, 16
        %v4822 = vshrl.u32 %v4818, 16
        %v4823 = vshll.u32 %v4819, 16
        %v4824 = vshrl.u32 %v4819, 16
        %vm4825 = vc.u32 %v4817, %v4821
        %v4826 = vsel %vm4825, 1, 0
        %v4827 = vadd.s32 %v4817, %v4821
        %v4828 = vadd.s32 %v4820, %v4826
        %vm4829 = vc.u32 %v4827, %v4823
        %v4830 = vsel %vm4829, 1, 0
        %v4831 = vadd.s32 %v4827, %v4823
        %v4832 = vadd.s32 %v4828, %v4830
        %v4833 = vadd.s32 %v4832, %v4822
        %v4834 = vadd.s32 %v4833, %v4824
        %v4835 = vmul.u32 %v4790, %v4781
        %v4836 = vadd.s32 %v4812, %v4831
        %vm4837 = vc.u32 %v4812, %v4831
        %v4838 = vadd.s32 %v4834, 1
        %v4839 = vsel %vm4837, %v4838, %v4834
        %v4840 = vadd.s32 %v4835, %v4839
        %v4841 = vadd.s32 %v4840, 536870912
        %v4842 = vshrl.u32 %v4841, 30
        %v4843 = vshll.u32 %v4842, 30
        %v4844 = vsub.s32 %v4840, %v4843
        %vm4845 = vcmp.lt.s32.totalorder %v4844, 0
        %v4846 = vsub.s32 0, %v4844
        %v4847 = vsel %vm4845, %v4846, %v4844
        %v4848 = vclz %v4847
        %v4849 = vsub.s32 %v4848, 2
        %vm4850 = vcmp.gt.s32.totalorder 0, %v4849
        %v4851 = vsel %vm4850, 0, %v4849
        %v4852 = vsub.s32 32, %v4851
        %v4853 = vshll.u32 %v4844, %v4851
        %v4854 = vshrl.u32 %v4836, %v4852
        %v4855 = vor.u32 %v4853, %v4854
        %v4856 = vsub.s32 4294967266, %v4851
        %v4857 = vadd.s32 %v4856, 127
        %v4858 = vshll.u32 %v4857, 23
        %v4859 = vor.u32 4788187, %v4858
        %v4860 = vand.u32 2147483647, %v4859
        %v4862 = vcvt.s32.f32 %v4855
        %v4863 = vmul.f32 %v4862, %v4860
        %v4864 = vxor.u32 %v4863, 2147483648
        %v4865 = vsel %vm4744, %v4864, %v4863
        %v4866 = vsub.s32 4, %v4842
        %v4867 = vsel %vm4744, %v4866, %v4842
        %v4868 = vsel %vm4743, %v332, %v4865
        %v4869 = vsel %vm4743, 0, %v4867
        %v4870 = vmul.f32 %v4868, %v4868
        %v4871 = vmul.f32 %v4870, -0.001358992
        %v4872 = vadd.f32 %v4871, 0.041655596
        %v4873 = vmul.f32 %v4870, %v4872
        %v4874 = vadd.f32 %v4873, -0.4999988
        %v4875 = vmul.f32 %v4870, %v4874
        %v4876 = vadd.f32 1.0, %v4875
        %v4877 = vmul.f32 %v4868, %v4868
        %v4878 = vmul.f32 %v4877, -0.00019511016
        %v4879 = vadd.f32 %v4878, 0.008332121
        %v4880 = vmul.f32 %v4877, %v4879
        %v4881 = vadd.f32 %v4880, -0.16666654
        %v4882 = vmul.f32 %v4877, %v4881
        %v4883 = vadd.f32 %v4882, 1.0
        %v4884 = vmul.f32 %v4883, %v4868
        %vm4885 = vweird.f32 %v332
        %v4886 = vadd.s32 %v4869, 3
        %v4887 = vand.u32 %v4886, 3
        %vm4888 = vcmp.lt.s32.totalorder %v4887, 2
        %vm4889 = vcmp.eq.s32.totalorder %v4887, 0
        %v4890 = vxor.u32 %v4884, 2147483648
        %v4891 = vsel %vm4889, %v4876, %v4890
        %vm4892 = vcmp.eq.s32.totalorder %v4887, 2
        %v4893 = vxor.u32 %v4876, 2147483648
        %v4894 = vsel %vm4892, %v4893, %v4884
        %v4895 = vsel %vm4888, %v4891, %v4894
        %v4896 = vsel %vm4885, nan, %v4895
        %v4897 = vand.u32 2147483647, %v397
        %vm4898 = vcmp.le.f32.partialorder %v4897, 0.7853982
        %vm4899 = vcmp.lt.s32.totalorder %v397, 0
        %v4900 = vand.u32 %v397, 2139095040
        %v4901 = vshrl.u32 %v4900, 23
        %v4902 = vsub.s32 %v4901, 127
        %v4903 = vand.u32 2147483647, %v397
        %v4904 = vand.u32 %v4903, 8388607
        %v4905 = vor.u32 %v4904, 8388608
        %v4906 = vsub.s32 0, %v4905
        %v4907 = vadd.s32 %v4902, 1
        %vm4908 = vcmp.gt.s32.totalorder %v4907, 0
        %v4909 = vsel %vm4908, %v4907, 0
        %v4910 = vshrl.u32 %v4909, 5
        %v4911 = vand.u32 %v4909, 31
        %v4912 = vsub.s32 32, %v4911
        %v4913 = vshrl.u32 683565275, %v4912
        %v4914 = vshll.u32 683565275, %v4911
        %v4915 = vshrl.u32 2475754826, %v4912
        %v4916 = vor.u32 %v4914, %v4915
        %v4917 = vshll.u32 2475754826, %v4911
        %v4918 = vshrl.u32 2131351028, %v4912
        %v4919 = vor.u32 %v4917, %v4918
        %v4920 = vshll.u32 2131351028, %v4911
        %v4921 = vshrl.u32 2102212464, %v4912
        %v4922 = vor.u32 %v4920, %v4921
        %v4923 = vshll.u32 2102212464, %v4911
        %v4924 = vshrl.u32 920167782, %v4912
        %v4925 = vor.u32 %v4923, %v4924
        %v4926 = vshll.u32 920167782, %v4911
        %v4927 = vshrl.u32 1326507024, %v4912
        %v4928 = vor.u32 %v4926, %v4927
        %vm4929 = vcmp.lt.s32.totalorder %v4910, 1
        %vm4930 = vcmp.lt.s32.totalorder %v4910, 2
        %vm4931 = vcmp.lt.s32.totalorder %v4910, 3
        %vm4932 = vcmp.lt.s32.totalorder %v4910, 4
        %v4933 = vsel %vm4929, %v4913, %v4916
        %v4934 = vsel %vm4932, %v4922, 2102212464
        %v4935 = vsel %vm4931, %v4919, %v4934
        %v4936 = vsel %vm4930, %v4933, %v4935
        %v4937 = vsel %vm4929, %v4916, %v4919
        %v4938 = vsel %vm4932, %v4925, 920167782
        %v4939 = vsel %vm4931, %v4922, %v4938
        %v4940 = vsel %vm4930, %v4937, %v4939
        %v4941 = vsel %vm4929, %v4919, %v4922
        %v4942 = vsel %vm4932, %v4928, 1326507024
        %v4943 = vsel %vm4931, %v4925, %v4942
        %v4944 = vsel %vm4930, %v4941, %v4943
        %v4945 = vshll.u32 %v4905, 8
        %v4946 = vand.u32 %v4945, 65535
        %v4947 = vshrl.u32 %v4945, 16
        %v4948 = vand.u32 %v4944, 65535
        %v4949 = vshrl.u32 %v4944, 16
        %v4950 = vmul.u32 %v4946, %v4948
        %v4951 = vmul.u32 %v4946, %v4949
        %v4952 = vmul.u32 %v4947, %v4948
        %v4953 = vmul.u32 %v4947, %v4949
        %v4954 = vshll.u32 %v4951, 16
        %v4955 = vshrl.u32 %v4951, 16
        %v4956 = vshll.u32 %v4952, 16
        %v4957 = vshrl.u32 %v4952, 16
        %vm4958 = vc.u32 %v4950, %v4954
        %v4959 = vsel %vm4958, 1, 0
        %v4960 = vadd.s32 %v4950, %v4954
        %v4961 = vadd.s32 %v4953, %v4959
        %vm4962 = vc.u32 %v4960, %v4956
        %v4963 = vsel %vm4962, 1, 0
        %v4964 = vadd.s32 %v4960, %v4956
        %v4965 = vadd.s32 %v4961, %v4963
        %v4966 = vadd.s32 %v4965, %v4955
        %v4967 = vadd.s32 %v4966, %v4957
        %v4968 = vand.u32 %v4945, 65535
        %v4969 = vshrl.u32 %v4945, 16
        %v4970 = vand.u32 %v4940, 65535
        %v4971 = vshrl.u32 %v4940, 16
        %v4972 = vmul.u32 %v4968, %v4970
        %v4973 = vmul.u32 %v4968, %v4971
        %v4974 = vmul.u32 %v4969, %v4970
        %v4975 = vmul.u32 %v4969, %v4971
        %v4976 = vshll.u32 %v4973, 16
        %v4977 = vshrl.u32 %v4973, 16
        %v4978 = vshll.u32 %v4974, 16
        %v4979 = vshrl.u32 %v4974, 16
        %vm4980 = vc.u32 %v4972, %v4976
        %v4981 = vsel %vm4980, 1, 0
        %v4982 = vadd.s32 %v4972, %v4976
        %v4983 = vadd.s32 %v4975, %v4981
        %vm4984 = vc.u32 %v4982, %v4978
        %v4985 = vsel %vm4984, 1, 0
        %v4986 = vadd.s32 %v4982, %v4978
        %v4987 = vadd.s32 %v4983, %v4985
        %v4988 = vadd.s32 %v4987, %v4977
        %v4989 = vadd.s32 %v4988, %v4979
        %v4990 = vmul.u32 %v4945, %v4936
        %v4991 = vadd.s32 %v4967, %v4986
        %vm4992 = vc.u32 %v4967, %v4986
        %v4993 = vadd.s32 %v4989, 1
        %v4994 = vsel %vm4992, %v4993, %v4989
        %v4995 = vadd.s32 %v4990, %v4994
        %v4996 = vadd.s32 %v4995, 536870912
        %v4997 = vshrl.u32 %v4996, 30
        %v4998 = vshll.u32 %v4997, 30
        %v4999 = vsub.s32 %v4995, %v4998
        %vm5000 = vcmp.lt.s32.totalorder %v4999, 0
        %v5001 = vsub.s32 0, %v4999
        %v5002 = vsel %vm5000, %v5001, %v4999
        %v5003 = vclz %v5002
        %v5004 = vsub.s32 %v5003, 2
        %vm5005 = vcmp.gt.s32.totalorder 0, %v5004
        %v5006 = vsel %vm5005, 0, %v5004
        %v5007 = vsub.s32 32, %v5006
        %v5008 = vshll.u32 %v4999, %v5006
        %v5009 = vshrl.u32 %v4991, %v5007
        %v5010 = vor.u32 %v5008, %v5009
        %v5011 = vsub.s32 4294967266, %v5006
        %v5012 = vadd.s32 %v5011, 127
        %v5013 = vshll.u32 %v5012, 23
        %v5014 = vor.u32 4788187, %v5013
        %v5015 = vand.u32 2147483647, %v5014
        %v5017 = vcvt.s32.f32 %v5010
        %v5018 = vmul.f32 %v5017, %v5015
        %v5019 = vxor.u32 %v5018, 2147483648
        %v5020 = vsel %vm4899, %v5019, %v5018
        %v5021 = vsub.s32 4, %v4997
        %v5022 = vsel %vm4899, %v5021, %v4997
        %v5023 = vsel %vm4898, %v397, %v5020
        %v5024 = vsel %vm4898, 0, %v5022
        %v5025 = vmul.f32 %v5023, %v5023
        %v5026 = vmul.f32 %v5025, -0.001358992
        %v5027 = vadd.f32 %v5026, 0.041655596
        %v5028 = vmul.f32 %v5025, %v5027
        %v5029 = vadd.f32 %v5028, -0.4999988
        %v5030 = vmul.f32 %v5025, %v5029
        %v5031 = vadd.f32 1.0, %v5030
        %v5032 = vmul.f32 %v5023, %v5023
        %v5033 = vmul.f32 %v5032, -0.00019511016
        %v5034 = vadd.f32 %v5033, 0.008332121
        %v5035 = vmul.f32 %v5032, %v5034
        %v5036 = vadd.f32 %v5035, -0.16666654
        %v5037 = vmul.f32 %v5032, %v5036
        %v5038 = vadd.f32 %v5037, 1.0
        %v5039 = vmul.f32 %v5038, %v5023
        %vm5040 = vweird.f32 %v397
        %v5041 = vadd.s32 %v5024, 3
        %v5042 = vand.u32 %v5041, 3
        %vm5043 = vcmp.lt.s32.totalorder %v5042, 2
        %vm5044 = vcmp.eq.s32.totalorder %v5042, 0
        %v5045 = vxor.u32 %v5039, 2147483648
        %v5046 = vsel %vm5044, %v5031, %v5045
        %vm5047 = vcmp.eq.s32.totalorder %v5042, 2
        %v5048 = vxor.u32 %v5031, 2147483648
        %v5049 = vsel %vm5047, %v5048, %v5039
        %v5050 = vsel %vm5043, %v5046, %v5049
        %v5051 = vsel %vm5040, nan, %v5050
        %v5052 = vand.u32 2147483647, %v335
        %vm5053 = vcmp.le.f32.partialorder %v5052, 0.7853982
        %vm5054 = vcmp.lt.s32.totalorder %v335, 0
        %v5055 = vand.u32 %v335, 2139095040
        %v5056 = vshrl.u32 %v5055, 23
        %v5057 = vsub.s32 %v5056, 127
        %v5058 = vand.u32 2147483647, %v335
        %v5059 = vand.u32 %v5058, 8388607
        %v5060 = vor.u32 %v5059, 8388608
        %v5061 = vsub.s32 0, %v5060
        %v5062 = vadd.s32 %v5057, 1
        %vm5063 = vcmp.gt.s32.totalorder %v5062, 0
        %v5064 = vsel %vm5063, %v5062, 0
        %v5065 = vshrl.u32 %v5064, 5
        %v5066 = vand.u32 %v5064, 31
        %v5067 = vsub.s32 32, %v5066
        %v5068 = vshrl.u32 683565275, %v5067
        %v5069 = vshll.u32 683565275, %v5066
        %v5070 = vshrl.u32 2475754826, %v5067
        %v5071 = vor.u32 %v5069, %v5070
        %v5072 = vshll.u32 2475754826, %v5066
        %v5073 = vshrl.u32 2131351028, %v5067
        %v5074 = vor.u32 %v5072, %v5073
        %v5075 = vshll.u32 2131351028, %v5066
        %v5076 = vshrl.u32 2102212464, %v5067
        %v5077 = vor.u32 %v5075, %v5076
        %v5078 = vshll.u32 2102212464, %v5066
        %v5079 = vshrl.u32 920167782, %v5067
        %v5080 = vor.u32 %v5078, %v5079
        %v5081 = vshll.u32 920167782, %v5066
        %v5082 = vshrl.u32 1326507024, %v5067
        %v5083 = vor.u32 %v5081, %v5082
        %vm5084 = vcmp.lt.s32.totalorder %v5065, 1
        %vm5085 = vcmp.lt.s32.totalorder %v5065, 2
        %vm5086 = vcmp.lt.s32.totalorder %v5065, 3
        %vm5087 = vcmp.lt.s32.totalorder %v5065, 4
        %v5088 = vsel %vm5084, %v5068, %v5071
        %v5089 = vsel %vm5087, %v5077, 2102212464
        %v5090 = vsel %vm5086, %v5074, %v5089
        %v5091 = vsel %vm5085, %v5088, %v5090
        %v5092 = vsel %vm5084, %v5071, %v5074
        %v5093 = vsel %vm5087, %v5080, 920167782
        %v5094 = vsel %vm5086, %v5077, %v5093
        %v5095 = vsel %vm5085, %v5092, %v5094
        %v5096 = vsel %vm5084, %v5074, %v5077
        %v5097 = vsel %vm5087, %v5083, 1326507024
        %v5098 = vsel %vm5086, %v5080, %v5097
        %v5099 = vsel %vm5085, %v5096, %v5098
        %v5100 = vshll.u32 %v5060, 8
        %v5101 = vand.u32 %v5100, 65535
        %v5102 = vshrl.u32 %v5100, 16
        %v5103 = vand.u32 %v5099, 65535
        %v5104 = vshrl.u32 %v5099, 16
        %v5105 = vmul.u32 %v5101, %v5103
        %v5106 = vmul.u32 %v5101, %v5104
        %v5107 = vmul.u32 %v5102, %v5103
        %v5108 = vmul.u32 %v5102, %v5104
        %v5109 = vshll.u32 %v5106, 16
        %v5110 = vshrl.u32 %v5106, 16
        %v5111 = vshll.u32 %v5107, 16
        %v5112 = vshrl.u32 %v5107, 16
        %vm5113 = vc.u32 %v5105, %v5109
        %v5114 = vsel %vm5113, 1, 0
        %v5115 = vadd.s32 %v5105, %v5109
        %v5116 = vadd.s32 %v5108, %v5114
        %vm5117 = vc.u32 %v5115, %v5111
        %v5118 = vsel %vm5117, 1, 0
        %v5119 = vadd.s32 %v5115, %v5111
        %v5120 = vadd.s32 %v5116, %v5118
        %v5121 = vadd.s32 %v5120, %v5110
        %v5122 = vadd.s32 %v5121, %v5112
        %v5123 = vand.u32 %v5100, 65535
        %v5124 = vshrl.u32 %v5100, 16
        %v5125 = vand.u32 %v5095, 65535
        %v5126 = vshrl.u32 %v5095, 16
        %v5127 = vmul.u32 %v5123, %v5125
        %v5128 = vmul.u32 %v5123, %v5126
        %v5129 = vmul.u32 %v5124, %v5125
        %v5130 = vmul.u32 %v5124, %v5126
        %v5131 = vshll.u32 %v5128, 16
        %v5132 = vshrl.u32 %v5128, 16
        %v5133 = vshll.u32 %v5129, 16
        %v5134 = vshrl.u32 %v5129, 16
        %vm5135 = vc.u32 %v5127, %v5131
        %v5136 = vsel %vm5135, 1, 0
        %v5137 = vadd.s32 %v5127, %v5131
        %v5138 = vadd.s32 %v5130, %v5136
        %vm5139 = vc.u32 %v5137, %v5133
        %v5140 = vsel %vm5139, 1, 0
        %v5141 = vadd.s32 %v5137, %v5133
        %v5142 = vadd.s32 %v5138, %v5140
        %v5143 = vadd.s32 %v5142, %v5132
        %v5144 = vadd.s32 %v5143, %v5134
        %v5145 = vmul.u32 %v5100, %v5091
        %v5146 = vadd.s32 %v5122, %v5141
        %vm5147 = vc.u32 %v5122, %v5141
        %v5148 = vadd.s32 %v5144, 1
        %v5149 = vsel %vm5147, %v5148, %v5144
        %v5150 = vadd.s32 %v5145, %v5149
        %v5151 = vadd.s32 %v5150, 536870912
        %v5152 = vshrl.u32 %v5151, 30
        %v5153 = vshll.u32 %v5152, 30
        %v5154 = vsub.s32 %v5150, %v5153
        %vm5155 = vcmp.lt.s32.totalorder %v5154, 0
        %v5156 = vsub.s32 0, %v5154
        %v5157 = vsel %vm5155, %v5156, %v5154
        %v5158 = vclz %v5157
        %v5159 = vsub.s32 %v5158, 2
        %vm5160 = vcmp.gt.s32.totalorder 0, %v5159
        %v5161 = vsel %vm5160, 0, %v5159
        %v5162 = vsub.s32 32, %v5161
        %v5163 = vshll.u32 %v5154, %v5161
        %v5164 = vshrl.u32 %v5146, %v5162
        %v5165 = vor.u32 %v5163, %v5164
        %v5166 = vsub.s32 4294967266, %v5161
        %v5167 = vadd.s32 %v5166, 127
        %v5168 = vshll.u32 %v5167, 23
        %v5169 = vor.u32 4788187, %v5168
        %v5170 = vand.u32 2147483647, %v5169
        %v5172 = vcvt.s32.f32 %v5165
        %v5173 = vmul.f32 %v5172, %v5170
        %v5174 = vxor.u32 %v5173, 2147483648
        %v5175 = vsel %vm5054, %v5174, %v5173
        %v5176 = vsub.s32 4, %v5152
        %v5177 = vsel %vm5054, %v5176, %v5152
        %v5178 = vsel %vm5053, %v335, %v5175
        %v5179 = vsel %vm5053, 0, %v5177
        %v5180 = vmul.f32 %v5178, %v5178
        %v5181 = vmul.f32 %v5180, -0.001358992
        %v5182 = vadd.f32 %v5181, 0.041655596
        %v5183 = vmul.f32 %v5180, %v5182
        %v5184 = vadd.f32 %v5183, -0.4999988
        %v5185 = vmul.f32 %v5180, %v5184
        %v5186 = vadd.f32 1.0, %v5185
        %v5187 = vmul.f32 %v5178, %v5178
        %v5188 = vmul.f32 %v5187, -0.00019511016
        %v5189 = vadd.f32 %v5188, 0.008332121
        %v5190 = vmul.f32 %v5187, %v5189
        %v5191 = vadd.f32 %v5190, -0.16666654
        %v5192 = vmul.f32 %v5187, %v5191
        %v5193 = vadd.f32 %v5192, 1.0
        %v5194 = vmul.f32 %v5193, %v5178
        %vm5195 = vweird.f32 %v335
        %v5196 = vadd.s32 %v5179, 3
        %v5197 = vand.u32 %v5196, 3
        %vm5198 = vcmp.lt.s32.totalorder %v5197, 2
        %vm5199 = vcmp.eq.s32.totalorder %v5197, 0
        %v5200 = vxor.u32 %v5194, 2147483648
        %v5201 = vsel %vm5199, %v5186, %v5200
        %vm5202 = vcmp.eq.s32.totalorder %v5197, 2
        %v5203 = vxor.u32 %v5186, 2147483648
        %v5204 = vsel %vm5202, %v5203, %v5194
        %v5205 = vsel %vm5198, %v5201, %v5204
        %v5206 = vsel %vm5195, nan, %v5205
        %v5207 = vand.u32 2147483647, %v400
        %vm5208 = vcmp.le.f32.partialorder %v5207, 0.7853982
        %vm5209 = vcmp.lt.s32.totalorder %v400, 0
        %v5210 = vand.u32 %v400, 2139095040
        %v5211 = vshrl.u32 %v5210, 23
        %v5212 = vsub.s32 %v5211, 127
        %v5213 = vand.u32 2147483647, %v400
        %v5214 = vand.u32 %v5213, 8388607
        %v5215 = vor.u32 %v5214, 8388608
        %v5216 = vsub.s32 0, %v5215
        %v5217 = vadd.s32 %v5212, 1
        %vm5218 = vcmp.gt.s32.totalorder %v5217, 0
        %v5219 = vsel %vm5218, %v5217, 0
        %v5220 = vshrl.u32 %v5219, 5
        %v5221 = vand.u32 %v5219, 31
        %v5222 = vsub.s32 32, %v5221
        %v5223 = vshrl.u32 683565275, %v5222
        %v5224 = vshll.u32 683565275, %v5221
        %v5225 = vshrl.u32 2475754826, %v5222
        %v5226 = vor.u32 %v5224, %v5225
        %v5227 = vshll.u32 2475754826, %v5221
        %v5228 = vshrl.u32 2131351028, %v5222
        %v5229 = vor.u32 %v5227, %v5228
        %v5230 = vshll.u32 2131351028, %v5221
        %v5231 = vshrl.u32 2102212464, %v5222
        %v5232 = vor.u32 %v5230, %v5231
        %v5233 = vshll.u32 2102212464, %v5221
        %v5234 = vshrl.u32 920167782, %v5222
        %v5235 = vor.u32 %v5233, %v5234
        %v5236 = vshll.u32 920167782, %v5221
        %v5237 = vshrl.u32 1326507024, %v5222
        %v5238 = vor.u32 %v5236, %v5237
        %vm5239 = vcmp.lt.s32.totalorder %v5220, 1
        %vm5240 = vcmp.lt.s32.totalorder %v5220, 2
        %vm5241 = vcmp.lt.s32.totalorder %v5220, 3
        %vm5242 = vcmp.lt.s32.totalorder %v5220, 4
        %v5243 = vsel %vm5239, %v5223, %v5226
        %v5244 = vsel %vm5242, %v5232, 2102212464
        %v5245 = vsel %vm5241, %v5229, %v5244
        %v5246 = vsel %vm5240, %v5243, %v5245
        %v5247 = vsel %vm5239, %v5226, %v5229
        %v5248 = vsel %vm5242, %v5235, 920167782
        %v5249 = vsel %vm5241, %v5232, %v5248
        %v5250 = vsel %vm5240, %v5247, %v5249
        %v5251 = vsel %vm5239, %v5229, %v5232
        %v5252 = vsel %vm5242, %v5238, 1326507024
        %v5253 = vsel %vm5241, %v5235, %v5252
        %v5254 = vsel %vm5240, %v5251, %v5253
        %v5255 = vshll.u32 %v5215, 8
        %v5256 = vand.u32 %v5255, 65535
        %v5257 = vshrl.u32 %v5255, 16
        %v5258 = vand.u32 %v5254, 65535
        %v5259 = vshrl.u32 %v5254, 16
        %v5260 = vmul.u32 %v5256, %v5258
        %v5261 = vmul.u32 %v5256, %v5259
        %v5262 = vmul.u32 %v5257, %v5258
        %v5263 = vmul.u32 %v5257, %v5259
        %v5264 = vshll.u32 %v5261, 16
        %v5265 = vshrl.u32 %v5261, 16
        %v5266 = vshll.u32 %v5262, 16
        %v5267 = vshrl.u32 %v5262, 16
        %vm5268 = vc.u32 %v5260, %v5264
        %v5269 = vsel %vm5268, 1, 0
        %v5270 = vadd.s32 %v5260, %v5264
        %v5271 = vadd.s32 %v5263, %v5269
        %vm5272 = vc.u32 %v5270, %v5266
        %v5273 = vsel %vm5272, 1, 0
        %v5274 = vadd.s32 %v5270, %v5266
        %v5275 = vadd.s32 %v5271, %v5273
        %v5276 = vadd.s32 %v5275, %v5265
        %v5277 = vadd.s32 %v5276, %v5267
        %v5278 = vand.u32 %v5255, 65535
        %v5279 = vshrl.u32 %v5255, 16
        %v5280 = vand.u32 %v5250, 65535
        %v5281 = vshrl.u32 %v5250, 16
        %v5282 = vmul.u32 %v5278, %v5280
        %v5283 = vmul.u32 %v5278, %v5281
        %v5284 = vmul.u32 %v5279, %v5280
        %v5285 = vmul.u32 %v5279, %v5281
        %v5286 = vshll.u32 %v5283, 16
        %v5287 = vshrl.u32 %v5283, 16
        %v5288 = vshll.u32 %v5284, 16
        %v5289 = vshrl.u32 %v5284, 16
        %vm5290 = vc.u32 %v5282, %v5286
        %v5291 = vsel %vm5290, 1, 0
        %v5292 = vadd.s32 %v5282, %v5286
        %v5293 = vadd.s32 %v5285, %v5291
        %vm5294 = vc.u32 %v5292, %v5288
        %v5295 = vsel %vm5294, 1, 0
        %v5296 = vadd.s32 %v5292, %v5288
        %v5297 = vadd.s32 %v5293, %v5295
        %v5298 = vadd.s32 %v5297, %v5287
        %v5299 = vadd.s32 %v5298, %v5289
        %v5300 = vmul.u32 %v5255, %v5246
        %v5301 = vadd.s32 %v5277, %v5296
        %vm5302 = vc.u32 %v5277, %v5296
        %v5303 = vadd.s32 %v5299, 1
        %v5304 = vsel %vm5302, %v5303, %v5299
        %v5305 = vadd.s32 %v5300, %v5304
        %v5306 = vadd.s32 %v5305, 536870912
        %v5307 = vshrl.u32 %v5306, 30
        %v5308 = vshll.u32 %v5307, 30
        %v5309 = vsub.s32 %v5305, %v5308
        %vm5310 = vcmp.lt.s32.totalorder %v5309, 0
        %v5311 = vsub.s32 0, %v5309
        %v5312 = vsel %vm5310, %v5311, %v5309
        %v5313 = vclz %v5312
        %v5314 = vsub.s32 %v5313, 2
        %vm5315 = vcmp.gt.s32.totalorder 0, %v5314
        %v5316 = vsel %vm5315, 0, %v5314
        %v5317 = vsub.s32 32, %v5316
        %v5318 = vshll.u32 %v5309, %v5316
        %v5319 = vshrl.u32 %v5301, %v5317
        %v5320 = vor.u32 %v5318, %v5319
        %v5321 = vsub.s32 4294967266, %v5316
        %v5322 = vadd.s32 %v5321, 127
        %v5323 = vshll.u32 %v5322, 23
        %v5324 = vor.u32 4788187, %v5323
        %v5325 = vand.u32 2147483647, %v5324
        %v5327 = vcvt.s32.f32 %v5320
        %v5328 = vmul.f32 %v5327, %v5325
        %v5329 = vxor.u32 %v5328, 2147483648
        %v5330 = vsel %vm5209, %v5329, %v5328
        %v5331 = vsub.s32 4, %v5307
        %v5332 = vsel %vm5209, %v5331, %v5307
        %v5333 = vsel %vm5208, %v400, %v5330
        %v5334 = vsel %vm5208, 0, %v5332
        %v5335 = vmul.f32 %v5333, %v5333
        %v5336 = vmul.f32 %v5335, -0.001358992
        %v5337 = vadd.f32 %v5336, 0.041655596
        %v5338 = vmul.f32 %v5335, %v5337
        %v5339 = vadd.f32 %v5338, -0.4999988
        %v5340 = vmul.f32 %v5335, %v5339
        %v5341 = vadd.f32 1.0, %v5340
        %v5342 = vmul.f32 %v5333, %v5333
        %v5343 = vmul.f32 %v5342, -0.00019511016
        %v5344 = vadd.f32 %v5343, 0.008332121
        %v5345 = vmul.f32 %v5342, %v5344
        %v5346 = vadd.f32 %v5345, -0.16666654
        %v5347 = vmul.f32 %v5342, %v5346
        %v5348 = vadd.f32 %v5347, 1.0
        %v5349 = vmul.f32 %v5348, %v5333
        %vm5350 = vweird.f32 %v400
        %v5351 = vadd.s32 %v5334, 3
        %v5352 = vand.u32 %v5351, 3
        %vm5353 = vcmp.lt.s32.totalorder %v5352, 2
        %vm5354 = vcmp.eq.s32.totalorder %v5352, 0
        %v5355 = vxor.u32 %v5349, 2147483648
        %v5356 = vsel %vm5354, %v5341, %v5355
        %vm5357 = vcmp.eq.s32.totalorder %v5352, 2
        %v5358 = vxor.u32 %v5341, 2147483648
        %v5359 = vsel %vm5357, %v5358, %v5349
        %v5360 = vsel %vm5353, %v5356, %v5359
        %v5361 = vsel %vm5350, nan, %v5360
        %v5362 = vld [vmem:[%s3] sm:$0xff]
        %v5363 = vld [vmem:[%s3 + $0x8] sm:$0xff]
        %v5364 = vld [vmem:[%s3 + $0x10] sm:$0xff]
        %v5365 = vld [vmem:[%s3 + $0x18] sm:$0xff]
        %v5366 = vld [vmem:[%s3 + $0x20] sm:$0xff]
        %v5367 = vld [vmem:[%s3 + $0x28] sm:$0xff]
        %v5368 = vld [vmem:[%s3 + $0x30] sm:$0xff]
        %v5369 = vld [vmem:[%s3 + $0x38] sm:$0xff]
        %v5370 = vld [vmem:[%s3 + $0x40] sm:$0xff]
        %v5371 = vld [vmem:[%s3 + $0x48] sm:$0xff]
        %v5372 = vld [vmem:[%s3 + $0x50] sm:$0xff]
        %v5373 = vld [vmem:[%s3 + $0x58] sm:$0xff]
        %v5374 = vld [vmem:[%s3 + $0x60] sm:$0xff]
        %v5375 = vld [vmem:[%s3 + $0x68] sm:$0xff]
        %v5376 = vld [vmem:[%s3 + $0x70] sm:$0xff]
        %v5377 = vld [vmem:[%s3 + $0x78] sm:$0xff]
        %v5378 = vld [vmem:[%s3 + $0x80] sm:$0xff]
        %v5379 = vld [vmem:[%s3 + $0x88] sm:$0xff]
        %v5380 = vld [vmem:[%s3 + $0x90] sm:$0xff]
        %v5381 = vld [vmem:[%s3 + $0x98] sm:$0xff]
        %v5382 = vld [vmem:[%s3 + $0xa0] sm:$0xff]
        %v5383 = vld [vmem:[%s3 + $0xa8] sm:$0xff]
        %v5384 = vld [vmem:[%s3 + $0xb0] sm:$0xff]
        %v5385 = vld [vmem:[%s3 + $0xb8] sm:$0xff]
        %v5386 = vld [vmem:[%s3 + $0xc0] sm:$0xff]
        %v5387 = vld [vmem:[%s3 + $0xc8] sm:$0xff]
        %v5388 = vld [vmem:[%s3 + $0xd0] sm:$0xff]
        %v5389 = vld [vmem:[%s3 + $0xd8] sm:$0xff]
        %v5390 = vld [vmem:[%s3 + $0xe0] sm:$0xff]
        %v5391 = vld [vmem:[%s3 + $0xe8] sm:$0xff]
        %v5392 = vld [vmem:[%s3 + $0xf0] sm:$0xff]
        %v5393 = vld [vmem:[%s3 + $0xf8] sm:$0xff]
        %5394 = vmatpush.msra.mxu0 %v5377
        %5395 = vmatpush.msra.mxu0 %v5376
        %5396 = vmatpush.msra.mxu0 %v5375
        %5397 = vmatpush.msra.mxu0 %v5374
        %5398 = vmatpush.msra.mxu0 %v5373
        %5399 = vmatpush.msra.mxu0 %v5372
        %5400 = vmatpush.msra.mxu0 %v5371
        %5401 = vmatpush.msra.mxu0 %v5370
        %5402 = vmatpush.msra.mxu0 %v5369
        %5403 = vmatpush.msra.mxu0 %v5368
        %5404 = vmatpush.msra.mxu0 %v5367
        %5405 = vmatpush.msra.mxu0 %v5366
        %5406 = vmatpush.msra.mxu0 %v5365
        %5407 = vmatpush.msra.mxu0 %v5364
        %5408 = vmatpush.msra.mxu0 %v5363
        %5409 = vmatpush.msra.mxu0 %v5362
        %5410 = vmatmul.f32.gmra.mxu0 %v556
        %v5411 = vpop.f32.mrf.mxu0
        %v5412 = vadd.f32 0.0, %v5411
        %5413 = vmatmul.f32.gmra.mxu0 %v866
        %v5414 = vpop.f32.mrf.mxu0
        %v5415 = vadd.f32 0.0, %v5414
        %5416 = vmatmul.f32.gmra.mxu0 %v1176
        %v5417 = vpop.f32.mrf.mxu0
        %v5418 = vadd.f32 0.0, %v5417
        %5419 = vmatmul.f32.gmra.mxu0 %v1486
        %v5420 = vpop.f32.mrf.mxu0
        %v5421 = vadd.f32 0.0, %v5420
        %5422 = vmatmul.f32.gmra.mxu0 %v1796
        %v5423 = vpop.f32.mrf.mxu0
        %v5424 = vadd.f32 0.0, %v5423
        %5425 = vmatmul.f32.gmra.mxu0 %v2106
        %v5426 = vpop.f32.mrf.mxu0
        %v5427 = vadd.f32 0.0, %v5426
        %5428 = vmatmul.f32.gmra.mxu0 %v2416
        %v5429 = vpop.f32.mrf.mxu0
        %v5430 = vadd.f32 0.0, %v5429
        %5431 = vmatmul.f32.gmra.mxu0 %v2726
        %v5432 = vpop.f32.mrf.mxu0
        %v5433 = vadd.f32 0.0, %v5432
        %5434 = vmatmul.f32.gmra.mxu0 %v3036
        %v5435 = vpop.f32.mrf.mxu0
        %v5436 = vadd.f32 0.0, %v5435
        %5437 = vmatmul.f32.gmra.mxu0 %v3346
        %v5438 = vpop.f32.mrf.mxu0
        %v5439 = vadd.f32 0.0, %v5438
        %5440 = vmatmul.f32.gmra.mxu0 %v3656
        %v5441 = vpop.f32.mrf.mxu0
        %v5442 = vadd.f32 0.0, %v5441
        %5443 = vmatmul.f32.gmra.mxu0 %v3966
        %v5444 = vpop.f32.mrf.mxu0
        %v5445 = vadd.f32 0.0, %v5444
        %5446 = vmatmul.f32.gmra.mxu0 %v4276
        %v5447 = vpop.f32.mrf.mxu0
        %v5448 = vadd.f32 0.0, %v5447
        %5449 = vmatmul.f32.gmra.mxu0 %v4586
        %v5450 = vpop.f32.mrf.mxu0
        %v5451 = vadd.f32 0.0, %v5450
        %5452 = vmatmul.f32.gmra.mxu0 %v4896
        %v5453 = vpop.f32.mrf.mxu0
        %v5454 = vadd.f32 0.0, %v5453
        %5455 = vmatmul.f32.gmra.mxu0 %v5206
        %v5456 = vpop.f32.mrf.mxu0
        %v5457 = vadd.f32 0.0, %v5456
        %5458 = vdwg.mxu0
        %5459 = vmatpush.msra.mxu0 %v5393
        %5460 = vmatpush.msra.mxu0 %v5392
        %5461 = vmatpush.msra.mxu0 %v5391
        %5462 = vmatpush.msra.mxu0 %v5390
        %5463 = vmatpush.msra.mxu0 %v5389
        %5464 = vmatpush.msra.mxu0 %v5388
        %5465 = vmatpush.msra.mxu0 %v5387
        %5466 = vmatpush.msra.mxu0 %v5386
        %5467 = vmatpush.msra.mxu0 %v5385
        %5468 = vmatpush.msra.mxu0 %v5384
        %5469 = vmatpush.msra.mxu0 %v5383
        %5470 = vmatpush.msra.mxu0 %v5382
        %5471 = vmatpush.msra.mxu0 %v5381
        %5472 = vmatpush.msra.mxu0 %v5380
        %5473 = vmatpush.msra.mxu0 %v5379
        %5474 = vmatpush.msra.mxu0 %v5378
        %5475 = vmatmul.f32.gmra.mxu0 %v711
        %v5476 = vpop.f32.mrf.mxu0
        %v5477 = vadd.f32 %v5412, %v5476
        %5478 = vmatmul.f32.gmra.mxu0 %v1021
        %v5479 = vpop.f32.mrf.mxu0
        %v5480 = vadd.f32 %v5415, %v5479
        %5481 = vmatmul.f32.gmra.mxu0 %v1331
        %v5482 = vpop.f32.mrf.mxu0
        %v5483 = vadd.f32 %v5418, %v5482
        %5484 = vmatmul.f32.gmra.mxu0 %v1641
        %v5485 = vpop.f32.mrf.mxu0
        %v5486 = vadd.f32 %v5421, %v5485
        %5487 = vmatmul.f32.gmra.mxu0 %v1951
        %v5488 = vpop.f32.mrf.mxu0
        %v5489 = vadd.f32 %v5424, %v5488
        %5490 = vmatmul.f32.gmra.mxu0 %v2261
        %v5491 = vpop.f32.mrf.mxu0
        %v5492 = vadd.f32 %v5427, %v5491
        %5493 = vmatmul.f32.gmra.mxu0 %v2571
        %v5494 = vpop.f32.mrf.mxu0
        %v5495 = vadd.f32 %v5430, %v5494
        %5496 = vmatmul.f32.gmra.mxu0 %v2881
        %v5497 = vpop.f32.mrf.mxu0
        %v5498 = vadd.f32 %v5433, %v5497
        %5499 = vmatmul.f32.gmra.mxu0 %v3191
        %v5500 = vpop.f32.mrf.mxu0
        %v5501 = vadd.f32 %v5436, %v5500
        %5502 = vmatmul.f32.gmra.mxu0 %v3501
        %v5503 = vpop.f32.mrf.mxu0
        %v5504 = vadd.f32 %v5439, %v5503
        %5505 = vmatmul.f32.gmra.mxu0 %v3811
        %v5506 = vpop.f32.mrf.mxu0
        %v5507 = vadd.f32 %v5442, %v5506
        %5508 = vmatmul.f32.gmra.mxu0 %v4121
        %v5509 = vpop.f32.mrf.mxu0
        %v5510 = vadd.f32 %v5445, %v5509
        %5511 = vmatmul.f32.gmra.mxu0 %v4431
        %v5512 = vpop.f32.mrf.mxu0
        %v5513 = vadd.f32 %v5448, %v5512
        %5514 = vmatmul.f32.gmra.mxu0 %v4741
        %v5515 = vpop.f32.mrf.mxu0
        %v5516 = vadd.f32 %v5451, %v5515
        %5517 = vmatmul.f32.gmra.mxu0 %v5051
        %v5518 = vpop.f32.mrf.mxu0
        %v5519 = vadd.f32 %v5454, %v5518
        %5520 = vmatmul.f32.gmra.mxu0 %v5361
        %v5521 = vpop.f32.mrf.mxu0
        %v5522 = vadd.f32 %v5457, %v5521
        %5523 = vdwg.mxu0
        %5524 = vst [vmem:[%s191] sm:$0xff] %v5477
        %5525 = vst [vmem:[%s191 + $0x8] sm:$0xff] %v5480
        %5526 = vst [vmem:[%s191 + $0x10] sm:$0xff] %v5483
        %5527 = vst [vmem:[%s191 + $0x18] sm:$0xff] %v5486
        %5528 = vst [vmem:[%s191 + $0x20] sm:$0xff] %v5489
        %5529 = vst [vmem:[%s191 + $0x28] sm:$0xff] %v5492
        %5530 = vst [vmem:[%s191 + $0x30] sm:$0xff] %v5495
        %5531 = vst [vmem:[%s191 + $0x38] sm:$0xff] %v5498
        %5532 = vst [vmem:[%s191 + $0x40] sm:$0xff] %v5501
        %5533 = vst [vmem:[%s191 + $0x48] sm:$0xff] %v5504
        %5534 = vst [vmem:[%s191 + $0x50] sm:$0xff] %v5507
        %5535 = vst [vmem:[%s191 + $0x58] sm:$0xff] %v5510
        %5536 = vst [vmem:[%s191 + $0x60] sm:$0xff] %v5513
        %5537 = vst [vmem:[%s191 + $0x68] sm:$0xff] %v5516
        %5538 = vst [vmem:[%s191 + $0x70] sm:$0xff] %v5519
        %5539 = vst [vmem:[%s191 + $0x78] sm:$0xff] %v5522
        %s5540 = sand.u32 %s115, 1
        %s5541 = scalar_lea.sflag [#allocation3], %s5540
        %s5542 = sand.u32 %s115, 1
        %s5543 = smul.addr %s5542, 128
        %s5544 = scalar_lea.vmem [#allocation2], %s5543
        // Predicated region
        $region37: #{tpu_custom_call.1} parent=35 // pred_check
          %p5545 = pneg %p125
        $region38: #{tpu_custom_call.1} parent=35 // pred_check_branch
          %5547 = sbr.rel (%p5545) target = $region40
        $region39: #{tpu_custom_call.1} parent=35 // pred_region
          %s5548 = smul.u32 16, %s18
          %5550 = vsyncadd %s5541, 0
          %s5551 = smul.addr %s5548, 8
          %s5552 = scalar_lea.hbm %s4, %s5551
          %s5553 = sshll.u32 %s5544, 4
          %s5554 = int_to_ptr.vmem [resolvable:$true] %s5553
          %s5555 = sshll.u32 %s5552, 4
          %s5556 = int_to_ptr.hbm [resolvable:$true] %s5555
          %5561 = dma.vmem_to_hbm [thread:$0]  %s5554, 2048, %s5556, %s5541, 128, 128, 8
        $region40: #{tpu_custom_call.1} parent=35 // pred_fallthru
          _
      $region36: #{tpu_custom_call.1} parent=5 // pred_fallthru
        _
      %p5562 = scmp.le.s32.totalorder 2, %s13
      // Predicated region
      $region41: #{tpu_custom_call.1} parent=5 // pred_check
        %p5563 = pneg %p5562
      $region42: #{tpu_custom_call.1} parent=5 // pred_check_branch
        %5565 = sbr.rel (%p5563) target = $region44
      $region43: #{tpu_custom_call.1} parent=5 // pred_region
        %s5566 = ssub.s32 %s13, 2
        // Predicated region
        $region45: #{tpu_custom_call.1} parent=43 // pred_check
          %p5567 = pneg %p131
        $region46: #{tpu_custom_call.1} parent=43 // pred_check_branch
          %5569 = sbr.rel (%p5567) target = $region48
        $region47: #{tpu_custom_call.1} parent=43 // pred_region
          %s5570 = sand.u32 %s116, 1
          %s5571 = scalar_lea.sflag [#allocation3], %s5570
          %s5572 = sand.u32 %s116, 1
          %s5573 = smul.addr %s5572, 128
          %s5574 = scalar_lea.vmem [#allocation2], %s5573
          %5576 = dma.done %s5571, 2048
        $region48: #{tpu_custom_call.1} parent=43 // pred_fallthru
          _
      $region44: #{tpu_custom_call.1} parent=5 // pred_fallthru
        _
    $region6: #{tpu_custom_call.1} parent=1 // loop_footer
      %s17 = sadd.s32 1, %s13
    $region7: #{tpu_custom_call.1} parent=1 // loop_footer_branch
      %12 = sbr.rel target = $region3
    $region8: #{tpu_custom_call.1} parent=1 // loop_exit
      _
    %5577 = vsyncpa [#allocation3], 1
    %s5578 = scalar_lea.sflag [#allocation3], 1
    %5579 = vsyncpa %s5578, 1

</llo_original>
